<compile_context>
chip_gen: v7x
topology: tpu7x:2x2x1
jax: 0.10.0
libtpu: 0.0.40
codegen_flags: <defaults>
</compile_context>

<pallas_src>
import functools

import numpy as np
import jax
import jax.numpy as jnp
from jax import lax
from jax.experimental import pallas as pl
from jax.experimental.pallas import tpu as pltpu

LANE = 128


def _round_up(n, m):
    return ((n + m - 1) // m) * m


# ----------------------------------------------------------------------------- kernel
def adapter_cnn_kernel(x_ref, shift_ref,
                       w1_ref, b1_ref, w2_ref, b2_ref,
                       se_w1_ref, se_b1_ref, se_w2_ref, se_b2_ref,
                       wo_ref, bo_ref, o_ref, *, compute_dtype=jnp.float32):
    f32 = jnp.float32
    x = x_ref[0]                                   # (HW, Cin_p) f32, channels lane-dense
    hw = x.shape[0]

    def conv3x3(inp, w_ref, b_ref):
        """3x3 same-padded conv as 9 (shift @ inp) @ w_tap MXU matmuls, f32 accum."""
        acc = jnp.zeros((hw, w_ref.shape[-1]), f32)
        for k in range(9):                         # static unroll over the 9 taps
            sk = shift_ref[k].astype(compute_dtype)
            shifted = jnp.dot(sk, inp.astype(compute_dtype),
                              preferred_element_type=f32)            # (HW, Cin)
            acc = acc + jnp.dot(shifted.astype(compute_dtype),
                                w_ref[k].astype(compute_dtype),
                                preferred_element_type=f32)          # (HW, Cout)
        return acc + b_ref[...]                    # (1, Cout) broadcasts over rows

    # conv1 -> bn1 (folded) -> ReLU
    h1 = jnp.maximum(conv3x3(x, w1_ref, b1_ref), 0.0)
    # conv2 -> bn2 (folded)   (no activation before the SE block, as in the module)
    h2 = conv3x3(h1, w2_ref, b2_ref)

    # SE: 0.5*mean + 0.5*max over spatial, fc1 -> ReLU -> fc2 -> sigmoid gate
    pooled = 0.5 * jnp.mean(h2, axis=0, keepdims=True) \
           + 0.5 * jnp.max(h2, axis=0, keepdims=True)                # (1, Cin_p)
    se = jnp.dot(pooled.astype(compute_dtype),
                 se_w1_ref[...].astype(compute_dtype),
                 preferred_element_type=f32) + se_b1_ref[...]
    se = jnp.maximum(se, 0.0)
    se = jnp.dot(se.astype(compute_dtype),
                 se_w2_ref[...].astype(compute_dtype),
                 preferred_element_type=f32) + se_b2_ref[...]
    gate = 1.0 / (1.0 + jnp.exp(-se))                                # sigmoid on EUP
    h3 = h2 * gate                                                   # broadcast over rows

    # residual add + ReLU
    h3 = jnp.maximum(h3 + x, 0.0)

    # out_conv (1x1) + ReLU — lane-dense Cout_p => unmasked full-lane stores
    y = jnp.dot(h3.astype(compute_dtype), wo_ref[...].astype(compute_dtype),
                preferred_element_type=f32) + bo_ref[...]
    o_ref[0] = jnp.maximum(y, 0.0).astype(o_ref.dtype)


# --------------------------------------------------------------------------- weight prep
def _fold_bn(conv_w, conv_b, gamma, beta, mean, var, eps):
    """Fold eval-mode BatchNorm into conv weight (OIHW) and bias."""
    a = gamma / jnp.sqrt(var + eps)
    w = conv_w * a[:, None, None, None]
    b = a * conv_b + (beta - a * mean)
    return w, b


def _conv3x3_taps(w_oihw, cin_p, cout_p):
    """(Cout, Cin, 3, 3) -> (9, Cin_p, Cout_p), tap k = (kh*3+kw), zero-padded."""
    cout, cin = w_oihw.shape[0], w_oihw.shape[1]
    w = jnp.transpose(w_oihw, (2, 3, 1, 0)).reshape(9, cin, cout)
    return jnp.pad(w, ((0, 0), (0, cin_p - cin), (0, cout_p - cout))).astype(jnp.float32)


def _conv1x1_mat(w_oi11, cin_p, cout_p):
    """(Cout, Cin, 1, 1) -> (Cin_p, Cout_p), zero-padded."""
    w = jnp.transpose(w_oi11[:, :, 0, 0], (1, 0))
    return jnp.pad(w, ((0, cin_p - w.shape[0]), (0, cout_p - w.shape[1]))).astype(jnp.float32)


def _pad_bias(b, n):
    return jnp.pad(b, (0, n - b.shape[0])).reshape(1, n).astype(jnp.float32)


def _shift_matrices(H, W):
    """9 (HW, HW) 0/1 matrices: S_k @ x_flat == x spatially shifted by tap k (zero pad)."""
    HW = H * W
    S = np.zeros((9, HW, HW), np.float32)
    k = 0
    for dy in (-1, 0, 1):
        for dx in (-1, 0, 1):
            for h in range(H):
                for w in range(W):
                    hh, ww = h + dy, w + dx
                    if 0 <= hh < H and 0 <= ww < W:
                        S[k, h * W + w, hh * W + ww] = 1.0
            k += 1
    return jnp.asarray(S)


# ------------------------------------------------------------------------------ wrapper
def adapter_cnn_forward(x_nchw, params, *, compute_dtype=jnp.float32, bn_eps=1e-5):
    """x_nchw: (B, inplanes, H, W) f32.  params: PyTorch-layout tensors (see __main__)."""
    B, cin, H, W = x_nchw.shape
    cmid = params["conv1_w"].shape[0]
    cout = params["out_w"].shape[0]
    HW = H * W
    cin_p = _round_up(cin, LANE)
    cmid_p = _round_up(cmid, LANE)
    cout_p = _round_up(cout, LANE)

    # Fold eval-mode BN into conv1/conv2, pad everything to lane-dense widths.
    w1f, b1f = _fold_bn(params["conv1_w"], params["conv1_b"], params["bn1_gamma"],
                        params["bn1_beta"], params["bn1_mean"], params["bn1_var"], bn_eps)
    w2f, b2f = _fold_bn(params["conv2_w"], params["conv2_b"], params["bn2_gamma"],
                        params["bn2_beta"], params["bn2_mean"], params["bn2_var"], bn_eps)
    w1_t = _conv3x3_taps(w1f, cin_p, cmid_p)        # (9, cin_p, cmid_p)
    w2_t = _conv3x3_taps(w2f, cmid_p, cin_p)        # (9, cmid_p, cin_p)
    b1_p = _pad_bias(b1f, cmid_p)
    b2_p = _pad_bias(b2f, cin_p)
    se_w1 = _conv1x1_mat(params["se_fc1_w"], cin_p, cin_p)
    se_b1 = _pad_bias(params["se_fc1_b"], cin_p)
    se_w2 = _conv1x1_mat(params["se_fc2_w"], cin_p, cin_p)
    se_b2 = _pad_bias(params["se_fc2_b"], cin_p)
    wo = _conv1x1_mat(params["out_w"], cin_p, cout_p)
    bo = _pad_bias(params["out_b"], cout_p)

    # NCHW -> channels-last with flattened spatial, channel dim zero-padded to 128 lanes.
    x_p = jnp.transpose(x_nchw, (0, 2, 3, 1)).reshape(B, HW, cin)
    x_p = jnp.pad(x_p, ((0, 0), (0, 0), (0, cin_p - cin))).astype(jnp.float32)

    shift = _shift_matrices(H, W)                   # (9, HW, HW)

    def resident(arr):
        n = arr.ndim
        return pl.BlockSpec(arr.shape, lambda b, n=n: (0,) * n)

    in_specs = [
        pl.BlockSpec((1, HW, cin_p), lambda b: (b, 0, 0)),   # per-sample activation tile
        resident(shift),
        resident(w1_t), resident(b1_p),
        resident(w2_t), resident(b2_p),
        resident(se_w1), resident(se_b1),
        resident(se_w2), resident(se_b2),
        resident(wo), resident(bo),
    ]
    out_specs = pl.BlockSpec((1, HW, cout_p), lambda b: (b, 0, 0))

    operands = (x_p, shift, w1_t, b1_p, w2_t, b2_p, se_w1, se_b1, se_w2, se_b2, wo, bo)
    bytes_accessed = int(sum(int(o.size) for o in operands) * 4 + B * HW * cout_p * 4)
    flops = int(2 * B * (9 * HW * HW * (cin_p + cmid_p)
                         + 9 * HW * (cin_p * cmid_p + cmid_p * cin_p)
                         + 2 * cin_p * cin_p
                         + HW * cin_p * cout_p))
    cost = pl.CostEstimate(flops=flops, transcendentals=int(B * cin_p),
                           bytes_accessed=bytes_accessed)

    out = pl.pallas_call(
        functools.partial(adapter_cnn_kernel, compute_dtype=compute_dtype),
        out_shape=jax.ShapeDtypeStruct((B, HW, cout_p), jnp.float32),
        grid=(B,),
        in_specs=in_specs,
        out_specs=out_specs,
        compiler_params=pltpu.CompilerParams(
            dimension_semantics=("parallel",),
            vmem_limit_bytes=32 * 1024 * 1024),
        cost_estimate=cost,
    )(*operands)

    y = out[:, :, :cout].reshape(B, H, W, cout)     # drop zero-padded lanes
    return jnp.transpose(y, (0, 3, 1, 2))           # back to NCHW (PyTorch layout)


# ---------------------------------------------------------------------------- reference
def adapter_cnn_reference(x, p, eps=1e-5):
    prec = lax.Precision.HIGHEST

    def conv(z, w, b, pad):
        y = lax.conv_general_dilated(z, w, window_strides=(1, 1),
                                     padding=((pad, pad), (pad, pad)),
                                     dimension_numbers=("NCHW", "OIHW", "NCHW"),
                                     precision=prec)
        return y + b[None, :, None, None]

    def bn(z, g, bt, mu, var):
        a = g / jnp.sqrt(var + eps)
        return a[None, :, None, None] * z + (bt - a * mu)[None, :, None, None]

    shortcut = x
    h = conv(x, p["conv1_w"], p["conv1_b"], 1)
    h = jnp.maximum(bn(h, p["bn1_gamma"], p["bn1_beta"], p["bn1_mean"], p["bn1_var"]), 0.0)
    h = conv(h, p["conv2_w"], p["conv2_b"], 1)
    h = bn(h, p["bn2_gamma"], p["bn2_beta"], p["bn2_mean"], p["bn2_var"])
    se = 0.5 * jnp.mean(h, axis=(2, 3), keepdims=True) \
       + 0.5 * jnp.max(h, axis=(2, 3), keepdims=True)
    se = conv(se, p["se_fc1_w"], p["se_fc1_b"], 0)
    se = jnp.maximum(se, 0.0)
    se = conv(se, p["se_fc2_w"], p["se_fc2_b"], 0)
    h = h * jax.nn.sigmoid(se)
    h = jnp.maximum(h + shortcut, 0.0)
    y = conv(h, p["out_w"], p["out_b"], 0)
    return jnp.maximum(y, 0.0)


# --------------------------------------------------------------------------------- main
if __name__ == "__main__":
    B, inplanes, outplanes, H, W = 2, 16, 8, 8, 8
    mid = inplanes // 4

    key = jax.random.PRNGKey(0)
    ks = list(jax.random.split(key, 20))

    def nrm(k, shape, scale=0.1):
        return scale * jax.random.normal(k, shape, dtype=jnp.float32)

    params = {
        "conv1_w": nrm(ks[0], (mid, inplanes, 3, 3)),
        "conv1_b": nrm(ks[1], (mid,)),
        "bn1_gamma": 1.0 + nrm(ks[2], (mid,)),
        "bn1_beta": nrm(ks[3], (mid,)),
        "bn1_mean": nrm(ks[4], (mid,)),
        "bn1_var": 1.0 + jnp.abs(nrm(ks[5], (mid,))),
        "conv2_w": nrm(ks[6], (inplanes, mid, 3, 3)),
        "conv2_b": nrm(ks[7], (inplanes,)),
        "bn2_gamma": 1.0 + nrm(ks[8], (inplanes,)),
        "bn2_beta": nrm(ks[9], (inplanes,)),
        "bn2_mean": nrm(ks[10], (inplanes,)),
        "bn2_var": 1.0 + jnp.abs(nrm(ks[11], (inplanes,))),
        "se_fc1_w": nrm(ks[12], (inplanes, inplanes, 1, 1)),
        "se_fc1_b": nrm(ks[13], (inplanes,)),
        "se_fc2_w": nrm(ks[14], (inplanes, inplanes, 1, 1)),
        "se_fc2_b": nrm(ks[15], (inplanes,)),
        "out_w": nrm(ks[16], (outplanes, inplanes, 1, 1)),
        "out_b": nrm(ks[17], (outplanes,)),
    }
    x = jax.random.normal(ks[18], (B, inplanes, H, W), dtype=jnp.float32)

    out = adapter_cnn_forward(x, params)            # f32 MXU operands (safe on v5e);
    out = jax.block_until_ready(out)                # pass compute_dtype=jnp.bfloat16 on v6e/v7x

    ref = adapter_cnn_reference(x, params)
    assert out.shape == (B, outplanes, H, W), out.shape
    assert jnp.allclose(out, ref, atol=5e-3, rtol=5e-3), \
        f"max abs err = {float(jnp.max(jnp.abs(out - ref)))}"

    print("KERNEL_OK")
</pallas_src>

<mosaic_0001>
module attributes {stable_mosaic.version = 11 : i64} {
  func.func @adapter_cnn_kernel(%arg0: i32, %arg1: memref<1x64x128xf32, #tpu.memory_space<vmem>>, %arg2: memref<9x64x64xf32, #tpu.memory_space<vmem>>, %arg3: memref<9x128x128xf32, #tpu.memory_space<vmem>>, %arg4: memref<1x128xf32, #tpu.memory_space<vmem>>, %arg5: memref<9x128x128xf32, #tpu.memory_space<vmem>>, %arg6: memref<1x128xf32, #tpu.memory_space<vmem>>, %arg7: memref<128x128xf32, #tpu.memory_space<vmem>>, %arg8: memref<1x128xf32, #tpu.memory_space<vmem>>, %arg9: memref<128x128xf32, #tpu.memory_space<vmem>>, %arg10: memref<1x128xf32, #tpu.memory_space<vmem>>, %arg11: memref<128x128xf32, #tpu.memory_space<vmem>>, %arg12: memref<1x128xf32, #tpu.memory_space<vmem>>, %arg13: memref<1x64x128xf32, #tpu.memory_space<vmem>>) attributes {dimension_semantics = [#tpu.dimension_semantics<parallel>], iteration_bounds = array<i64: 2>, scalar_prefetch = 0 : i64, scratch_operands = 0 : i64, tpu.core_type = #tpu.core_type<tc>, window_params = [{transform_indices = @transform_0, window_bounds = array<i64: 1, 64, 128>}, {pipeline_mode = #tpu.pipeline_mode<synchronous>, transform_indices = @transform_1, window_bounds = array<i64: 9, 64, 64>}, {pipeline_mode = #tpu.pipeline_mode<synchronous>, transform_indices = @transform_2, window_bounds = array<i64: 9, 128, 128>}, {pipeline_mode = #tpu.pipeline_mode<synchronous>, transform_indices = @transform_3, window_bounds = array<i64: 1, 128>}, {pipeline_mode = #tpu.pipeline_mode<synchronous>, transform_indices = @transform_4, window_bounds = array<i64: 9, 128, 128>}, {pipeline_mode = #tpu.pipeline_mode<synchronous>, transform_indices = @transform_5, window_bounds = array<i64: 1, 128>}, {pipeline_mode = #tpu.pipeline_mode<synchronous>, transform_indices = @transform_6, window_bounds = array<i64: 128, 128>}, {pipeline_mode = #tpu.pipeline_mode<synchronous>, transform_indices = @transform_7, window_bounds = array<i64: 1, 128>}, {pipeline_mode = #tpu.pipeline_mode<synchronous>, transform_indices = @transform_8, window_bounds = array<i64: 128, 128>}, {pipeline_mode = #tpu.pipeline_mode<synchronous>, transform_indices = @transform_9, window_bounds = array<i64: 1, 128>}, {pipeline_mode = #tpu.pipeline_mode<synchronous>, transform_indices = @transform_10, window_bounds = array<i64: 128, 128>}, {pipeline_mode = #tpu.pipeline_mode<synchronous>, transform_indices = @transform_11, window_bounds = array<i64: 1, 128>}, {transform_indices = @transform_12, window_bounds = array<i64: 1, 64, 128>}]} {
    %c0 = arith.constant 0 : index
    %c0_0 = arith.constant 0 : index
    %c0_1 = arith.constant 0 : index
    %0 = vector.load %arg1[%c0, %c0_0, %c0_1] : memref<1x64x128xf32, #tpu.memory_space<vmem>>, vector<1x64x128xf32>
    %1 = vector.shape_cast %0 : vector<1x64x128xf32> to vector<64x128xf32>
    %cst = arith.constant 0.000000e+00 : f32
    %2 = vector.broadcast %cst : f32 to vector<64x128xf32>
    %c0_2 = arith.constant 0 : index
    %c0_3 = arith.constant 0 : index
    %c0_4 = arith.constant 0 : index
    %3 = vector.load %arg2[%c0_2, %c0_3, %c0_4] : memref<9x64x64xf32, #tpu.memory_space<vmem>>, vector<1x64x64xf32>
    %4 = vector.shape_cast %3 : vector<1x64x64xf32> to vector<64x64xf32>
    %cst_5 = arith.constant dense<0.000000e+00> : vector<64x128xf32>
    %5 = tpu.matmul %4, %1, %cst_5 {dimension_numbers = #tpu.dot_dimension_numbers<[1], [0], [0], [1], [0, 0, 1, 1], [], []>} : vector<64x64xf32>, vector<64x128xf32>, vector<64x128xf32> -> vector<64x128xf32>
    %c0_6 = arith.constant 0 : index
    %c0_7 = arith.constant 0 : index
    %c0_8 = arith.constant 0 : index
    %6 = vector.load %arg3[%c0_6, %c0_7, %c0_8] : memref<9x128x128xf32, #tpu.memory_space<vmem>>, vector<1x128x128xf32>
    %7 = vector.shape_cast %6 : vector<1x128x128xf32> to vector<128x128xf32>
    %cst_9 = arith.constant dense<0.000000e+00> : vector<64x128xf32>
    %8 = tpu.matmul %5, %7, %cst_9 {dimension_numbers = #tpu.dot_dimension_numbers<[1], [0], [0], [1], [0, 0, 1, 1], [], []>} : vector<64x128xf32>, vector<128x128xf32>, vector<64x128xf32> -> vector<64x128xf32>
    %9 = arith.addf %2, %8 : vector<64x128xf32>
    %c1 = arith.constant 1 : index
    %c0_10 = arith.constant 0 : index
    %c0_11 = arith.constant 0 : index
    %10 = vector.load %arg2[%c1, %c0_10, %c0_11] : memref<9x64x64xf32, #tpu.memory_space<vmem>>, vector<1x64x64xf32>
    %11 = vector.shape_cast %10 : vector<1x64x64xf32> to vector<64x64xf32>
    %cst_12 = arith.constant dense<0.000000e+00> : vector<64x128xf32>
    %12 = tpu.matmul %11, %1, %cst_12 {dimension_numbers = #tpu.dot_dimension_numbers<[1], [0], [0], [1], [0, 0, 1, 1], [], []>} : vector<64x64xf32>, vector<64x128xf32>, vector<64x128xf32> -> vector<64x128xf32>
    %c1_13 = arith.constant 1 : index
    %c0_14 = arith.constant 0 : index
    %c0_15 = arith.constant 0 : index
    %13 = vector.load %arg3[%c1_13, %c0_14, %c0_15] : memref<9x128x128xf32, #tpu.memory_space<vmem>>, vector<1x128x128xf32>
    %14 = vector.shape_cast %13 : vector<1x128x128xf32> to vector<128x128xf32>
    %cst_16 = arith.constant dense<0.000000e+00> : vector<64x128xf32>
    %15 = tpu.matmul %12, %14, %cst_16 {dimension_numbers = #tpu.dot_dimension_numbers<[1], [0], [0], [1], [0, 0, 1, 1], [], []>} : vector<64x128xf32>, vector<128x128xf32>, vector<64x128xf32> -> vector<64x128xf32>
    %16 = arith.addf %9, %15 : vector<64x128xf32>
    %c2 = arith.constant 2 : index
    %c0_17 = arith.constant 0 : index
    %c0_18 = arith.constant 0 : index
    %17 = vector.load %arg2[%c2, %c0_17, %c0_18] : memref<9x64x64xf32, #tpu.memory_space<vmem>>, vector<1x64x64xf32>
    %18 = vector.shape_cast %17 : vector<1x64x64xf32> to vector<64x64xf32>
    %cst_19 = arith.constant dense<0.000000e+00> : vector<64x128xf32>
    %19 = tpu.matmul %18, %1, %cst_19 {dimension_numbers = #tpu.dot_dimension_numbers<[1], [0], [0], [1], [0, 0, 1, 1], [], []>} : vector<64x64xf32>, vector<64x128xf32>, vector<64x128xf32> -> vector<64x128xf32>
    %c2_20 = arith.constant 2 : index
    %c0_21 = arith.constant 0 : index
    %c0_22 = arith.constant 0 : index
    %20 = vector.load %arg3[%c2_20, %c0_21, %c0_22] : memref<9x128x128xf32, #tpu.memory_space<vmem>>, vector<1x128x128xf32>
    %21 = vector.shape_cast %20 : vector<1x128x128xf32> to vector<128x128xf32>
    %cst_23 = arith.constant dense<0.000000e+00> : vector<64x128xf32>
    %22 = tpu.matmul %19, %21, %cst_23 {dimension_numbers = #tpu.dot_dimension_numbers<[1], [0], [0], [1], [0, 0, 1, 1], [], []>} : vector<64x128xf32>, vector<128x128xf32>, vector<64x128xf32> -> vector<64x128xf32>
    %23 = arith.addf %16, %22 : vector<64x128xf32>
    %c3 = arith.constant 3 : index
    %c0_24 = arith.constant 0 : index
    %c0_25 = arith.constant 0 : index
    %24 = vector.load %arg2[%c3, %c0_24, %c0_25] : memref<9x64x64xf32, #tpu.memory_space<vmem>>, vector<1x64x64xf32>
    %25 = vector.shape_cast %24 : vector<1x64x64xf32> to vector<64x64xf32>
    %cst_26 = arith.constant dense<0.000000e+00> : vector<64x128xf32>
    %26 = tpu.matmul %25, %1, %cst_26 {dimension_numbers = #tpu.dot_dimension_numbers<[1], [0], [0], [1], [0, 0, 1, 1], [], []>} : vector<64x64xf32>, vector<64x128xf32>, vector<64x128xf32> -> vector<64x128xf32>
    %c3_27 = arith.constant 3 : index
    %c0_28 = arith.constant 0 : index
    %c0_29 = arith.constant 0 : index
    %27 = vector.load %arg3[%c3_27, %c0_28, %c0_29] : memref<9x128x128xf32, #tpu.memory_space<vmem>>, vector<1x128x128xf32>
    %28 = vector.shape_cast %27 : vector<1x128x128xf32> to vector<128x128xf32>
    %cst_30 = arith.constant dense<0.000000e+00> : vector<64x128xf32>
    %29 = tpu.matmul %26, %28, %cst_30 {dimension_numbers = #tpu.dot_dimension_numbers<[1], [0], [0], [1], [0, 0, 1, 1], [], []>} : vector<64x128xf32>, vector<128x128xf32>, vector<64x128xf32> -> vector<64x128xf32>
    %30 = arith.addf %23, %29 : vector<64x128xf32>
    %c4 = arith.constant 4 : index
    %c0_31 = arith.constant 0 : index
    %c0_32 = arith.constant 0 : index
    %31 = vector.load %arg2[%c4, %c0_31, %c0_32] : memref<9x64x64xf32, #tpu.memory_space<vmem>>, vector<1x64x64xf32>
    %32 = vector.shape_cast %31 : vector<1x64x64xf32> to vector<64x64xf32>
    %cst_33 = arith.constant dense<0.000000e+00> : vector<64x128xf32>
    %33 = tpu.matmul %32, %1, %cst_33 {dimension_numbers = #tpu.dot_dimension_numbers<[1], [0], [0], [1], [0, 0, 1, 1], [], []>} : vector<64x64xf32>, vector<64x128xf32>, vector<64x128xf32> -> vector<64x128xf32>
    %c4_34 = arith.constant 4 : index
    %c0_35 = arith.constant 0 : index
    %c0_36 = arith.constant 0 : index
    %34 = vector.load %arg3[%c4_34, %c0_35, %c0_36] : memref<9x128x128xf32, #tpu.memory_space<vmem>>, vector<1x128x128xf32>
    %35 = vector.shape_cast %34 : vector<1x128x128xf32> to vector<128x128xf32>
    %cst_37 = arith.constant dense<0.000000e+00> : vector<64x128xf32>
    %36 = tpu.matmul %33, %35, %cst_37 {dimension_numbers = #tpu.dot_dimension_numbers<[1], [0], [0], [1], [0, 0, 1, 1], [], []>} : vector<64x128xf32>, vector<128x128xf32>, vector<64x128xf32> -> vector<64x128xf32>
    %37 = arith.addf %30, %36 : vector<64x128xf32>
    %c5 = arith.constant 5 : index
    %c0_38 = arith.constant 0 : index
    %c0_39 = arith.constant 0 : index
    %38 = vector.load %arg2[%c5, %c0_38, %c0_39] : memref<9x64x64xf32, #tpu.memory_space<vmem>>, vector<1x64x64xf32>
    %39 = vector.shape_cast %38 : vector<1x64x64xf32> to vector<64x64xf32>
    %cst_40 = arith.constant dense<0.000000e+00> : vector<64x128xf32>
    %40 = tpu.matmul %39, %1, %cst_40 {dimension_numbers = #tpu.dot_dimension_numbers<[1], [0], [0], [1], [0, 0, 1, 1], [], []>} : vector<64x64xf32>, vector<64x128xf32>, vector<64x128xf32> -> vector<64x128xf32>
    %c5_41 = arith.constant 5 : index
    %c0_42 = arith.constant 0 : index
    %c0_43 = arith.constant 0 : index
    %41 = vector.load %arg3[%c5_41, %c0_42, %c0_43] : memref<9x128x128xf32, #tpu.memory_space<vmem>>, vector<1x128x128xf32>
    %42 = vector.shape_cast %41 : vector<1x128x128xf32> to vector<128x128xf32>
    %cst_44 = arith.constant dense<0.000000e+00> : vector<64x128xf32>
    %43 = tpu.matmul %40, %42, %cst_44 {dimension_numbers = #tpu.dot_dimension_numbers<[1], [0], [0], [1], [0, 0, 1, 1], [], []>} : vector<64x128xf32>, vector<128x128xf32>, vector<64x128xf32> -> vector<64x128xf32>
    %44 = arith.addf %37, %43 : vector<64x128xf32>
    %c6 = arith.constant 6 : index
    %c0_45 = arith.constant 0 : index
    %c0_46 = arith.constant 0 : index
    %45 = vector.load %arg2[%c6, %c0_45, %c0_46] : memref<9x64x64xf32, #tpu.memory_space<vmem>>, vector<1x64x64xf32>
    %46 = vector.shape_cast %45 : vector<1x64x64xf32> to vector<64x64xf32>
    %cst_47 = arith.constant dense<0.000000e+00> : vector<64x128xf32>
    %47 = tpu.matmul %46, %1, %cst_47 {dimension_numbers = #tpu.dot_dimension_numbers<[1], [0], [0], [1], [0, 0, 1, 1], [], []>} : vector<64x64xf32>, vector<64x128xf32>, vector<64x128xf32> -> vector<64x128xf32>
    %c6_48 = arith.constant 6 : index
    %c0_49 = arith.constant 0 : index
    %c0_50 = arith.constant 0 : index
    %48 = vector.load %arg3[%c6_48, %c0_49, %c0_50] : memref<9x128x128xf32, #tpu.memory_space<vmem>>, vector<1x128x128xf32>
    %49 = vector.shape_cast %48 : vector<1x128x128xf32> to vector<128x128xf32>
    %cst_51 = arith.constant dense<0.000000e+00> : vector<64x128xf32>
    %50 = tpu.matmul %47, %49, %cst_51 {dimension_numbers = #tpu.dot_dimension_numbers<[1], [0], [0], [1], [0, 0, 1, 1], [], []>} : vector<64x128xf32>, vector<128x128xf32>, vector<64x128xf32> -> vector<64x128xf32>
    %51 = arith.addf %44, %50 : vector<64x128xf32>
    %c7 = arith.constant 7 : index
    %c0_52 = arith.constant 0 : index
    %c0_53 = arith.constant 0 : index
    %52 = vector.load %arg2[%c7, %c0_52, %c0_53] : memref<9x64x64xf32, #tpu.memory_space<vmem>>, vector<1x64x64xf32>
    %53 = vector.shape_cast %52 : vector<1x64x64xf32> to vector<64x64xf32>
    %cst_54 = arith.constant dense<0.000000e+00> : vector<64x128xf32>
    %54 = tpu.matmul %53, %1, %cst_54 {dimension_numbers = #tpu.dot_dimension_numbers<[1], [0], [0], [1], [0, 0, 1, 1], [], []>} : vector<64x64xf32>, vector<64x128xf32>, vector<64x128xf32> -> vector<64x128xf32>
    %c7_55 = arith.constant 7 : index
    %c0_56 = arith.constant 0 : index
    %c0_57 = arith.constant 0 : index
    %55 = vector.load %arg3[%c7_55, %c0_56, %c0_57] : memref<9x128x128xf32, #tpu.memory_space<vmem>>, vector<1x128x128xf32>
    %56 = vector.shape_cast %55 : vector<1x128x128xf32> to vector<128x128xf32>
    %cst_58 = arith.constant dense<0.000000e+00> : vector<64x128xf32>
    %57 = tpu.matmul %54, %56, %cst_58 {dimension_numbers = #tpu.dot_dimension_numbers<[1], [0], [0], [1], [0, 0, 1, 1], [], []>} : vector<64x128xf32>, vector<128x128xf32>, vector<64x128xf32> -> vector<64x128xf32>
    %58 = arith.addf %51, %57 : vector<64x128xf32>
    %c8 = arith.constant 8 : index
    %c0_59 = arith.constant 0 : index
    %c0_60 = arith.constant 0 : index
    %59 = vector.load %arg2[%c8, %c0_59, %c0_60] : memref<9x64x64xf32, #tpu.memory_space<vmem>>, vector<1x64x64xf32>
    %60 = vector.shape_cast %59 : vector<1x64x64xf32> to vector<64x64xf32>
    %cst_61 = arith.constant dense<0.000000e+00> : vector<64x128xf32>
    %61 = tpu.matmul %60, %1, %cst_61 {dimension_numbers = #tpu.dot_dimension_numbers<[1], [0], [0], [1], [0, 0, 1, 1], [], []>} : vector<64x64xf32>, vector<64x128xf32>, vector<64x128xf32> -> vector<64x128xf32>
    %c8_62 = arith.constant 8 : index
    %c0_63 = arith.constant 0 : index
    %c0_64 = arith.constant 0 : index
    %62 = vector.load %arg3[%c8_62, %c0_63, %c0_64] : memref<9x128x128xf32, #tpu.memory_space<vmem>>, vector<1x128x128xf32>
    %63 = vector.shape_cast %62 : vector<1x128x128xf32> to vector<128x128xf32>
    %cst_65 = arith.constant dense<0.000000e+00> : vector<64x128xf32>
    %64 = tpu.matmul %61, %63, %cst_65 {dimension_numbers = #tpu.dot_dimension_numbers<[1], [0], [0], [1], [0, 0, 1, 1], [], []>} : vector<64x128xf32>, vector<128x128xf32>, vector<64x128xf32> -> vector<64x128xf32>
    %65 = arith.addf %58, %64 : vector<64x128xf32>
    %c0_66 = arith.constant 0 : index
    %c0_67 = arith.constant 0 : index
    %66 = vector.load %arg4[%c0_66, %c0_67] : memref<1x128xf32, #tpu.memory_space<vmem>>, vector<1x128xf32>
    %67 = vector.broadcast %66 : vector<1x128xf32> to vector<64x128xf32>
    %68 = arith.addf %65, %67 : vector<64x128xf32>
    %cst_68 = arith.constant 0.000000e+00 : f32
    %69 = vector.broadcast %cst_68 : f32 to vector<64x128xf32>
    %70 = arith.maximumf %68, %69 : vector<64x128xf32>
    %cst_69 = arith.constant 0.000000e+00 : f32
    %71 = vector.broadcast %cst_69 : f32 to vector<64x128xf32>
    %c0_70 = arith.constant 0 : index
    %c0_71 = arith.constant 0 : index
    %c0_72 = arith.constant 0 : index
    %72 = vector.load %arg2[%c0_70, %c0_71, %c0_72] : memref<9x64x64xf32, #tpu.memory_space<vmem>>, vector<1x64x64xf32>
    %73 = vector.shape_cast %72 : vector<1x64x64xf32> to vector<64x64xf32>
    %cst_73 = arith.constant dense<0.000000e+00> : vector<64x128xf32>
    %74 = tpu.matmul %73, %70, %cst_73 {dimension_numbers = #tpu.dot_dimension_numbers<[1], [0], [0], [1], [0, 0, 1, 1], [], []>} : vector<64x64xf32>, vector<64x128xf32>, vector<64x128xf32> -> vector<64x128xf32>
    %c0_74 = arith.constant 0 : index
    %c0_75 = arith.constant 0 : index
    %c0_76 = arith.constant 0 : index
    %75 = vector.load %arg5[%c0_74, %c0_75, %c0_76] : memref<9x128x128xf32, #tpu.memory_space<vmem>>, vector<1x128x128xf32>
    %76 = vector.shape_cast %75 : vector<1x128x128xf32> to vector<128x128xf32>
    %cst_77 = arith.constant dense<0.000000e+00> : vector<64x128xf32>
    %77 = tpu.matmul %74, %76, %cst_77 {dimension_numbers = #tpu.dot_dimension_numbers<[1], [0], [0], [1], [0, 0, 1, 1], [], []>} : vector<64x128xf32>, vector<128x128xf32>, vector<64x128xf32> -> vector<64x128xf32>
    %78 = arith.addf %71, %77 : vector<64x128xf32>
    %c1_78 = arith.constant 1 : index
    %c0_79 = arith.constant 0 : index
    %c0_80 = arith.constant 0 : index
    %79 = vector.load %arg2[%c1_78, %c0_79, %c0_80] : memref<9x64x64xf32, #tpu.memory_space<vmem>>, vector<1x64x64xf32>
    %80 = vector.shape_cast %79 : vector<1x64x64xf32> to vector<64x64xf32>
    %cst_81 = arith.constant dense<0.000000e+00> : vector<64x128xf32>
    %81 = tpu.matmul %80, %70, %cst_81 {dimension_numbers = #tpu.dot_dimension_numbers<[1], [0], [0], [1], [0, 0, 1, 1], [], []>} : vector<64x64xf32>, vector<64x128xf32>, vector<64x128xf32> -> vector<64x128xf32>
    %c1_82 = arith.constant 1 : index
    %c0_83 = arith.constant 0 : index
    %c0_84 = arith.constant 0 : index
    %82 = vector.load %arg5[%c1_82, %c0_83, %c0_84] : memref<9x128x128xf32, #tpu.memory_space<vmem>>, vector<1x128x128xf32>
    %83 = vector.shape_cast %82 : vector<1x128x128xf32> to vector<128x128xf32>
    %cst_85 = arith.constant dense<0.000000e+00> : vector<64x128xf32>
    %84 = tpu.matmul %81, %83, %cst_85 {dimension_numbers = #tpu.dot_dimension_numbers<[1], [0], [0], [1], [0, 0, 1, 1], [], []>} : vector<64x128xf32>, vector<128x128xf32>, vector<64x128xf32> -> vector<64x128xf32>
    %85 = arith.addf %78, %84 : vector<64x128xf32>
    %c2_86 = arith.constant 2 : index
    %c0_87 = arith.constant 0 : index
    %c0_88 = arith.constant 0 : index
    %86 = vector.load %arg2[%c2_86, %c0_87, %c0_88] : memref<9x64x64xf32, #tpu.memory_space<vmem>>, vector<1x64x64xf32>
    %87 = vector.shape_cast %86 : vector<1x64x64xf32> to vector<64x64xf32>
    %cst_89 = arith.constant dense<0.000000e+00> : vector<64x128xf32>
    %88 = tpu.matmul %87, %70, %cst_89 {dimension_numbers = #tpu.dot_dimension_numbers<[1], [0], [0], [1], [0, 0, 1, 1], [], []>} : vector<64x64xf32>, vector<64x128xf32>, vector<64x128xf32> -> vector<64x128xf32>
    %c2_90 = arith.constant 2 : index
    %c0_91 = arith.constant 0 : index
    %c0_92 = arith.constant 0 : index
    %89 = vector.load %arg5[%c2_90, %c0_91, %c0_92] : memref<9x128x128xf32, #tpu.memory_space<vmem>>, vector<1x128x128xf32>
    %90 = vector.shape_cast %89 : vector<1x128x128xf32> to vector<128x128xf32>
    %cst_93 = arith.constant dense<0.000000e+00> : vector<64x128xf32>
    %91 = tpu.matmul %88, %90, %cst_93 {dimension_numbers = #tpu.dot_dimension_numbers<[1], [0], [0], [1], [0, 0, 1, 1], [], []>} : vector<64x128xf32>, vector<128x128xf32>, vector<64x128xf32> -> vector<64x128xf32>
    %92 = arith.addf %85, %91 : vector<64x128xf32>
    %c3_94 = arith.constant 3 : index
    %c0_95 = arith.constant 0 : index
    %c0_96 = arith.constant 0 : index
    %93 = vector.load %arg2[%c3_94, %c0_95, %c0_96] : memref<9x64x64xf32, #tpu.memory_space<vmem>>, vector<1x64x64xf32>
    %94 = vector.shape_cast %93 : vector<1x64x64xf32> to vector<64x64xf32>
    %cst_97 = arith.constant dense<0.000000e+00> : vector<64x128xf32>
    %95 = tpu.matmul %94, %70, %cst_97 {dimension_numbers = #tpu.dot_dimension_numbers<[1], [0], [0], [1], [0, 0, 1, 1], [], []>} : vector<64x64xf32>, vector<64x128xf32>, vector<64x128xf32> -> vector<64x128xf32>
    %c3_98 = arith.constant 3 : index
    %c0_99 = arith.constant 0 : index
    %c0_100 = arith.constant 0 : index
    %96 = vector.load %arg5[%c3_98, %c0_99, %c0_100] : memref<9x128x128xf32, #tpu.memory_space<vmem>>, vector<1x128x128xf32>
    %97 = vector.shape_cast %96 : vector<1x128x128xf32> to vector<128x128xf32>
    %cst_101 = arith.constant dense<0.000000e+00> : vector<64x128xf32>
    %98 = tpu.matmul %95, %97, %cst_101 {dimension_numbers = #tpu.dot_dimension_numbers<[1], [0], [0], [1], [0, 0, 1, 1], [], []>} : vector<64x128xf32>, vector<128x128xf32>, vector<64x128xf32> -> vector<64x128xf32>
    %99 = arith.addf %92, %98 : vector<64x128xf32>
    %c4_102 = arith.constant 4 : index
    %c0_103 = arith.constant 0 : index
    %c0_104 = arith.constant 0 : index
    %100 = vector.load %arg2[%c4_102, %c0_103, %c0_104] : memref<9x64x64xf32, #tpu.memory_space<vmem>>, vector<1x64x64xf32>
    %101 = vector.shape_cast %100 : vector<1x64x64xf32> to vector<64x64xf32>
    %cst_105 = arith.constant dense<0.000000e+00> : vector<64x128xf32>
    %102 = tpu.matmul %101, %70, %cst_105 {dimension_numbers = #tpu.dot_dimension_numbers<[1], [0], [0], [1], [0, 0, 1, 1], [], []>} : vector<64x64xf32>, vector<64x128xf32>, vector<64x128xf32> -> vector<64x128xf32>
    %c4_106 = arith.constant 4 : index
    %c0_107 = arith.constant 0 : index
    %c0_108 = arith.constant 0 : index
    %103 = vector.load %arg5[%c4_106, %c0_107, %c0_108] : memref<9x128x128xf32, #tpu.memory_space<vmem>>, vector<1x128x128xf32>
    %104 = vector.shape_cast %103 : vector<1x128x128xf32> to vector<128x128xf32>
    %cst_109 = arith.constant dense<0.000000e+00> : vector<64x128xf32>
    %105 = tpu.matmul %102, %104, %cst_109 {dimension_numbers = #tpu.dot_dimension_numbers<[1], [0], [0], [1], [0, 0, 1, 1], [], []>} : vector<64x128xf32>, vector<128x128xf32>, vector<64x128xf32> -> vector<64x128xf32>
    %106 = arith.addf %99, %105 : vector<64x128xf32>
    %c5_110 = arith.constant 5 : index
    %c0_111 = arith.constant 0 : index
    %c0_112 = arith.constant 0 : index
    %107 = vector.load %arg2[%c5_110, %c0_111, %c0_112] : memref<9x64x64xf32, #tpu.memory_space<vmem>>, vector<1x64x64xf32>
    %108 = vector.shape_cast %107 : vector<1x64x64xf32> to vector<64x64xf32>
    %cst_113 = arith.constant dense<0.000000e+00> : vector<64x128xf32>
    %109 = tpu.matmul %108, %70, %cst_113 {dimension_numbers = #tpu.dot_dimension_numbers<[1], [0], [0], [1], [0, 0, 1, 1], [], []>} : vector<64x64xf32>, vector<64x128xf32>, vector<64x128xf32> -> vector<64x128xf32>
    %c5_114 = arith.constant 5 : index
    %c0_115 = arith.constant 0 : index
    %c0_116 = arith.constant 0 : index
    %110 = vector.load %arg5[%c5_114, %c0_115, %c0_116] : memref<9x128x128xf32, #tpu.memory_space<vmem>>, vector<1x128x128xf32>
    %111 = vector.shape_cast %110 : vector<1x128x128xf32> to vector<128x128xf32>
    %cst_117 = arith.constant dense<0.000000e+00> : vector<64x128xf32>
    %112 = tpu.matmul %109, %111, %cst_117 {dimension_numbers = #tpu.dot_dimension_numbers<[1], [0], [0], [1], [0, 0, 1, 1], [], []>} : vector<64x128xf32>, vector<128x128xf32>, vector<64x128xf32> -> vector<64x128xf32>
    %113 = arith.addf %106, %112 : vector<64x128xf32>
    %c6_118 = arith.constant 6 : index
    %c0_119 = arith.constant 0 : index
    %c0_120 = arith.constant 0 : index
    %114 = vector.load %arg2[%c6_118, %c0_119, %c0_120] : memref<9x64x64xf32, #tpu.memory_space<vmem>>, vector<1x64x64xf32>
    %115 = vector.shape_cast %114 : vector<1x64x64xf32> to vector<64x64xf32>
    %cst_121 = arith.constant dense<0.000000e+00> : vector<64x128xf32>
    %116 = tpu.matmul %115, %70, %cst_121 {dimension_numbers = #tpu.dot_dimension_numbers<[1], [0], [0], [1], [0, 0, 1, 1], [], []>} : vector<64x64xf32>, vector<64x128xf32>, vector<64x128xf32> -> vector<64x128xf32>
    %c6_122 = arith.constant 6 : index
    %c0_123 = arith.constant 0 : index
    %c0_124 = arith.constant 0 : index
    %117 = vector.load %arg5[%c6_122, %c0_123, %c0_124] : memref<9x128x128xf32, #tpu.memory_space<vmem>>, vector<1x128x128xf32>
    %118 = vector.shape_cast %117 : vector<1x128x128xf32> to vector<128x128xf32>
    %cst_125 = arith.constant dense<0.000000e+00> : vector<64x128xf32>
    %119 = tpu.matmul %116, %118, %cst_125 {dimension_numbers = #tpu.dot_dimension_numbers<[1], [0], [0], [1], [0, 0, 1, 1], [], []>} : vector<64x128xf32>, vector<128x128xf32>, vector<64x128xf32> -> vector<64x128xf32>
    %120 = arith.addf %113, %119 : vector<64x128xf32>
    %c7_126 = arith.constant 7 : index
    %c0_127 = arith.constant 0 : index
    %c0_128 = arith.constant 0 : index
    %121 = vector.load %arg2[%c7_126, %c0_127, %c0_128] : memref<9x64x64xf32, #tpu.memory_space<vmem>>, vector<1x64x64xf32>
    %122 = vector.shape_cast %121 : vector<1x64x64xf32> to vector<64x64xf32>
    %cst_129 = arith.constant dense<0.000000e+00> : vector<64x128xf32>
    %123 = tpu.matmul %122, %70, %cst_129 {dimension_numbers = #tpu.dot_dimension_numbers<[1], [0], [0], [1], [0, 0, 1, 1], [], []>} : vector<64x64xf32>, vector<64x128xf32>, vector<64x128xf32> -> vector<64x128xf32>
    %c7_130 = arith.constant 7 : index
    %c0_131 = arith.constant 0 : index
    %c0_132 = arith.constant 0 : index
    %124 = vector.load %arg5[%c7_130, %c0_131, %c0_132] : memref<9x128x128xf32, #tpu.memory_space<vmem>>, vector<1x128x128xf32>
    %125 = vector.shape_cast %124 : vector<1x128x128xf32> to vector<128x128xf32>
    %cst_133 = arith.constant dense<0.000000e+00> : vector<64x128xf32>
    %126 = tpu.matmul %123, %125, %cst_133 {dimension_numbers = #tpu.dot_dimension_numbers<[1], [0], [0], [1], [0, 0, 1, 1], [], []>} : vector<64x128xf32>, vector<128x128xf32>, vector<64x128xf32> -> vector<64x128xf32>
    %127 = arith.addf %120, %126 : vector<64x128xf32>
    %c8_134 = arith.constant 8 : index
    %c0_135 = arith.constant 0 : index
    %c0_136 = arith.constant 0 : index
    %128 = vector.load %arg2[%c8_134, %c0_135, %c0_136] : memref<9x64x64xf32, #tpu.memory_space<vmem>>, vector<1x64x64xf32>
    %129 = vector.shape_cast %128 : vector<1x64x64xf32> to vector<64x64xf32>
    %cst_137 = arith.constant dense<0.000000e+00> : vector<64x128xf32>
    %130 = tpu.matmul %129, %70, %cst_137 {dimension_numbers = #tpu.dot_dimension_numbers<[1], [0], [0], [1], [0, 0, 1, 1], [], []>} : vector<64x64xf32>, vector<64x128xf32>, vector<64x128xf32> -> vector<64x128xf32>
    %c8_138 = arith.constant 8 : index
    %c0_139 = arith.constant 0 : index
    %c0_140 = arith.constant 0 : index
    %131 = vector.load %arg5[%c8_138, %c0_139, %c0_140] : memref<9x128x128xf32, #tpu.memory_space<vmem>>, vector<1x128x128xf32>
    %132 = vector.shape_cast %131 : vector<1x128x128xf32> to vector<128x128xf32>
    %cst_141 = arith.constant dense<0.000000e+00> : vector<64x128xf32>
    %133 = tpu.matmul %130, %132, %cst_141 {dimension_numbers = #tpu.dot_dimension_numbers<[1], [0], [0], [1], [0, 0, 1, 1], [], []>} : vector<64x128xf32>, vector<128x128xf32>, vector<64x128xf32> -> vector<64x128xf32>
    %134 = arith.addf %127, %133 : vector<64x128xf32>
    %c0_142 = arith.constant 0 : index
    %c0_143 = arith.constant 0 : index
    %135 = vector.load %arg6[%c0_142, %c0_143] : memref<1x128xf32, #tpu.memory_space<vmem>>, vector<1x128xf32>
    %136 = vector.broadcast %135 : vector<1x128xf32> to vector<64x128xf32>
    %137 = arith.addf %134, %136 : vector<64x128xf32>
    %cst_144 = arith.constant dense<0.000000e+00> : vector<128xf32>
    %138 = vector.multi_reduction <add>, %137, %cst_144 [0] : vector<64x128xf32> to vector<128xf32>
    %139 = vector.shape_cast %138 : vector<128xf32> to vector<1x128xf32>
    %cst_145 = arith.constant 6.400000e+01 : f32
    %140 = vector.broadcast %cst_145 : f32 to vector<1x128xf32>
    %141 = arith.divf %139, %140 : vector<1x128xf32>
    %cst_146 = arith.constant 5.000000e-01 : f32
    %142 = vector.broadcast %cst_146 : f32 to vector<1x128xf32>
    %143 = arith.mulf %142, %141 : vector<1x128xf32>
    %cst_147 = arith.constant dense<0xFF800000> : vector<128xf32>
    %144 = vector.multi_reduction <maximumf>, %137, %cst_147 [0] : vector<64x128xf32> to vector<128xf32>
    %145 = vector.shape_cast %144 : vector<128xf32> to vector<1x128xf32>
    %cst_148 = arith.constant 5.000000e-01 : f32
    %146 = vector.broadcast %cst_148 : f32 to vector<1x128xf32>
    %147 = arith.mulf %146, %145 : vector<1x128xf32>
    %148 = arith.addf %143, %147 : vector<1x128xf32>
    %c0_149 = arith.constant 0 : index
    %c0_150 = arith.constant 0 : index
    %149 = vector.load %arg7[%c0_149, %c0_150] : memref<128x128xf32, #tpu.memory_space<vmem>>, vector<128x128xf32>
    %cst_151 = arith.constant dense<0.000000e+00> : vector<1x128xf32>
    %150 = tpu.matmul %148, %149, %cst_151 {dimension_numbers = #tpu.dot_dimension_numbers<[1], [0], [0], [1], [0, 0, 1, 1], [], []>} : vector<1x128xf32>, vector<128x128xf32>, vector<1x128xf32> -> vector<1x128xf32>
    %c0_152 = arith.constant 0 : index
    %c0_153 = arith.constant 0 : index
    %151 = vector.load %arg8[%c0_152, %c0_153] : memref<1x128xf32, #tpu.memory_space<vmem>>, vector<1x128xf32>
    %152 = arith.addf %150, %151 : vector<1x128xf32>
    %cst_154 = arith.constant 0.000000e+00 : f32
    %153 = vector.broadcast %cst_154 : f32 to vector<1x128xf32>
    %154 = arith.maximumf %152, %153 : vector<1x128xf32>
    %c0_155 = arith.constant 0 : index
    %c0_156 = arith.constant 0 : index
    %155 = vector.load %arg9[%c0_155, %c0_156] : memref<128x128xf32, #tpu.memory_space<vmem>>, vector<128x128xf32>
    %cst_157 = arith.constant dense<0.000000e+00> : vector<1x128xf32>
    %156 = tpu.matmul %154, %155, %cst_157 {dimension_numbers = #tpu.dot_dimension_numbers<[1], [0], [0], [1], [0, 0, 1, 1], [], []>} : vector<1x128xf32>, vector<128x128xf32>, vector<1x128xf32> -> vector<1x128xf32>
    %c0_158 = arith.constant 0 : index
    %c0_159 = arith.constant 0 : index
    %157 = vector.load %arg10[%c0_158, %c0_159] : memref<1x128xf32, #tpu.memory_space<vmem>>, vector<1x128xf32>
    %158 = arith.addf %156, %157 : vector<1x128xf32>
    %cst_160 = arith.constant 0.000000e+00 : f32
    %159 = vector.broadcast %cst_160 : f32 to vector<1x128xf32>
    %160 = arith.subf %159, %158 : vector<1x128xf32>
    %161 = math.exp %160 : vector<1x128xf32>
    %cst_161 = arith.constant 1.000000e+00 : f32
    %162 = vector.broadcast %cst_161 : f32 to vector<1x128xf32>
    %163 = arith.addf %162, %161 : vector<1x128xf32>
    %cst_162 = arith.constant 1.000000e+00 : f32
    %164 = vector.broadcast %cst_162 : f32 to vector<1x128xf32>
    %165 = arith.divf %164, %163 : vector<1x128xf32>
    %166 = vector.broadcast %165 : vector<1x128xf32> to vector<64x128xf32>
    %167 = arith.mulf %137, %166 : vector<64x128xf32>
    %168 = arith.addf %167, %1 : vector<64x128xf32>
    %cst_163 = arith.constant 0.000000e+00 : f32
    %169 = vector.broadcast %cst_163 : f32 to vector<64x128xf32>
    %170 = arith.maximumf %168, %169 : vector<64x128xf32>
    %c0_164 = arith.constant 0 : index
    %c0_165 = arith.constant 0 : index
    %171 = vector.load %arg11[%c0_164, %c0_165] : memref<128x128xf32, #tpu.memory_space<vmem>>, vector<128x128xf32>
    %cst_166 = arith.constant dense<0.000000e+00> : vector<64x128xf32>
    %172 = tpu.matmul %170, %171, %cst_166 {dimension_numbers = #tpu.dot_dimension_numbers<[1], [0], [0], [1], [0, 0, 1, 1], [], []>} : vector<64x128xf32>, vector<128x128xf32>, vector<64x128xf32> -> vector<64x128xf32>
    %c0_167 = arith.constant 0 : index
    %c0_168 = arith.constant 0 : index
    %173 = vector.load %arg12[%c0_167, %c0_168] : memref<1x128xf32, #tpu.memory_space<vmem>>, vector<1x128xf32>
    %174 = vector.broadcast %173 : vector<1x128xf32> to vector<64x128xf32>
    %175 = arith.addf %172, %174 : vector<64x128xf32>
    %cst_169 = arith.constant 0.000000e+00 : f32
    %176 = vector.broadcast %cst_169 : f32 to vector<64x128xf32>
    %177 = arith.maximumf %175, %176 : vector<64x128xf32>
    %c0_170 = arith.constant 0 : index
    %c0_171 = arith.constant 0 : index
    %c0_172 = arith.constant 0 : index
    %178 = vector.load %arg13[%c0_170, %c0_171, %c0_172] : memref<1x64x128xf32, #tpu.memory_space<vmem>>, vector<1x64x128xf32>
    %179 = vector.shape_cast %178 : vector<1x64x128xf32> to vector<64x128xf32>
    %180 = vector.shape_cast %177 : vector<64x128xf32> to vector<1x64x128xf32>
    tpu.vector_store %arg13[%c0_170, %c0_171, %c0_172], %180 {strides = array<i32>} : memref<1x64x128xf32, #tpu.memory_space<vmem>>, vector<1x64x128xf32>,
    return
  }
  func.func @transform_0(%arg0: i32) -> (i32, i32, i32) {
    %c0_i32 = arith.constant 0 : i32
    %c0_i32_0 = arith.constant 0 : i32
    %c0_i32_1 = arith.constant 0 : i32
    return %arg0, %c0_i32, %c0_i32_0 : i32, i32, i32
  }
  func.func @transform_1(%arg0: i32) -> (i32, i32, i32) {
    %c0_i32 = arith.constant 0 : i32
    %c0_i32_0 = arith.constant 0 : i32
    %c0_i32_1 = arith.constant 0 : i32
    %c0_i32_2 = arith.constant 0 : i32
    return %c0_i32, %c0_i32_0, %c0_i32_1 : i32, i32, i32
  }
  func.func @transform_2(%arg0: i32) -> (i32, i32, i32) {
    %c0_i32 = arith.constant 0 : i32
    %c0_i32_0 = arith.constant 0 : i32
    %c0_i32_1 = arith.constant 0 : i32
    %c0_i32_2 = arith.constant 0 : i32
    return %c0_i32, %c0_i32_0, %c0_i32_1 : i32, i32, i32
  }
  func.func @transform_3(%arg0: i32) -> (i32, i32) {
    %c0_i32 = arith.constant 0 : i32
    %c0_i32_0 = arith.constant 0 : i32
    %c0_i32_1 = arith.constant 0 : i32
    return %c0_i32, %c0_i32_0 : i32, i32
  }
  func.func @transform_4(%arg0: i32) -> (i32, i32, i32) {
    %c0_i32 = arith.constant 0 : i32
    %c0_i32_0 = arith.constant 0 : i32
    %c0_i32_1 = arith.constant 0 : i32
    %c0_i32_2 = arith.constant 0 : i32
    return %c0_i32, %c0_i32_0, %c0_i32_1 : i32, i32, i32
  }
  func.func @transform_5(%arg0: i32) -> (i32, i32) {
    %c0_i32 = arith.constant 0 : i32
    %c0_i32_0 = arith.constant 0 : i32
    %c0_i32_1 = arith.constant 0 : i32
    return %c0_i32, %c0_i32_0 : i32, i32
  }
  func.func @transform_6(%arg0: i32) -> (i32, i32) {
    %c0_i32 = arith.constant 0 : i32
    %c0_i32_0 = arith.constant 0 : i32
    %c0_i32_1 = arith.constant 0 : i32
    return %c0_i32, %c0_i32_0 : i32, i32
  }
  func.func @transform_7(%arg0: i32) -> (i32, i32) {
    %c0_i32 = arith.constant 0 : i32
    %c0_i32_0 = arith.constant 0 : i32
    %c0_i32_1 = arith.constant 0 : i32
    return %c0_i32, %c0_i32_0 : i32, i32
  }
  func.func @transform_8(%arg0: i32) -> (i32, i32) {
    %c0_i32 = arith.constant 0 : i32
    %c0_i32_0 = arith.constant 0 : i32
    %c0_i32_1 = arith.constant 0 : i32
    return %c0_i32, %c0_i32_0 : i32, i32
  }
  func.func @transform_9(%arg0: i32) -> (i32, i32) {
    %c0_i32 = arith.constant 0 : i32
    %c0_i32_0 = arith.constant 0 : i32
    %c0_i32_1 = arith.constant 0 : i32
    return %c0_i32, %c0_i32_0 : i32, i32
  }
  func.func @transform_10(%arg0: i32) -> (i32, i32) {
    %c0_i32 = arith.constant 0 : i32
    %c0_i32_0 = arith.constant 0 : i32
    %c0_i32_1 = arith.constant 0 : i32
    return %c0_i32, %c0_i32_0 : i32, i32
  }
  func.func @transform_11(%arg0: i32) -> (i32, i32) {
    %c0_i32 = arith.constant 0 : i32
    %c0_i32_0 = arith.constant 0 : i32
    %c0_i32_1 = arith.constant 0 : i32
    return %c0_i32, %c0_i32_0 : i32, i32
  }
  func.func @transform_12(%arg0: i32) -> (i32, i32, i32) {
    %c0_i32 = arith.constant 0 : i32
    %c0_i32_0 = arith.constant 0 : i32
    %c0_i32_1 = arith.constant 0 : i32
    return %arg0, %c0_i32, %c0_i32_0 : i32, i32, i32
  }
}

</mosaic_0001>

<llo_original>
// kernel: tpu_custom_call.1
$region0: #{tpu_custom_call.1}
  #allocation0 [shape = 'u32[]', space=smem, size = 0x4, offset = 0x4, fixed_abs, tag = 'smem constant byte address 0x4 - core index']
  #allocation1 [shape = 'u32[144,128]{1,0:T(1,128)}', space=vmem, size = 0x12000, scoped, tag = 'internal scratch']
  %s0 = inlined_call_operand.hbm [shape: f32[2,64,128], index: 0, kind: input, shape index: {}]
  %s1 = inlined_call_operand.hbm [shape: f32[9,64,64], index: 1, kind: input, shape index: {}]
  %s2 = inlined_call_operand.hbm [shape: f32[9,128,128], index: 2, kind: input, shape index: {}]
  %s3 = inlined_call_operand.vmem [shape: f32[1,128], index: 3, kind: input, shape index: {}]
  %s4 = inlined_call_operand.hbm [shape: f32[9,128,128], index: 4, kind: input, shape index: {}]
  %s5 = inlined_call_operand.vmem [shape: f32[1,128], index: 5, kind: input, shape index: {}]
  %s6 = inlined_call_operand.hbm [shape: f32[128,128], index: 6, kind: input, shape index: {}]
  %s7 = inlined_call_operand.vmem [shape: f32[1,128], index: 7, kind: input, shape index: {}]
  %s8 = inlined_call_operand.hbm [shape: f32[128,128], index: 8, kind: input, shape index: {}]
  %s9 = inlined_call_operand.vmem [shape: f32[1,128], index: 9, kind: input, shape index: {}]
  %s10 = inlined_call_operand.hbm [shape: f32[128,128], index: 10, kind: input, shape index: {}]
  %s11 = inlined_call_operand.vmem [shape: f32[1,128], index: 11, kind: input, shape index: {}]
  %s12 = inlined_call_operand.hbm [shape: f32[2,64,128], index: 12, kind: output, shape index: {}]
  %s13 = sld [smem:[#allocation0]]
  $region109: #{tpu_custom_call.1} parent=0
    _
  %s15 = ssub.s32 1, %s13
  %s16 = scalar_select 0, %s15, %s13
  $region1: #{tpu_custom_call.1} parent=0
    #allocation2 [shape = 'u8[65536]{0}', space=vmem, size = 0x10000, scoped, tag = 'input window, operand 0']
    #allocation3 [shape = 's32[2]{0}', space=sflag, size = 0x8, scoped, tag = 'scoped memory for tpu_custom_call.1']
    #allocation4 [shape = 's32[2]{0}', space=sflag, size = 0x8, scoped, tag = 'scoped memory for tpu_custom_call.1']
    #allocation5 [shape = 'u8[294912]{0}', space=vmem, size = 0x48000, scoped, tag = 'input window, operand 1, single buffered']
    #allocation6 [shape = 's32[1]{0}', space=sflag, size = 0x4, scoped, tag = 'scoped memory for tpu_custom_call.1']
    #allocation7 [shape = 'u8[589824]{0}', space=vmem, size = 0x90000, scoped, tag = 'input window, operand 2, single buffered']
    #allocation8 [shape = 'u8[589824]{0}', space=vmem, size = 0x90000, scoped, tag = 'input window, operand 4, single buffered']
    #allocation9 [shape = 's32[1]{0}', space=sflag, size = 0x4, scoped, tag = 'scoped memory for tpu_custom_call.1']
    #allocation10 [shape = 'u8[65536]{0}', space=vmem, size = 0x10000, scoped, tag = 'input window, operand 6, single buffered']
    #allocation11 [shape = 'u8[65536]{0}', space=vmem, size = 0x10000, scoped, tag = 'input window, operand 8, single buffered']
    #allocation12 [shape = 's32[1]{0}', space=sflag, size = 0x4, scoped, tag = 'scoped memory for tpu_custom_call.1']
    #allocation13 [shape = 'u8[65536]{0}', space=vmem, size = 0x10000, scoped, tag = 'input window, operand 10, single buffered']
    #allocation14 [shape = 'u8[65536]{0}', space=vmem, size = 0x10000, scoped, tag = 'output window, operand 0']
    %17 = vsyncpa [#allocation3], 0
    %s18 = scalar_lea.sflag [#allocation3], 1
    %19 = vsyncpa %s18, 0
    %20 = vsyncpa [#allocation6], 0
    %21 = vsyncpa [#allocation9], 0
    %22 = vsyncpa [#allocation12], 0
    %23 = vsyncpa [#allocation4], 0
    %s24 = scalar_lea.sflag [#allocation4], 1
    %25 = vsyncpa %s24, 0
    loop: start=0, step=1, limit=4
    $region2: #{tpu_custom_call.1} parent=1 // loop_pre_header
      _
    $region3: #{tpu_custom_call.1} parent=1 // loop_header
      %s27 = sphi 0, %s31
      %p28 = scmp.ge.s32.totalorder %s27, 4
      %s37 = sphi 0, %s39
      %s40 = sphi 0, %s37
      %s41 = sphi 0, %s40
      %s57 = sphi 0, %s41
      %s61 = sphi 0, %s61
      %s63 = sphi 0, %s61
      %s64 = sphi 0, %s63
      %s78 = sphi 0, %s64
      %s82 = sphi 0, %s82
      %s84 = sphi 0, %s82
      %s85 = sphi 0, %s84
      %s99 = sphi 0, %s85
      %s103 = sphi 0, %s103
      %s105 = sphi 0, %s103
      %s106 = sphi 0, %s105
      %s120 = sphi 0, %s106
      %s124 = sphi 0, %s124
      %s126 = sphi 0, %s124
      %s127 = sphi 0, %s126
      %s141 = sphi 0, %s127
      %s145 = sphi 0, %s145
      %s147 = sphi 0, %s145
      %s148 = sphi 0, %s147
      %s162 = sphi 0, %s148
      %s166 = sphi 0, %s166
      %s168 = sphi 0, %s166
      %s169 = sphi 0, %s168
      %s183 = sphi 0, %s169
      %s187 = sphi 0, %s187
      %s189 = sphi 0, %s187
      %s190 = sphi 0, %s189
      %s204 = sphi 0, %s190
      %s208 = sphi 0, %s208
      %s210 = sphi 0, %s208
      %s211 = sphi 0, %s210
      %s225 = sphi 0, %s211
      %s229 = sphi 0, %s229
      %s231 = sphi 0, %s229
      %s232 = sphi 0, %s231
      %s246 = sphi 0, %s232
      %s250 = sphi 0, %s250
      %s252 = sphi 0, %s250
      %s253 = sphi 0, %s252
      %s267 = sphi 0, %s253
      %s271 = sphi 0, %s271
      %s273 = sphi 0, %s271
      %s274 = sphi 0, %s273
      %s288 = sphi 0, %s274
      %s294 = sphi 0, %s296
      %s297 = sphi 0, %s294
      %s298 = sphi 0, %s297
      %s314 = sphi 0, %s298
    $region4: #{tpu_custom_call.1} parent=1 // loop_header_branch
      %30 = sbr.rel (%p28) target = $region8
    $region5: #{tpu_custom_call.1} parent=1 // loop_body
      %s32 = ssub.s32 %s27, 1
      %s33 = ssub.s32 %s27, 2
      %s34 = sadd.s32 %s27, 1
      %s35 = ssub.s32 %s27, %s34
      %p36 = scmp.eq.s32.totalorder %s35, 0
      %s38 = sadd.s32 %s37, 1
      %s39 = scalar_select %p36, %s37, %s38
      %p42 = pneg %p36
      %p43 = scmp.eq.s32.totalorder %s27, 1
      %p44 = por %p42, %p43
      %p45 = scmp.ne.s32.totalorder %s37, %s40
      %p46 = scmp.eq.s32.totalorder %s27, 0
      %p47 = por %p45, %p46
      %p48 = scmp.ne.s32.totalorder %s37, %s40
      %p49 = scmp.eq.s32.totalorder %s32, 1
      %p50 = por %p48, %p49
      %p51 = scmp.ne.s32.totalorder %s40, %s41
      %p52 = scmp.eq.s32.totalorder %s32, 0
      %p53 = por %p51, %p52
      %p54 = scmp.ne.s32.totalorder %s40, %s41
      %p55 = scmp.eq.s32.totalorder %s33, 1
      %p56 = por %p54, %p55
      %p58 = scmp.ne.s32.totalorder %s41, %s57
      %p59 = scmp.eq.s32.totalorder %s33, 0
      %p60 = por %p58, %p59
      %s62 = sadd.s32 %s61, 1
      %p65 = scmp.eq.s32.totalorder %s27, 1
      %p66 = scmp.ne.s32.totalorder %s61, %s63
      %p67 = scmp.eq.s32.totalorder %s27, 0
      %p68 = por %p66, %p67
      %p69 = scmp.ne.s32.totalorder %s61, %s63
      %p70 = scmp.eq.s32.totalorder %s32, 1
      %p71 = por %p69, %p70
      %p72 = scmp.ne.s32.totalorder %s63, %s64
      %p73 = scmp.eq.s32.totalorder %s32, 0
      %p74 = por %p72, %p73
      %p75 = scmp.ne.s32.totalorder %s63, %s64
      %p76 = scmp.eq.s32.totalorder %s33, 1
      %p77 = por %p75, %p76
      %p79 = scmp.ne.s32.totalorder %s64, %s78
      %p80 = scmp.eq.s32.totalorder %s33, 0
      %p81 = por %p79, %p80
      %s83 = sadd.s32 %s82, 1
      %p86 = scmp.eq.s32.totalorder %s27, 1
      %p87 = scmp.ne.s32.totalorder %s82, %s84
      %p88 = scmp.eq.s32.totalorder %s27, 0
      %p89 = por %p87, %p88
      %p90 = scmp.ne.s32.totalorder %s82, %s84
      %p91 = scmp.eq.s32.totalorder %s32, 1
      %p92 = por %p90, %p91
      %p93 = scmp.ne.s32.totalorder %s84, %s85
      %p94 = scmp.eq.s32.totalorder %s32, 0
      %p95 = por %p93, %p94
      %p96 = scmp.ne.s32.totalorder %s84, %s85
      %p97 = scmp.eq.s32.totalorder %s33, 1
      %p98 = por %p96, %p97
      %p100 = scmp.ne.s32.totalorder %s85, %s99
      %p101 = scmp.eq.s32.totalorder %s33, 0
      %p102 = por %p100, %p101
      %s104 = sadd.s32 %s103, 1
      %p107 = scmp.eq.s32.totalorder %s27, 1
      %p108 = scmp.ne.s32.totalorder %s103, %s105
      %p109 = scmp.eq.s32.totalorder %s27, 0
      %p110 = por %p108, %p109
      %p111 = scmp.ne.s32.totalorder %s103, %s105
      %p112 = scmp.eq.s32.totalorder %s32, 1
      %p113 = por %p111, %p112
      %p114 = scmp.ne.s32.totalorder %s105, %s106
      %p115 = scmp.eq.s32.totalorder %s32, 0
      %p116 = por %p114, %p115
      %p117 = scmp.ne.s32.totalorder %s105, %s106
      %p118 = scmp.eq.s32.totalorder %s33, 1
      %p119 = por %p117, %p118
      %p121 = scmp.ne.s32.totalorder %s106, %s120
      %p122 = scmp.eq.s32.totalorder %s33, 0
      %p123 = por %p121, %p122
      %s125 = sadd.s32 %s124, 1
      %p128 = scmp.eq.s32.totalorder %s27, 1
      %p129 = scmp.ne.s32.totalorder %s124, %s126
      %p130 = scmp.eq.s32.totalorder %s27, 0
      %p131 = por %p129, %p130
      %p132 = scmp.ne.s32.totalorder %s124, %s126
      %p133 = scmp.eq.s32.totalorder %s32, 1
      %p134 = por %p132, %p133
      %p135 = scmp.ne.s32.totalorder %s126, %s127
      %p136 = scmp.eq.s32.totalorder %s32, 0
      %p137 = por %p135, %p136
      %p138 = scmp.ne.s32.totalorder %s126, %s127
      %p139 = scmp.eq.s32.totalorder %s33, 1
      %p140 = por %p138, %p139
      %p142 = scmp.ne.s32.totalorder %s127, %s141
      %p143 = scmp.eq.s32.totalorder %s33, 0
      %p144 = por %p142, %p143
      %s146 = sadd.s32 %s145, 1
      %p149 = scmp.eq.s32.totalorder %s27, 1
      %p150 = scmp.ne.s32.totalorder %s145, %s147
      %p151 = scmp.eq.s32.totalorder %s27, 0
      %p152 = por %p150, %p151
      %p153 = scmp.ne.s32.totalorder %s145, %s147
      %p154 = scmp.eq.s32.totalorder %s32, 1
      %p155 = por %p153, %p154
      %p156 = scmp.ne.s32.totalorder %s147, %s148
      %p157 = scmp.eq.s32.totalorder %s32, 0
      %p158 = por %p156, %p157
      %p159 = scmp.ne.s32.totalorder %s147, %s148
      %p160 = scmp.eq.s32.totalorder %s33, 1
      %p161 = por %p159, %p160
      %p163 = scmp.ne.s32.totalorder %s148, %s162
      %p164 = scmp.eq.s32.totalorder %s33, 0
      %p165 = por %p163, %p164
      %s167 = sadd.s32 %s166, 1
      %p170 = scmp.eq.s32.totalorder %s27, 1
      %p171 = scmp.ne.s32.totalorder %s166, %s168
      %p172 = scmp.eq.s32.totalorder %s27, 0
      %p173 = por %p171, %p172
      %p174 = scmp.ne.s32.totalorder %s166, %s168
      %p175 = scmp.eq.s32.totalorder %s32, 1
      %p176 = por %p174, %p175
      %p177 = scmp.ne.s32.totalorder %s168, %s169
      %p178 = scmp.eq.s32.totalorder %s32, 0
      %p179 = por %p177, %p178
      %p180 = scmp.ne.s32.totalorder %s168, %s169
      %p181 = scmp.eq.s32.totalorder %s33, 1
      %p182 = por %p180, %p181
      %p184 = scmp.ne.s32.totalorder %s169, %s183
      %p185 = scmp.eq.s32.totalorder %s33, 0
      %p186 = por %p184, %p185
      %s188 = sadd.s32 %s187, 1
      %p191 = scmp.eq.s32.totalorder %s27, 1
      %p192 = scmp.ne.s32.totalorder %s187, %s189
      %p193 = scmp.eq.s32.totalorder %s27, 0
      %p194 = por %p192, %p193
      %p195 = scmp.ne.s32.totalorder %s187, %s189
      %p196 = scmp.eq.s32.totalorder %s32, 1
      %p197 = por %p195, %p196
      %p198 = scmp.ne.s32.totalorder %s189, %s190
      %p199 = scmp.eq.s32.totalorder %s32, 0
      %p200 = por %p198, %p199
      %p201 = scmp.ne.s32.totalorder %s189, %s190
      %p202 = scmp.eq.s32.totalorder %s33, 1
      %p203 = por %p201, %p202
      %p205 = scmp.ne.s32.totalorder %s190, %s204
      %p206 = scmp.eq.s32.totalorder %s33, 0
      %p207 = por %p205, %p206
      %s209 = sadd.s32 %s208, 1
      %p212 = scmp.eq.s32.totalorder %s27, 1
      %p213 = scmp.ne.s32.totalorder %s208, %s210
      %p214 = scmp.eq.s32.totalorder %s27, 0
      %p215 = por %p213, %p214
      %p216 = scmp.ne.s32.totalorder %s208, %s210
      %p217 = scmp.eq.s32.totalorder %s32, 1
      %p218 = por %p216, %p217
      %p219 = scmp.ne.s32.totalorder %s210, %s211
      %p220 = scmp.eq.s32.totalorder %s32, 0
      %p221 = por %p219, %p220
      %p222 = scmp.ne.s32.totalorder %s210, %s211
      %p223 = scmp.eq.s32.totalorder %s33, 1
      %p224 = por %p222, %p223
      %p226 = scmp.ne.s32.totalorder %s211, %s225
      %p227 = scmp.eq.s32.totalorder %s33, 0
      %p228 = por %p226, %p227
      %s230 = sadd.s32 %s229, 1
      %p233 = scmp.eq.s32.totalorder %s27, 1
      %p234 = scmp.ne.s32.totalorder %s229, %s231
      %p235 = scmp.eq.s32.totalorder %s27, 0
      %p236 = por %p234, %p235
      %p237 = scmp.ne.s32.totalorder %s229, %s231
      %p238 = scmp.eq.s32.totalorder %s32, 1
      %p239 = por %p237, %p238
      %p240 = scmp.ne.s32.totalorder %s231, %s232
      %p241 = scmp.eq.s32.totalorder %s32, 0
      %p242 = por %p240, %p241
      %p243 = scmp.ne.s32.totalorder %s231, %s232
      %p244 = scmp.eq.s32.totalorder %s33, 1
      %p245 = por %p243, %p244
      %p247 = scmp.ne.s32.totalorder %s232, %s246
      %p248 = scmp.eq.s32.totalorder %s33, 0
      %p249 = por %p247, %p248
      %s251 = sadd.s32 %s250, 1
      %p254 = scmp.eq.s32.totalorder %s27, 1
      %p255 = scmp.ne.s32.totalorder %s250, %s252
      %p256 = scmp.eq.s32.totalorder %s27, 0
      %p257 = por %p255, %p256
      %p258 = scmp.ne.s32.totalorder %s250, %s252
      %p259 = scmp.eq.s32.totalorder %s32, 1
      %p260 = por %p258, %p259
      %p261 = scmp.ne.s32.totalorder %s252, %s253
      %p262 = scmp.eq.s32.totalorder %s32, 0
      %p263 = por %p261, %p262
      %p264 = scmp.ne.s32.totalorder %s252, %s253
      %p265 = scmp.eq.s32.totalorder %s33, 1
      %p266 = por %p264, %p265
      %p268 = scmp.ne.s32.totalorder %s253, %s267
      %p269 = scmp.eq.s32.totalorder %s33, 0
      %p270 = por %p268, %p269
      %s272 = sadd.s32 %s271, 1
      %p275 = scmp.eq.s32.totalorder %s27, 1
      %p276 = scmp.ne.s32.totalorder %s271, %s273
      %p277 = scmp.eq.s32.totalorder %s27, 0
      %p278 = por %p276, %p277
      %p279 = scmp.ne.s32.totalorder %s271, %s273
      %p280 = scmp.eq.s32.totalorder %s32, 1
      %p281 = por %p279, %p280
      %p282 = scmp.ne.s32.totalorder %s273, %s274
      %p283 = scmp.eq.s32.totalorder %s32, 0
      %p284 = por %p282, %p283
      %p285 = scmp.ne.s32.totalorder %s273, %s274
      %p286 = scmp.eq.s32.totalorder %s33, 1
      %p287 = por %p285, %p286
      %p289 = scmp.ne.s32.totalorder %s274, %s288
      %p290 = scmp.eq.s32.totalorder %s33, 0
      %p291 = por %p289, %p290
      %s292 = ssub.s32 %s27, %s34
      %p293 = scmp.eq.s32.totalorder %s292, 0
      %s295 = sadd.s32 %s294, 1
      %s296 = scalar_select %p293, %s294, %s295
      %p299 = pneg %p293
      %p300 = scmp.eq.s32.totalorder %s27, 1
      %p301 = por %p299, %p300
      %p302 = scmp.ne.s32.totalorder %s294, %s297
      %p303 = scmp.eq.s32.totalorder %s27, 0
      %p304 = por %p302, %p303
      %p305 = scmp.ne.s32.totalorder %s294, %s297
      %p306 = scmp.eq.s32.totalorder %s32, 1
      %p307 = por %p305, %p306
      %p308 = scmp.ne.s32.totalorder %s297, %s298
      %p309 = scmp.eq.s32.totalorder %s32, 0
      %p310 = por %p308, %p309
      %p311 = scmp.ne.s32.totalorder %s297, %s298
      %p312 = scmp.eq.s32.totalorder %s33, 1
      %p313 = por %p311, %p312
      %p315 = scmp.ne.s32.totalorder %s298, %s314
      %p316 = scmp.eq.s32.totalorder %s33, 0
      %p317 = por %p315, %p316
      %p318 = scmp.le.s32.totalorder 1, %s27
      %p319 = scmp.lt.s32.totalorder %s27, 3
      %p320 = pnand %p318, %p319
      %p321 = pneg %p320
      // Predicated region
      $region9: #{tpu_custom_call.1} parent=5 // pred_check
        _
      $region10: #{tpu_custom_call.1} parent=5 // pred_check_branch
        %323 = sbr.rel (%p320) target = $region12
      $region11: #{tpu_custom_call.1} parent=5 // pred_region
        %s324 = ssub.s32 %s27, 1
        // Predicated region
        $region13: #{tpu_custom_call.1} parent=11 // pred_check
          %p325 = pneg %p74
        $region14: #{tpu_custom_call.1} parent=11 // pred_check_branch
          %327 = sbr.rel (%p325) target = $region16
        $region15: #{tpu_custom_call.1} parent=11 // pred_region
          %s329 = ssub.s32 9216, 9216
          %330 = vsyncadd [#allocation6], %s329
          %s331 = sshll.u32 [#allocation5], 4
          %s332 = int_to_ptr.vmem [resolvable:$true] %s331
          %337 = dma.hbm_to_vmem [thread:$0]  %s1, 9216, %s332, [#allocation6], 128, 128, 8
        $region16: #{tpu_custom_call.1} parent=11 // pred_fallthru
          _
        // Predicated region
        $region17: #{tpu_custom_call.1} parent=11 // pred_check
          %p338 = pneg %p95
        $region18: #{tpu_custom_call.1} parent=11 // pred_check_branch
          %340 = sbr.rel (%p338) target = $region20
        $region19: #{tpu_custom_call.1} parent=11 // pred_region
          %s342 = ssub.s32 18432, 18432
          %343 = vsyncadd [#allocation6], %s342
          %s344 = sshll.u32 [#allocation7], 4
          %s345 = int_to_ptr.vmem [resolvable:$true] %s344
          %350 = dma.hbm_to_vmem [thread:$0]  %s2, 18432, %s345, [#allocation6], 128, 128, 8
        $region20: #{tpu_custom_call.1} parent=11 // pred_fallthru
          _
        // Predicated region
        $region21: #{tpu_custom_call.1} parent=11 // pred_check
          %p351 = pneg %p116
        $region22: #{tpu_custom_call.1} parent=11 // pred_check_branch
          %353 = sbr.rel (%p351) target = $region24
        $region23: #{tpu_custom_call.1} parent=11 // pred_region
          _
        $region24: #{tpu_custom_call.1} parent=11 // pred_fallthru
          _
        // Predicated region
        $region25: #{tpu_custom_call.1} parent=11 // pred_check
          %p354 = pneg %p137
        $region26: #{tpu_custom_call.1} parent=11 // pred_check_branch
          %356 = sbr.rel (%p354) target = $region28
        $region27: #{tpu_custom_call.1} parent=11 // pred_region
          %s358 = ssub.s32 18432, 18432
          %359 = vsyncadd [#allocation9], %s358
          %s360 = sshll.u32 [#allocation8], 4
          %s361 = int_to_ptr.vmem [resolvable:$true] %s360
          %366 = dma.hbm_to_vmem [thread:$0]  %s4, 18432, %s361, [#allocation9], 128, 128, 8
        $region28: #{tpu_custom_call.1} parent=11 // pred_fallthru
          _
        // Predicated region
        $region29: #{tpu_custom_call.1} parent=11 // pred_check
          %p367 = pneg %p158
        $region30: #{tpu_custom_call.1} parent=11 // pred_check_branch
          %369 = sbr.rel (%p367) target = $region32
        $region31: #{tpu_custom_call.1} parent=11 // pred_region
          _
        $region32: #{tpu_custom_call.1} parent=11 // pred_fallthru
          _
        // Predicated region
        $region33: #{tpu_custom_call.1} parent=11 // pred_check
          %p370 = pneg %p179
        $region34: #{tpu_custom_call.1} parent=11 // pred_check_branch
          %372 = sbr.rel (%p370) target = $region36
        $region35: #{tpu_custom_call.1} parent=11 // pred_region
          %s374 = ssub.s32 2048, 2048
          %375 = vsyncadd [#allocation9], %s374
          %s376 = sshll.u32 [#allocation10], 4
          %s377 = int_to_ptr.vmem [resolvable:$true] %s376
          %382 = dma.hbm_to_vmem [thread:$0]  %s6, 2048, %s377, [#allocation9], 128, 128, 8
        $region36: #{tpu_custom_call.1} parent=11 // pred_fallthru
          _
        // Predicated region
        $region37: #{tpu_custom_call.1} parent=11 // pred_check
          %p383 = pneg %p200
        $region38: #{tpu_custom_call.1} parent=11 // pred_check_branch
          %385 = sbr.rel (%p383) target = $region40
        $region39: #{tpu_custom_call.1} parent=11 // pred_region
          _
        $region40: #{tpu_custom_call.1} parent=11 // pred_fallthru
          _
        // Predicated region
        $region41: #{tpu_custom_call.1} parent=11 // pred_check
          %p386 = pneg %p221
        $region42: #{tpu_custom_call.1} parent=11 // pred_check_branch
          %388 = sbr.rel (%p386) target = $region44
        $region43: #{tpu_custom_call.1} parent=11 // pred_region
          %s390 = ssub.s32 2048, 2048
          %391 = vsyncadd [#allocation12], %s390
          %s392 = sshll.u32 [#allocation11], 4
          %s393 = int_to_ptr.vmem [resolvable:$true] %s392
          %398 = dma.hbm_to_vmem [thread:$0]  %s8, 2048, %s393, [#allocation12], 128, 128, 8
        $region44: #{tpu_custom_call.1} parent=11 // pred_fallthru
          _
        // Predicated region
        $region45: #{tpu_custom_call.1} parent=11 // pred_check
          %p399 = pneg %p242
        $region46: #{tpu_custom_call.1} parent=11 // pred_check_branch
          %401 = sbr.rel (%p399) target = $region48
        $region47: #{tpu_custom_call.1} parent=11 // pred_region
          _
        $region48: #{tpu_custom_call.1} parent=11 // pred_fallthru
          _
        // Predicated region
        $region49: #{tpu_custom_call.1} parent=11 // pred_check
          %p402 = pneg %p263
        $region50: #{tpu_custom_call.1} parent=11 // pred_check_branch
          %404 = sbr.rel (%p402) target = $region52
        $region51: #{tpu_custom_call.1} parent=11 // pred_region
          %s406 = ssub.s32 2048, 2048
          %407 = vsyncadd [#allocation12], %s406
          %s408 = sshll.u32 [#allocation13], 4
          %s409 = int_to_ptr.vmem [resolvable:$true] %s408
          %414 = dma.hbm_to_vmem [thread:$0]  %s10, 2048, %s409, [#allocation12], 128, 128, 8
        $region52: #{tpu_custom_call.1} parent=11 // pred_fallthru
          _
        // Predicated region
        $region53: #{tpu_custom_call.1} parent=11 // pred_check
          %p415 = pneg %p284
        $region54: #{tpu_custom_call.1} parent=11 // pred_check_branch
          %417 = sbr.rel (%p415) target = $region56
        $region55: #{tpu_custom_call.1} parent=11 // pred_region
          _
        $region56: #{tpu_custom_call.1} parent=11 // pred_fallthru
          _
      $region12: #{tpu_custom_call.1} parent=5 // pred_fallthru
        _
      %p418 = scmp.lt.s32.totalorder %s27, 2
      // Predicated region
      $region57: #{tpu_custom_call.1} parent=5 // pred_check
        %p419 = pneg %p418
      $region58: #{tpu_custom_call.1} parent=5 // pred_check_branch
        %421 = sbr.rel (%p419) target = $region60
      $region59: #{tpu_custom_call.1} parent=5 // pred_region
        // Predicated region
        $region61: #{tpu_custom_call.1} parent=59 // pred_check
          %p422 = pneg %p47
        $region62: #{tpu_custom_call.1} parent=59 // pred_check_branch
          %424 = sbr.rel (%p422) target = $region64
        $region63: #{tpu_custom_call.1} parent=59 // pred_region
          %s425 = sand.u32 %s37, 1
          %s426 = scalar_lea.sflag [#allocation3], %s425
          %s427 = sand.u32 %s37, 1
          %s428 = smul.addr %s427, 64
          %s429 = scalar_lea.vmem [#allocation2], %s428
          %s431 = ssub.s32 1024, 1024
          %432 = vsyncadd %s426, %s431
          %s433 = smul.addr %s27, 8
          %s434 = smul.addr %s433, 128
          %s435 = scalar_lea.hbm %s0, %s434
          %s436 = sshll.u32 %s429, 4
          %s437 = int_to_ptr.vmem [resolvable:$true] %s436
          %442 = dma.hbm_to_vmem [thread:$0]  %s435, 1024, %s437, %s426, 128, 128, 8
        $region64: #{tpu_custom_call.1} parent=59 // pred_fallthru
          _
      $region60: #{tpu_custom_call.1} parent=5 // pred_fallthru
        _
      %p443 = scmp.le.s32.totalorder 1, %s27
      %p444 = scmp.lt.s32.totalorder %s27, 3
      %p445 = pnand %p443, %p444
      %p446 = pneg %p445
      // Predicated region
      $region65: #{tpu_custom_call.1} parent=5 // pred_check
        _
      $region66: #{tpu_custom_call.1} parent=5 // pred_check_branch
        %448 = sbr.rel (%p445) target = $region68
      $region67: #{tpu_custom_call.1} parent=5 // pred_region
        %s449 = ssub.s32 %s27, 1
        %s450 = sand.u32 %s40, 1
        %s451 = scalar_lea.sflag [#allocation3], %s450
        %s452 = sand.u32 %s40, 1
        %s453 = smul.addr %s452, 64
        %s454 = scalar_lea.vmem [#allocation2], %s453
        // Predicated region
        $region69: #{tpu_custom_call.1} parent=67 // pred_check
          %p455 = pneg %p53
        $region70: #{tpu_custom_call.1} parent=67 // pred_check_branch
          %457 = sbr.rel (%p455) target = $region72
        $region71: #{tpu_custom_call.1} parent=67 // pred_region
          %458 = dma.done %s451, 1024
        $region72: #{tpu_custom_call.1} parent=67 // pred_fallthru
          _
        // Predicated region
        $region73: #{tpu_custom_call.1} parent=67 // pred_check
          %p459 = pneg %p74
        $region74: #{tpu_custom_call.1} parent=67 // pred_check_branch
          %461 = sbr.rel (%p459) target = $region76
        $region75: #{tpu_custom_call.1} parent=67 // pred_region
          %462 = dma.done [#allocation6], 9216
        $region76: #{tpu_custom_call.1} parent=67 // pred_fallthru
          _
        // Predicated region
        $region77: #{tpu_custom_call.1} parent=67 // pred_check
          %p463 = pneg %p95
        $region78: #{tpu_custom_call.1} parent=67 // pred_check_branch
          %465 = sbr.rel (%p463) target = $region80
        $region79: #{tpu_custom_call.1} parent=67 // pred_region
          %466 = dma.done [#allocation6], 18432
        $region80: #{tpu_custom_call.1} parent=67 // pred_fallthru
          _
        // Predicated region
        $region81: #{tpu_custom_call.1} parent=67 // pred_check
          %p467 = pneg %p137
        $region82: #{tpu_custom_call.1} parent=67 // pred_check_branch
          %469 = sbr.rel (%p467) target = $region84
        $region83: #{tpu_custom_call.1} parent=67 // pred_region
          %470 = dma.done [#allocation9], 18432
        $region84: #{tpu_custom_call.1} parent=67 // pred_fallthru
          _
        // Predicated region
        $region85: #{tpu_custom_call.1} parent=67 // pred_check
          %p471 = pneg %p179
        $region86: #{tpu_custom_call.1} parent=67 // pred_check_branch
          %473 = sbr.rel (%p471) target = $region88
        $region87: #{tpu_custom_call.1} parent=67 // pred_region
          %474 = dma.done [#allocation9], 2048
        $region88: #{tpu_custom_call.1} parent=67 // pred_fallthru
          _
        // Predicated region
        $region89: #{tpu_custom_call.1} parent=67 // pred_check
          %p475 = pneg %p221
        $region90: #{tpu_custom_call.1} parent=67 // pred_check_branch
          %477 = sbr.rel (%p475) target = $region92
        $region91: #{tpu_custom_call.1} parent=67 // pred_region
          %478 = dma.done [#allocation12], 2048
        $region92: #{tpu_custom_call.1} parent=67 // pred_fallthru
          _
        // Predicated region
        $region93: #{tpu_custom_call.1} parent=67 // pred_check
          %p479 = pneg %p263
        $region94: #{tpu_custom_call.1} parent=67 // pred_check_branch
          %481 = sbr.rel (%p479) target = $region96
        $region95: #{tpu_custom_call.1} parent=67 // pred_region
          %482 = dma.done [#allocation12], 2048
        $region96: #{tpu_custom_call.1} parent=67 // pred_fallthru
          _
        %s483 = sand.u32 %s40, 1
        %s484 = scalar_lea.sflag [#allocation3], %s483
        %s485 = sand.u32 %s40, 1
        %s486 = smul.addr %s485, 64
        %s487 = scalar_lea.vmem [#allocation2], %s486
        %p488 = pneg %p53
        %p489 = pneg %p50
        %p490 = pneg %p74
        %p491 = pneg %p71
        %p492 = pneg %p95
        %p493 = pneg %p92
        %p494 = pneg %p116
        %p495 = pneg %p113
        %p496 = pneg %p137
        %p497 = pneg %p134
        %p498 = pneg %p158
        %p499 = pneg %p155
        %p500 = pneg %p179
        %p501 = pneg %p176
        %p502 = pneg %p200
        %p503 = pneg %p197
        %p504 = pneg %p221
        %p505 = pneg %p218
        %p506 = pneg %p242
        %p507 = pneg %p239
        %p508 = pneg %p263
        %p509 = pneg %p260
        %p510 = pneg %p284
        %p511 = pneg %p281
        %p512 = pneg %p310
        %p513 = pneg %p307
        %s514 = sand.u32 %s297, 1
        %s515 = scalar_lea.sflag [#allocation4], %s514
        %s516 = sand.u32 %s297, 1
        %s517 = smul.addr %s516, 64
        %s518 = scalar_lea.vmem [#allocation14], %s517
        %v519 = vld [vmem:[%s454] sm:$0xff]
        %v520 = vld [vmem:[%s454 + $0x8] sm:$0xff]
        %v521 = vld [vmem:[%s454 + $0x10] sm:$0xff]
        %v522 = vld [vmem:[%s454 + $0x18] sm:$0xff]
        %v523 = vld [vmem:[%s454 + $0x20] sm:$0xff]
        %v524 = vld [vmem:[%s454 + $0x28] sm:$0xff]
        %v525 = vld [vmem:[%s454 + $0x30] sm:$0xff]
        %v526 = vld [vmem:[%s454 + $0x38] sm:$0xff]
        %v527 = vld [vmem:[#allocation5] sm:$0xff]
        %v528 = vld [vmem:[#allocation5 + $0x8] sm:$0xff]
        %v529 = vld [vmem:[#allocation5 + $0x10] sm:$0xff]
        %v530 = vld [vmem:[#allocation5 + $0x18] sm:$0xff]
        %v531 = vld [vmem:[#allocation5 + $0x20] sm:$0xff]
        %v532 = vld [vmem:[#allocation5 + $0x28] sm:$0xff]
        %v533 = vld [vmem:[#allocation5 + $0x30] sm:$0xff]
        %v534 = vld [vmem:[#allocation5 + $0x38] sm:$0xff]
        %vm535 = vcmask 523264
        %v537 = vsel %vm535, %v527, 0
        %v540 = vsel %vm535, %v528, 0
        %v543 = vsel %vm535, %v529, 0
        %v546 = vsel %vm535, %v530, 0
        %v549 = vsel %vm535, %v531, 0
        %v552 = vsel %vm535, %v532, 0
        %v555 = vsel %vm535, %v533, 0
        %v558 = vsel %vm535, %v534, 0
        %560 = vmatprep.subr.mxu0 0.0
        %561 = vmatpush1.msra.mxu0 %v519
        %562 = vmatprep.subr.mxu0 0.0
        %563 = vmatpush1.msra.mxu0 %v520
        %564 = vmatprep.subr.mxu0 0.0
        %565 = vmatpush1.msra.mxu0 %v521
        %566 = vmatprep.subr.mxu0 0.0
        %567 = vmatpush1.msra.mxu0 %v522
        %568 = vmatprep.subr.mxu0 0.0
        %569 = vmatpush1.msra.mxu0 %v523
        %570 = vmatprep.subr.mxu0 0.0
        %571 = vmatpush1.msra.mxu0 %v524
        %572 = vmatprep.subr.mxu0 0.0
        %573 = vmatpush1.msra.mxu0 %v525
        %574 = vmatprep.subr.mxu0 0.0
        %575 = vmatpush1.msra.mxu0 %v526
        %576 = vmatprep.subr.mxu0 0.0
        %577 = vmatpush1.msra.mxu0 0.0
        %578 = vmatprep.subr.mxu0 0.0
        %579 = vmatpush1.msra.mxu0 0.0
        %580 = vmatprep.subr.mxu0 0.0
        %581 = vmatpush1.msra.mxu0 0.0
        %582 = vmatprep.subr.mxu0 0.0
        %583 = vmatpush1.msra.mxu0 0.0
        %584 = vmatprep.subr.mxu0 0.0
        %585 = vmatpush1.msra.mxu0 0.0
        %586 = vmatprep.subr.mxu0 0.0
        %587 = vmatpush1.msra.mxu0 0.0
        %588 = vmatprep.subr.mxu0 0.0
        %589 = vmatpush1.msra.mxu0 0.0
        %590 = vmatprep.subr.mxu0 0.0
        %591 = vmatpush1.msra.mxu0 0.0
        %592 = vmatprep.subr.mxu0 0.0
        %593 = vmatpush1.msra.mxu0 0.0
        %594 = vmatprep.subr.mxu0 0.0
        %595 = vmatpush1.msra.mxu0 0.0
        %596 = vmatprep.subr.mxu0 0.0
        %597 = vmatpush1.msra.mxu0 0.0
        %598 = vmatprep.subr.mxu0 0.0
        %599 = vmatpush1.msra.mxu0 0.0
        %600 = vmatprep.subr.mxu0 0.0
        %601 = vmatpush1.msra.mxu0 0.0
        %602 = vmatprep.subr.mxu0 0.0
        %603 = vmatpush1.msra.mxu0 0.0
        %604 = vmatprep.subr.mxu0 0.0
        %605 = vmatpush1.msra.mxu0 0.0
        %606 = vmatprep.subr.mxu0 0.0
        %607 = vmatpush1.msra.mxu0 0.0
        %608 = vmatprep.subr.mxu0 0.0
        %609 = vmatpush1.msra.mxu0 0.0
        %610 = vmatprep.subr.mxu0 0.0
        %611 = vmatpush1.msra.mxu0 0.0
        %612 = vmatprep.subr.mxu0 0.0
        %613 = vmatpush1.msra.mxu0 0.0
        %614 = vmatprep.subr.mxu0 0.0
        %615 = vmatpush1.msra.mxu0 0.0
        %616 = vmatprep.subr.mxu0 0.0
        %617 = vmatpush1.msra.mxu0 0.0
        %618 = vmatprep.subr.mxu0 0.0
        %619 = vmatpush1.msra.mxu0 0.0
        %620 = vmatprep.subr.mxu0 0.0
        %621 = vmatpush1.msra.mxu0 0.0
        %622 = vmatprep.subr.mxu0 0.0
        %623 = vmatpush1.msra.mxu0 0.0
        %624 = vmatprep.mubr.f32.mxu0 0.0
        %625 = vmatmul.mubr.f32.gmra.mrb[0].mxu0 %v537
        %v626 = vpop.f32.mrb[0].mxu0
        %v627 = vadd.f32 0.0, %v626
        %v628 = vpop.f32.mrb[0].mxu0
        %629 = vmatprep.mubr.f32.mxu0 0.0
        %630 = vmatmul.mubr.f32.gmra.mrb[0].mxu0 %v540
        %v631 = vpop.f32.mrb[0].mxu0
        %v632 = vadd.f32 0.0, %v631
        %v633 = vpop.f32.mrb[0].mxu0
        %634 = vmatprep.mubr.f32.mxu0 0.0
        %635 = vmatmul.mubr.f32.gmra.mrb[0].mxu0 %v543
        %v636 = vpop.f32.mrb[0].mxu0
        %v637 = vadd.f32 0.0, %v636
        %v638 = vpop.f32.mrb[0].mxu0
        %639 = vmatprep.mubr.f32.mxu0 0.0
        %640 = vmatmul.mubr.f32.gmra.mrb[0].mxu0 %v546
        %v641 = vpop.f32.mrb[0].mxu0
        %v642 = vadd.f32 0.0, %v641
        %v643 = vpop.f32.mrb[0].mxu0
        %644 = vmatprep.mubr.f32.mxu0 0.0
        %645 = vmatmul.mubr.f32.gmra.mrb[0].mxu0 %v549
        %v646 = vpop.f32.mrb[0].mxu0
        %v647 = vadd.f32 0.0, %v646
        %v648 = vpop.f32.mrb[0].mxu0
        %649 = vmatprep.mubr.f32.mxu0 0.0
        %650 = vmatmul.mubr.f32.gmra.mrb[0].mxu0 %v552
        %v651 = vpop.f32.mrb[0].mxu0
        %v652 = vadd.f32 0.0, %v651
        %v653 = vpop.f32.mrb[0].mxu0
        %654 = vmatprep.mubr.f32.mxu0 0.0
        %655 = vmatmul.mubr.f32.gmra.mrb[0].mxu0 %v555
        %v656 = vpop.f32.mrb[0].mxu0
        %v657 = vadd.f32 0.0, %v656
        %v658 = vpop.f32.mrb[0].mxu0
        %659 = vmatprep.mubr.f32.mxu0 0.0
        %660 = vmatmul.mubr.f32.gmra.mrb[0].mxu0 %v558
        %v661 = vpop.f32.mrb[0].mxu0
        %v662 = vadd.f32 0.0, %v661
        %v663 = vpop.f32.mrb[0].mxu0
        %664 = vdwg.mxu0
        %v665 = vld [vmem:[#allocation7] sm:$0xff]
        %v666 = vld [vmem:[#allocation7 + $0x8] sm:$0xff]
        %v667 = vld [vmem:[#allocation7 + $0x10] sm:$0xff]
        %v668 = vld [vmem:[#allocation7 + $0x18] sm:$0xff]
        %v669 = vld [vmem:[#allocation7 + $0x20] sm:$0xff]
        %v670 = vld [vmem:[#allocation7 + $0x28] sm:$0xff]
        %v671 = vld [vmem:[#allocation7 + $0x30] sm:$0xff]
        %v672 = vld [vmem:[#allocation7 + $0x38] sm:$0xff]
        %v673 = vld [vmem:[#allocation7 + $0x40] sm:$0xff]
        %v674 = vld [vmem:[#allocation7 + $0x48] sm:$0xff]
        %v675 = vld [vmem:[#allocation7 + $0x50] sm:$0xff]
        %v676 = vld [vmem:[#allocation7 + $0x58] sm:$0xff]
        %v677 = vld [vmem:[#allocation7 + $0x60] sm:$0xff]
        %v678 = vld [vmem:[#allocation7 + $0x68] sm:$0xff]
        %v679 = vld [vmem:[#allocation7 + $0x70] sm:$0xff]
        %v680 = vld [vmem:[#allocation7 + $0x78] sm:$0xff]
        %s681 = scalar_lea.vmem [#allocation5], 64
        %v682 = vld [vmem:[%s681] sm:$0xff]
        %v683 = vld [vmem:[%s681 + $0x8] sm:$0xff]
        %v684 = vld [vmem:[%s681 + $0x10] sm:$0xff]
        %v685 = vld [vmem:[%s681 + $0x18] sm:$0xff]
        %v686 = vld [vmem:[%s681 + $0x20] sm:$0xff]
        %v687 = vld [vmem:[%s681 + $0x28] sm:$0xff]
        %v688 = vld [vmem:[%s681 + $0x30] sm:$0xff]
        %v689 = vld [vmem:[%s681 + $0x38] sm:$0xff]
        %v691 = vsel %vm535, %v682, 0
        %v694 = vsel %vm535, %v683, 0
        %v697 = vsel %vm535, %v684, 0
        %v700 = vsel %vm535, %v685, 0
        %v703 = vsel %vm535, %v686, 0
        %v706 = vsel %vm535, %v687, 0
        %v709 = vsel %vm535, %v688, 0
        %v712 = vsel %vm535, %v689, 0
        %714 = vmatprep.subr.mxu0 0.0
        %715 = vmatpush1.msra.mxu0 %v519
        %716 = vmatprep.subr.mxu0 0.0
        %717 = vmatpush1.msra.mxu0 %v520
        %718 = vmatprep.subr.mxu0 0.0
        %719 = vmatpush1.msra.mxu0 %v521
        %720 = vmatprep.subr.mxu0 0.0
        %721 = vmatpush1.msra.mxu0 %v522
        %722 = vmatprep.subr.mxu0 0.0
        %723 = vmatpush1.msra.mxu0 %v523
        %724 = vmatprep.subr.mxu0 0.0
        %725 = vmatpush1.msra.mxu0 %v524
        %726 = vmatprep.subr.mxu0 0.0
        %727 = vmatpush1.msra.mxu0 %v525
        %728 = vmatprep.subr.mxu0 0.0
        %729 = vmatpush1.msra.mxu0 %v526
        %730 = vmatprep.subr.mxu0 0.0
        %731 = vmatpush1.msra.mxu0 0.0
        %732 = vmatprep.subr.mxu0 0.0
        %733 = vmatpush1.msra.mxu0 0.0
        %734 = vmatprep.subr.mxu0 0.0
        %735 = vmatpush1.msra.mxu0 0.0
        %736 = vmatprep.subr.mxu0 0.0
        %737 = vmatpush1.msra.mxu0 0.0
        %738 = vmatprep.subr.mxu0 0.0
        %739 = vmatpush1.msra.mxu0 0.0
        %740 = vmatprep.subr.mxu0 0.0
        %741 = vmatpush1.msra.mxu0 0.0
        %742 = vmatprep.subr.mxu0 0.0
        %743 = vmatpush1.msra.mxu0 0.0
        %744 = vmatprep.subr.mxu0 0.0
        %745 = vmatpush1.msra.mxu0 0.0
        %746 = vmatprep.subr.mxu0 0.0
        %747 = vmatpush1.msra.mxu0 0.0
        %748 = vmatprep.subr.mxu0 0.0
        %749 = vmatpush1.msra.mxu0 0.0
        %750 = vmatprep.subr.mxu0 0.0
        %751 = vmatpush1.msra.mxu0 0.0
        %752 = vmatprep.subr.mxu0 0.0
        %753 = vmatpush1.msra.mxu0 0.0
        %754 = vmatprep.subr.mxu0 0.0
        %755 = vmatpush1.msra.mxu0 0.0
        %756 = vmatprep.subr.mxu0 0.0
        %757 = vmatpush1.msra.mxu0 0.0
        %758 = vmatprep.subr.mxu0 0.0
        %759 = vmatpush1.msra.mxu0 0.0
        %760 = vmatprep.subr.mxu0 0.0
        %761 = vmatpush1.msra.mxu0 0.0
        %762 = vmatprep.subr.mxu0 0.0
        %763 = vmatpush1.msra.mxu0 0.0
        %764 = vmatprep.subr.mxu0 0.0
        %765 = vmatpush1.msra.mxu0 0.0
        %766 = vmatprep.subr.mxu0 0.0
        %767 = vmatpush1.msra.mxu0 0.0
        %768 = vmatprep.subr.mxu0 0.0
        %769 = vmatpush1.msra.mxu0 0.0
        %770 = vmatprep.subr.mxu0 0.0
        %771 = vmatpush1.msra.mxu0 0.0
        %772 = vmatprep.subr.mxu0 0.0
        %773 = vmatpush1.msra.mxu0 0.0
        %774 = vmatprep.subr.mxu0 0.0
        %775 = vmatpush1.msra.mxu0 0.0
        %776 = vmatprep.subr.mxu0 0.0
        %777 = vmatpush1.msra.mxu0 0.0
        %778 = vmatprep.mubr.f32.mxu0 0.0
        %779 = vmatmul.mubr.f32.gmra.mrb[0].mxu0 %v691
        %v780 = vpop.f32.mrb[0].mxu0
        %v781 = vadd.f32 0.0, %v780
        %v782 = vpop.f32.mrb[0].mxu0
        %783 = vmatprep.mubr.f32.mxu0 0.0
        %784 = vmatmul.mubr.f32.gmra.mrb[0].mxu0 %v694
        %v785 = vpop.f32.mrb[0].mxu0
        %v786 = vadd.f32 0.0, %v785
        %v787 = vpop.f32.mrb[0].mxu0
        %788 = vmatprep.mubr.f32.mxu0 0.0
        %789 = vmatmul.mubr.f32.gmra.mrb[0].mxu0 %v697
        %v790 = vpop.f32.mrb[0].mxu0
        %v791 = vadd.f32 0.0, %v790
        %v792 = vpop.f32.mrb[0].mxu0
        %793 = vmatprep.mubr.f32.mxu0 0.0
        %794 = vmatmul.mubr.f32.gmra.mrb[0].mxu0 %v700
        %v795 = vpop.f32.mrb[0].mxu0
        %v796 = vadd.f32 0.0, %v795
        %v797 = vpop.f32.mrb[0].mxu0
        %798 = vmatprep.mubr.f32.mxu0 0.0
        %799 = vmatmul.mubr.f32.gmra.mrb[0].mxu0 %v703
        %v800 = vpop.f32.mrb[0].mxu0
        %v801 = vadd.f32 0.0, %v800
        %v802 = vpop.f32.mrb[0].mxu0
        %803 = vmatprep.mubr.f32.mxu0 0.0
        %804 = vmatmul.mubr.f32.gmra.mrb[0].mxu0 %v706
        %v805 = vpop.f32.mrb[0].mxu0
        %v806 = vadd.f32 0.0, %v805
        %v807 = vpop.f32.mrb[0].mxu0
        %808 = vmatprep.mubr.f32.mxu0 0.0
        %809 = vmatmul.mubr.f32.gmra.mrb[0].mxu0 %v709
        %v810 = vpop.f32.mrb[0].mxu0
        %v811 = vadd.f32 0.0, %v810
        %v812 = vpop.f32.mrb[0].mxu0
        %813 = vmatprep.mubr.f32.mxu0 0.0
        %814 = vmatmul.mubr.f32.gmra.mrb[0].mxu0 %v712
        %v815 = vpop.f32.mrb[0].mxu0
        %v816 = vadd.f32 0.0, %v815
        %v817 = vpop.f32.mrb[0].mxu0
        %818 = vdwg.mxu0
        %s819 = scalar_lea.vmem [#allocation7], 128
        %v820 = vld [vmem:[%s819] sm:$0xff]
        %v821 = vld [vmem:[%s819 + $0x8] sm:$0xff]
        %v822 = vld [vmem:[%s819 + $0x10] sm:$0xff]
        %v823 = vld [vmem:[%s819 + $0x18] sm:$0xff]
        %v824 = vld [vmem:[%s819 + $0x20] sm:$0xff]
        %v825 = vld [vmem:[%s819 + $0x28] sm:$0xff]
        %v826 = vld [vmem:[%s819 + $0x30] sm:$0xff]
        %v827 = vld [vmem:[%s819 + $0x38] sm:$0xff]
        %v828 = vld [vmem:[%s819 + $0x40] sm:$0xff]
        %v829 = vld [vmem:[%s819 + $0x48] sm:$0xff]
        %v830 = vld [vmem:[%s819 + $0x50] sm:$0xff]
        %v831 = vld [vmem:[%s819 + $0x58] sm:$0xff]
        %v832 = vld [vmem:[%s819 + $0x60] sm:$0xff]
        %v833 = vld [vmem:[%s819 + $0x68] sm:$0xff]
        %v834 = vld [vmem:[%s819 + $0x70] sm:$0xff]
        %v835 = vld [vmem:[%s819 + $0x78] sm:$0xff]
        %836 = vmatprep.subr.mxu0 0.0
        %837 = vmatpush1.msra.mxu0 %v820
        %838 = vmatprep.subr.mxu0 0.0
        %839 = vmatpush1.msra.mxu0 %v821
        %840 = vmatprep.subr.mxu0 0.0
        %841 = vmatpush1.msra.mxu0 %v822
        %842 = vmatprep.subr.mxu0 0.0
        %843 = vmatpush1.msra.mxu0 %v823
        %844 = vmatprep.subr.mxu0 0.0
        %845 = vmatpush1.msra.mxu0 %v824
        %846 = vmatprep.subr.mxu0 0.0
        %847 = vmatpush1.msra.mxu0 %v825
        %848 = vmatprep.subr.mxu0 0.0
        %849 = vmatpush1.msra.mxu0 %v826
        %850 = vmatprep.subr.mxu0 0.0
        %851 = vmatpush1.msra.mxu0 %v827
        %852 = vmatprep.subr.mxu0 0.0
        %853 = vmatpush1.msra.mxu0 %v828
        %854 = vmatprep.subr.mxu0 0.0
        %855 = vmatpush1.msra.mxu0 %v829
        %856 = vmatprep.subr.mxu0 0.0
        %857 = vmatpush1.msra.mxu0 %v830
        %858 = vmatprep.subr.mxu0 0.0
        %859 = vmatpush1.msra.mxu0 %v831
        %860 = vmatprep.subr.mxu0 0.0
        %861 = vmatpush1.msra.mxu0 %v832
        %862 = vmatprep.subr.mxu0 0.0
        %863 = vmatpush1.msra.mxu0 %v833
        %864 = vmatprep.subr.mxu0 0.0
        %865 = vmatpush1.msra.mxu0 %v834
        %866 = vmatprep.subr.mxu0 0.0
        %867 = vmatpush1.msra.mxu0 %v835
        %868 = vmatprep.subr.mxu0 0.0
        %869 = vmatpush1.msra.mxu0 0.0
        %870 = vmatprep.subr.mxu0 0.0
        %871 = vmatpush1.msra.mxu0 0.0
        %872 = vmatprep.subr.mxu0 0.0
        %873 = vmatpush1.msra.mxu0 0.0
        %874 = vmatprep.subr.mxu0 0.0
        %875 = vmatpush1.msra.mxu0 0.0
        %876 = vmatprep.subr.mxu0 0.0
        %877 = vmatpush1.msra.mxu0 0.0
        %878 = vmatprep.subr.mxu0 0.0
        %879 = vmatpush1.msra.mxu0 0.0
        %880 = vmatprep.subr.mxu0 0.0
        %881 = vmatpush1.msra.mxu0 0.0
        %882 = vmatprep.subr.mxu0 0.0
        %883 = vmatpush1.msra.mxu0 0.0
        %884 = vmatprep.subr.mxu0 0.0
        %885 = vmatpush1.msra.mxu0 0.0
        %886 = vmatprep.subr.mxu0 0.0
        %887 = vmatpush1.msra.mxu0 0.0
        %888 = vmatprep.subr.mxu0 0.0
        %889 = vmatpush1.msra.mxu0 0.0
        %890 = vmatprep.subr.mxu0 0.0
        %891 = vmatpush1.msra.mxu0 0.0
        %892 = vmatprep.subr.mxu0 0.0
        %893 = vmatpush1.msra.mxu0 0.0
        %894 = vmatprep.subr.mxu0 0.0
        %895 = vmatpush1.msra.mxu0 0.0
        %896 = vmatprep.subr.mxu0 0.0
        %897 = vmatpush1.msra.mxu0 0.0
        %898 = vmatprep.subr.mxu0 0.0
        %899 = vmatpush1.msra.mxu0 0.0
        %900 = vmatprep.mubr.f32.mxu0 0.0
        %901 = vmatmul.mubr.f32.gmra.mrb[0].mxu0 %v781
        %v902 = vpop.f32.mrb[0].mxu0
        %v903 = vadd.f32 0.0, %v902
        %v904 = vpop.f32.mrb[0].mxu0
        %905 = vmatprep.mubr.f32.mxu0 0.0
        %906 = vmatmul.mubr.f32.gmra.mrb[0].mxu0 %v786
        %v907 = vpop.f32.mrb[0].mxu0
        %v908 = vadd.f32 0.0, %v907
        %v909 = vpop.f32.mrb[0].mxu0
        %910 = vmatprep.mubr.f32.mxu0 0.0
        %911 = vmatmul.mubr.f32.gmra.mrb[0].mxu0 %v791
        %v912 = vpop.f32.mrb[0].mxu0
        %v913 = vadd.f32 0.0, %v912
        %v914 = vpop.f32.mrb[0].mxu0
        %915 = vmatprep.mubr.f32.mxu0 0.0
        %916 = vmatmul.mubr.f32.gmra.mrb[0].mxu0 %v796
        %v917 = vpop.f32.mrb[0].mxu0
        %v918 = vadd.f32 0.0, %v917
        %v919 = vpop.f32.mrb[0].mxu0
        %920 = vmatprep.mubr.f32.mxu0 0.0
        %921 = vmatmul.mubr.f32.gmra.mrb[0].mxu0 %v801
        %v922 = vpop.f32.mrb[0].mxu0
        %v923 = vadd.f32 0.0, %v922
        %v924 = vpop.f32.mrb[0].mxu0
        %925 = vmatprep.mubr.f32.mxu0 0.0
        %926 = vmatmul.mubr.f32.gmra.mrb[0].mxu0 %v806
        %v927 = vpop.f32.mrb[0].mxu0
        %v928 = vadd.f32 0.0, %v927
        %v929 = vpop.f32.mrb[0].mxu0
        %930 = vmatprep.mubr.f32.mxu0 0.0
        %931 = vmatmul.mubr.f32.gmra.mrb[0].mxu0 %v811
        %v932 = vpop.f32.mrb[0].mxu0
        %v933 = vadd.f32 0.0, %v932
        %v934 = vpop.f32.mrb[0].mxu0
        %935 = vmatprep.mubr.f32.mxu0 0.0
        %936 = vmatmul.mubr.f32.gmra.mrb[0].mxu0 %v816
        %v937 = vpop.f32.mrb[0].mxu0
        %v938 = vadd.f32 0.0, %v937
        %v939 = vpop.f32.mrb[0].mxu0
        %940 = vdwg.mxu0
        %941 = vmatprep.subr.mxu0 0.0
        %942 = vmatpush1.msra.mxu0 %v665
        %943 = vmatprep.subr.mxu0 0.0
        %944 = vmatpush1.msra.mxu0 %v666
        %945 = vmatprep.subr.mxu0 0.0
        %946 = vmatpush1.msra.mxu0 %v667
        %947 = vmatprep.subr.mxu0 0.0
        %948 = vmatpush1.msra.mxu0 %v668
        %949 = vmatprep.subr.mxu0 0.0
        %950 = vmatpush1.msra.mxu0 %v669
        %951 = vmatprep.subr.mxu0 0.0
        %952 = vmatpush1.msra.mxu0 %v670
        %953 = vmatprep.subr.mxu0 0.0
        %954 = vmatpush1.msra.mxu0 %v671
        %955 = vmatprep.subr.mxu0 0.0
        %956 = vmatpush1.msra.mxu0 %v672
        %957 = vmatprep.subr.mxu0 0.0
        %958 = vmatpush1.msra.mxu0 %v673
        %959 = vmatprep.subr.mxu0 0.0
        %960 = vmatpush1.msra.mxu0 %v674
        %961 = vmatprep.subr.mxu0 0.0
        %962 = vmatpush1.msra.mxu0 %v675
        %963 = vmatprep.subr.mxu0 0.0
        %964 = vmatpush1.msra.mxu0 %v676
        %965 = vmatprep.subr.mxu0 0.0
        %966 = vmatpush1.msra.mxu0 %v677
        %967 = vmatprep.subr.mxu0 0.0
        %968 = vmatpush1.msra.mxu0 %v678
        %969 = vmatprep.subr.mxu0 0.0
        %970 = vmatpush1.msra.mxu0 %v679
        %971 = vmatprep.subr.mxu0 0.0
        %972 = vmatpush1.msra.mxu0 %v680
        %973 = vmatprep.subr.mxu0 0.0
        %974 = vmatpush1.msra.mxu0 0.0
        %975 = vmatprep.subr.mxu0 0.0
        %976 = vmatpush1.msra.mxu0 0.0
        %977 = vmatprep.subr.mxu0 0.0
        %978 = vmatpush1.msra.mxu0 0.0
        %979 = vmatprep.subr.mxu0 0.0
        %980 = vmatpush1.msra.mxu0 0.0
        %981 = vmatprep.subr.mxu0 0.0
        %982 = vmatpush1.msra.mxu0 0.0
        %983 = vmatprep.subr.mxu0 0.0
        %984 = vmatpush1.msra.mxu0 0.0
        %985 = vmatprep.subr.mxu0 0.0
        %986 = vmatpush1.msra.mxu0 0.0
        %987 = vmatprep.subr.mxu0 0.0
        %988 = vmatpush1.msra.mxu0 0.0
        %989 = vmatprep.subr.mxu0 0.0
        %990 = vmatpush1.msra.mxu0 0.0
        %991 = vmatprep.subr.mxu0 0.0
        %992 = vmatpush1.msra.mxu0 0.0
        %993 = vmatprep.subr.mxu0 0.0
        %994 = vmatpush1.msra.mxu0 0.0
        %995 = vmatprep.subr.mxu0 0.0
        %996 = vmatpush1.msra.mxu0 0.0
        %997 = vmatprep.subr.mxu0 0.0
        %998 = vmatpush1.msra.mxu0 0.0
        %999 = vmatprep.subr.mxu0 0.0
        %1000 = vmatpush1.msra.mxu0 0.0
        %1001 = vmatprep.subr.mxu0 0.0
        %1002 = vmatpush1.msra.mxu0 0.0
        %1003 = vmatprep.subr.mxu0 0.0
        %1004 = vmatpush1.msra.mxu0 0.0
        %1005 = vmatprep.mubr.f32.mxu0 0.0
        %1006 = vmatmul.mubr.f32.gmra.mrb[0].mxu0 %v627
        %v1007 = vpop.f32.mrb[0].mxu0
        %v1008 = vadd.f32 %v903, %v1007
        %v1009 = vpop.f32.mrb[0].mxu0
        %1010 = vmatprep.mubr.f32.mxu0 0.0
        %1011 = vmatmul.mubr.f32.gmra.mrb[0].mxu0 %v632
        %v1012 = vpop.f32.mrb[0].mxu0
        %v1013 = vadd.f32 %v908, %v1012
        %v1014 = vpop.f32.mrb[0].mxu0
        %1015 = vmatprep.mubr.f32.mxu0 0.0
        %1016 = vmatmul.mubr.f32.gmra.mrb[0].mxu0 %v637
        %v1017 = vpop.f32.mrb[0].mxu0
        %v1018 = vadd.f32 %v913, %v1017
        %v1019 = vpop.f32.mrb[0].mxu0
        %1020 = vmatprep.mubr.f32.mxu0 0.0
        %1021 = vmatmul.mubr.f32.gmra.mrb[0].mxu0 %v642
        %v1022 = vpop.f32.mrb[0].mxu0
        %v1023 = vadd.f32 %v918, %v1022
        %v1024 = vpop.f32.mrb[0].mxu0
        %1025 = vmatprep.mubr.f32.mxu0 0.0
        %1026 = vmatmul.mubr.f32.gmra.mrb[0].mxu0 %v647
        %v1027 = vpop.f32.mrb[0].mxu0
        %v1028 = vadd.f32 %v923, %v1027
        %v1029 = vpop.f32.mrb[0].mxu0
        %1030 = vmatprep.mubr.f32.mxu0 0.0
        %1031 = vmatmul.mubr.f32.gmra.mrb[0].mxu0 %v652
        %v1032 = vpop.f32.mrb[0].mxu0
        %v1033 = vadd.f32 %v928, %v1032
        %v1034 = vpop.f32.mrb[0].mxu0
        %1035 = vmatprep.mubr.f32.mxu0 0.0
        %1036 = vmatmul.mubr.f32.gmra.mrb[0].mxu0 %v657
        %v1037 = vpop.f32.mrb[0].mxu0
        %v1038 = vadd.f32 %v933, %v1037
        %v1039 = vpop.f32.mrb[0].mxu0
        %1040 = vmatprep.mubr.f32.mxu0 0.0
        %1041 = vmatmul.mubr.f32.gmra.mrb[0].mxu0 %v662
        %v1042 = vpop.f32.mrb[0].mxu0
        %v1043 = vadd.f32 %v938, %v1042
        %v1044 = vpop.f32.mrb[0].mxu0
        %1045 = vdwg.mxu0
        %s1046 = scalar_lea.vmem [#allocation5], 128
        %v1047 = vld [vmem:[%s1046] sm:$0xff]
        %v1048 = vld [vmem:[%s1046 + $0x8] sm:$0xff]
        %v1049 = vld [vmem:[%s1046 + $0x10] sm:$0xff]
        %v1050 = vld [vmem:[%s1046 + $0x18] sm:$0xff]
        %v1051 = vld [vmem:[%s1046 + $0x20] sm:$0xff]
        %v1052 = vld [vmem:[%s1046 + $0x28] sm:$0xff]
        %v1053 = vld [vmem:[%s1046 + $0x30] sm:$0xff]
        %v1054 = vld [vmem:[%s1046 + $0x38] sm:$0xff]
        %v1056 = vsel %vm535, %v1047, 0
        %v1059 = vsel %vm535, %v1048, 0
        %v1062 = vsel %vm535, %v1049, 0
        %v1065 = vsel %vm535, %v1050, 0
        %v1068 = vsel %vm535, %v1051, 0
        %v1071 = vsel %vm535, %v1052, 0
        %v1074 = vsel %vm535, %v1053, 0
        %v1077 = vsel %vm535, %v1054, 0
        %1079 = vmatprep.subr.mxu0 0.0
        %1080 = vmatpush1.msra.mxu0 %v519
        %1081 = vmatprep.subr.mxu0 0.0
        %1082 = vmatpush1.msra.mxu0 %v520
        %1083 = vmatprep.subr.mxu0 0.0
        %1084 = vmatpush1.msra.mxu0 %v521
        %1085 = vmatprep.subr.mxu0 0.0
        %1086 = vmatpush1.msra.mxu0 %v522
        %1087 = vmatprep.subr.mxu0 0.0
        %1088 = vmatpush1.msra.mxu0 %v523
        %1089 = vmatprep.subr.mxu0 0.0
        %1090 = vmatpush1.msra.mxu0 %v524
        %1091 = vmatprep.subr.mxu0 0.0
        %1092 = vmatpush1.msra.mxu0 %v525
        %1093 = vmatprep.subr.mxu0 0.0
        %1094 = vmatpush1.msra.mxu0 %v526
        %1095 = vmatprep.subr.mxu0 0.0
        %1096 = vmatpush1.msra.mxu0 0.0
        %1097 = vmatprep.subr.mxu0 0.0
        %1098 = vmatpush1.msra.mxu0 0.0
        %1099 = vmatprep.subr.mxu0 0.0
        %1100 = vmatpush1.msra.mxu0 0.0
        %1101 = vmatprep.subr.mxu0 0.0
        %1102 = vmatpush1.msra.mxu0 0.0
        %1103 = vmatprep.subr.mxu0 0.0
        %1104 = vmatpush1.msra.mxu0 0.0
        %1105 = vmatprep.subr.mxu0 0.0
        %1106 = vmatpush1.msra.mxu0 0.0
        %1107 = vmatprep.subr.mxu0 0.0
        %1108 = vmatpush1.msra.mxu0 0.0
        %1109 = vmatprep.subr.mxu0 0.0
        %1110 = vmatpush1.msra.mxu0 0.0
        %1111 = vmatprep.subr.mxu0 0.0
        %1112 = vmatpush1.msra.mxu0 0.0
        %1113 = vmatprep.subr.mxu0 0.0
        %1114 = vmatpush1.msra.mxu0 0.0
        %1115 = vmatprep.subr.mxu0 0.0
        %1116 = vmatpush1.msra.mxu0 0.0
        %1117 = vmatprep.subr.mxu0 0.0
        %1118 = vmatpush1.msra.mxu0 0.0
        %1119 = vmatprep.subr.mxu0 0.0
        %1120 = vmatpush1.msra.mxu0 0.0
        %1121 = vmatprep.subr.mxu0 0.0
        %1122 = vmatpush1.msra.mxu0 0.0
        %1123 = vmatprep.subr.mxu0 0.0
        %1124 = vmatpush1.msra.mxu0 0.0
        %1125 = vmatprep.subr.mxu0 0.0
        %1126 = vmatpush1.msra.mxu0 0.0
        %1127 = vmatprep.subr.mxu0 0.0
        %1128 = vmatpush1.msra.mxu0 0.0
        %1129 = vmatprep.subr.mxu0 0.0
        %1130 = vmatpush1.msra.mxu0 0.0
        %1131 = vmatprep.subr.mxu0 0.0
        %1132 = vmatpush1.msra.mxu0 0.0
        %1133 = vmatprep.subr.mxu0 0.0
        %1134 = vmatpush1.msra.mxu0 0.0
        %1135 = vmatprep.subr.mxu0 0.0
        %1136 = vmatpush1.msra.mxu0 0.0
        %1137 = vmatprep.subr.mxu0 0.0
        %1138 = vmatpush1.msra.mxu0 0.0
        %1139 = vmatprep.subr.mxu0 0.0
        %1140 = vmatpush1.msra.mxu0 0.0
        %1141 = vmatprep.subr.mxu0 0.0
        %1142 = vmatpush1.msra.mxu0 0.0
        %1143 = vmatprep.mubr.f32.mxu0 0.0
        %1144 = vmatmul.mubr.f32.gmra.mrb[0].mxu0 %v1056
        %v1145 = vpop.f32.mrb[0].mxu0
        %v1146 = vadd.f32 0.0, %v1145
        %v1147 = vpop.f32.mrb[0].mxu0
        %1148 = vmatprep.mubr.f32.mxu0 0.0
        %1149 = vmatmul.mubr.f32.gmra.mrb[0].mxu0 %v1059
        %v1150 = vpop.f32.mrb[0].mxu0
        %v1151 = vadd.f32 0.0, %v1150
        %v1152 = vpop.f32.mrb[0].mxu0
        %1153 = vmatprep.mubr.f32.mxu0 0.0
        %1154 = vmatmul.mubr.f32.gmra.mrb[0].mxu0 %v1062
        %v1155 = vpop.f32.mrb[0].mxu0
        %v1156 = vadd.f32 0.0, %v1155
        %v1157 = vpop.f32.mrb[0].mxu0
        %1158 = vmatprep.mubr.f32.mxu0 0.0
        %1159 = vmatmul.mubr.f32.gmra.mrb[0].mxu0 %v1065
        %v1160 = vpop.f32.mrb[0].mxu0
        %v1161 = vadd.f32 0.0, %v1160
        %v1162 = vpop.f32.mrb[0].mxu0
        %1163 = vmatprep.mubr.f32.mxu0 0.0
        %1164 = vmatmul.mubr.f32.gmra.mrb[0].mxu0 %v1068
        %v1165 = vpop.f32.mrb[0].mxu0
        %v1166 = vadd.f32 0.0, %v1165
        %v1167 = vpop.f32.mrb[0].mxu0
        %1168 = vmatprep.mubr.f32.mxu0 0.0
        %1169 = vmatmul.mubr.f32.gmra.mrb[0].mxu0 %v1071
        %v1170 = vpop.f32.mrb[0].mxu0
        %v1171 = vadd.f32 0.0, %v1170
        %v1172 = vpop.f32.mrb[0].mxu0
        %1173 = vmatprep.mubr.f32.mxu0 0.0
        %1174 = vmatmul.mubr.f32.gmra.mrb[0].mxu0 %v1074
        %v1175 = vpop.f32.mrb[0].mxu0
        %v1176 = vadd.f32 0.0, %v1175
        %v1177 = vpop.f32.mrb[0].mxu0
        %1178 = vmatprep.mubr.f32.mxu0 0.0
        %1179 = vmatmul.mubr.f32.gmra.mrb[0].mxu0 %v1077
        %v1180 = vpop.f32.mrb[0].mxu0
        %v1181 = vadd.f32 0.0, %v1180
        %v1182 = vpop.f32.mrb[0].mxu0
        %1183 = vdwg.mxu0
        %s1184 = scalar_lea.vmem [#allocation7], 256
        %v1185 = vld [vmem:[%s1184] sm:$0xff]
        %v1186 = vld [vmem:[%s1184 + $0x8] sm:$0xff]
        %v1187 = vld [vmem:[%s1184 + $0x10] sm:$0xff]
        %v1188 = vld [vmem:[%s1184 + $0x18] sm:$0xff]
        %v1189 = vld [vmem:[%s1184 + $0x20] sm:$0xff]
        %v1190 = vld [vmem:[%s1184 + $0x28] sm:$0xff]
        %v1191 = vld [vmem:[%s1184 + $0x30] sm:$0xff]
        %v1192 = vld [vmem:[%s1184 + $0x38] sm:$0xff]
        %v1193 = vld [vmem:[%s1184 + $0x40] sm:$0xff]
        %v1194 = vld [vmem:[%s1184 + $0x48] sm:$0xff]
        %v1195 = vld [vmem:[%s1184 + $0x50] sm:$0xff]
        %v1196 = vld [vmem:[%s1184 + $0x58] sm:$0xff]
        %v1197 = vld [vmem:[%s1184 + $0x60] sm:$0xff]
        %v1198 = vld [vmem:[%s1184 + $0x68] sm:$0xff]
        %v1199 = vld [vmem:[%s1184 + $0x70] sm:$0xff]
        %v1200 = vld [vmem:[%s1184 + $0x78] sm:$0xff]
        %1201 = vmatprep.subr.mxu0 0.0
        %1202 = vmatpush1.msra.mxu0 %v1185
        %1203 = vmatprep.subr.mxu0 0.0
        %1204 = vmatpush1.msra.mxu0 %v1186
        %1205 = vmatprep.subr.mxu0 0.0
        %1206 = vmatpush1.msra.mxu0 %v1187
        %1207 = vmatprep.subr.mxu0 0.0
        %1208 = vmatpush1.msra.mxu0 %v1188
        %1209 = vmatprep.subr.mxu0 0.0
        %1210 = vmatpush1.msra.mxu0 %v1189
        %1211 = vmatprep.subr.mxu0 0.0
        %1212 = vmatpush1.msra.mxu0 %v1190
        %1213 = vmatprep.subr.mxu0 0.0
        %1214 = vmatpush1.msra.mxu0 %v1191
        %1215 = vmatprep.subr.mxu0 0.0
        %1216 = vmatpush1.msra.mxu0 %v1192
        %1217 = vmatprep.subr.mxu0 0.0
        %1218 = vmatpush1.msra.mxu0 %v1193
        %1219 = vmatprep.subr.mxu0 0.0
        %1220 = vmatpush1.msra.mxu0 %v1194
        %1221 = vmatprep.subr.mxu0 0.0
        %1222 = vmatpush1.msra.mxu0 %v1195
        %1223 = vmatprep.subr.mxu0 0.0
        %1224 = vmatpush1.msra.mxu0 %v1196
        %1225 = vmatprep.subr.mxu0 0.0
        %1226 = vmatpush1.msra.mxu0 %v1197
        %1227 = vmatprep.subr.mxu0 0.0
        %1228 = vmatpush1.msra.mxu0 %v1198
        %1229 = vmatprep.subr.mxu0 0.0
        %1230 = vmatpush1.msra.mxu0 %v1199
        %1231 = vmatprep.subr.mxu0 0.0
        %1232 = vmatpush1.msra.mxu0 %v1200
        %1233 = vmatprep.subr.mxu0 0.0
        %1234 = vmatpush1.msra.mxu0 0.0
        %1235 = vmatprep.subr.mxu0 0.0
        %1236 = vmatpush1.msra.mxu0 0.0
        %1237 = vmatprep.subr.mxu0 0.0
        %1238 = vmatpush1.msra.mxu0 0.0
        %1239 = vmatprep.subr.mxu0 0.0
        %1240 = vmatpush1.msra.mxu0 0.0
        %1241 = vmatprep.subr.mxu0 0.0
        %1242 = vmatpush1.msra.mxu0 0.0
        %1243 = vmatprep.subr.mxu0 0.0
        %1244 = vmatpush1.msra.mxu0 0.0
        %1245 = vmatprep.subr.mxu0 0.0
        %1246 = vmatpush1.msra.mxu0 0.0
        %1247 = vmatprep.subr.mxu0 0.0
        %1248 = vmatpush1.msra.mxu0 0.0
        %1249 = vmatprep.subr.mxu0 0.0
        %1250 = vmatpush1.msra.mxu0 0.0
        %1251 = vmatprep.subr.mxu0 0.0
        %1252 = vmatpush1.msra.mxu0 0.0
        %1253 = vmatprep.subr.mxu0 0.0
        %1254 = vmatpush1.msra.mxu0 0.0
        %1255 = vmatprep.subr.mxu0 0.0
        %1256 = vmatpush1.msra.mxu0 0.0
        %1257 = vmatprep.subr.mxu0 0.0
        %1258 = vmatpush1.msra.mxu0 0.0
        %1259 = vmatprep.subr.mxu0 0.0
        %1260 = vmatpush1.msra.mxu0 0.0
        %1261 = vmatprep.subr.mxu0 0.0
        %1262 = vmatpush1.msra.mxu0 0.0
        %1263 = vmatprep.subr.mxu0 0.0
        %1264 = vmatpush1.msra.mxu0 0.0
        %1265 = vmatprep.mubr.f32.mxu0 0.0
        %1266 = vmatmul.mubr.f32.gmra.mrb[0].mxu0 %v1146
        %v1267 = vpop.f32.mrb[0].mxu0
        %v1268 = vadd.f32 0.0, %v1267
        %v1269 = vpop.f32.mrb[0].mxu0
        %1270 = vmatprep.mubr.f32.mxu0 0.0
        %1271 = vmatmul.mubr.f32.gmra.mrb[0].mxu0 %v1151
        %v1272 = vpop.f32.mrb[0].mxu0
        %v1273 = vadd.f32 0.0, %v1272
        %v1274 = vpop.f32.mrb[0].mxu0
        %1275 = vmatprep.mubr.f32.mxu0 0.0
        %1276 = vmatmul.mubr.f32.gmra.mrb[0].mxu0 %v1156
        %v1277 = vpop.f32.mrb[0].mxu0
        %v1278 = vadd.f32 0.0, %v1277
        %v1279 = vpop.f32.mrb[0].mxu0
        %1280 = vmatprep.mubr.f32.mxu0 0.0
        %1281 = vmatmul.mubr.f32.gmra.mrb[0].mxu0 %v1161
        %v1282 = vpop.f32.mrb[0].mxu0
        %v1283 = vadd.f32 0.0, %v1282
        %v1284 = vpop.f32.mrb[0].mxu0
        %1285 = vmatprep.mubr.f32.mxu0 0.0
        %1286 = vmatmul.mubr.f32.gmra.mrb[0].mxu0 %v1166
        %v1287 = vpop.f32.mrb[0].mxu0
        %v1288 = vadd.f32 0.0, %v1287
        %v1289 = vpop.f32.mrb[0].mxu0
        %1290 = vmatprep.mubr.f32.mxu0 0.0
        %1291 = vmatmul.mubr.f32.gmra.mrb[0].mxu0 %v1171
        %v1292 = vpop.f32.mrb[0].mxu0
        %v1293 = vadd.f32 0.0, %v1292
        %v1294 = vpop.f32.mrb[0].mxu0
        %1295 = vmatprep.mubr.f32.mxu0 0.0
        %1296 = vmatmul.mubr.f32.gmra.mrb[0].mxu0 %v1176
        %v1297 = vpop.f32.mrb[0].mxu0
        %v1298 = vadd.f32 0.0, %v1297
        %v1299 = vpop.f32.mrb[0].mxu0
        %1300 = vmatprep.mubr.f32.mxu0 0.0
        %1301 = vmatmul.mubr.f32.gmra.mrb[0].mxu0 %v1181
        %v1302 = vpop.f32.mrb[0].mxu0
        %v1303 = vadd.f32 0.0, %v1302
        %v1304 = vpop.f32.mrb[0].mxu0
        %1305 = vdwg.mxu0
        %v1306 = vadd.f32 %v1008, %v1268
        %v1307 = vadd.f32 %v1013, %v1273
        %v1308 = vadd.f32 %v1018, %v1278
        %v1309 = vadd.f32 %v1023, %v1283
        %v1310 = vadd.f32 %v1028, %v1288
        %v1311 = vadd.f32 %v1033, %v1293
        %v1312 = vadd.f32 %v1038, %v1298
        %v1313 = vadd.f32 %v1043, %v1303
        %s1314 = scalar_lea.vmem [#allocation5], 192
        %v1315 = vld [vmem:[%s1314] sm:$0xff]
        %v1316 = vld [vmem:[%s1314 + $0x8] sm:$0xff]
        %v1317 = vld [vmem:[%s1314 + $0x10] sm:$0xff]
        %v1318 = vld [vmem:[%s1314 + $0x18] sm:$0xff]
        %v1319 = vld [vmem:[%s1314 + $0x20] sm:$0xff]
        %v1320 = vld [vmem:[%s1314 + $0x28] sm:$0xff]
        %v1321 = vld [vmem:[%s1314 + $0x30] sm:$0xff]
        %v1322 = vld [vmem:[%s1314 + $0x38] sm:$0xff]
        %v1324 = vsel %vm535, %v1315, 0
        %v1327 = vsel %vm535, %v1316, 0
        %v1330 = vsel %vm535, %v1317, 0
        %v1333 = vsel %vm535, %v1318, 0
        %v1336 = vsel %vm535, %v1319, 0
        %v1339 = vsel %vm535, %v1320, 0
        %v1342 = vsel %vm535, %v1321, 0
        %v1345 = vsel %vm535, %v1322, 0
        %1347 = vmatprep.subr.mxu0 0.0
        %1348 = vmatpush1.msra.mxu0 %v519
        %1349 = vmatprep.subr.mxu0 0.0
        %1350 = vmatpush1.msra.mxu0 %v520
        %1351 = vmatprep.subr.mxu0 0.0
        %1352 = vmatpush1.msra.mxu0 %v521
        %1353 = vmatprep.subr.mxu0 0.0
        %1354 = vmatpush1.msra.mxu0 %v522
        %1355 = vmatprep.subr.mxu0 0.0
        %1356 = vmatpush1.msra.mxu0 %v523
        %1357 = vmatprep.subr.mxu0 0.0
        %1358 = vmatpush1.msra.mxu0 %v524
        %1359 = vmatprep.subr.mxu0 0.0
        %1360 = vmatpush1.msra.mxu0 %v525
        %1361 = vmatprep.subr.mxu0 0.0
        %1362 = vmatpush1.msra.mxu0 %v526
        %1363 = vmatprep.subr.mxu0 0.0
        %1364 = vmatpush1.msra.mxu0 0.0
        %1365 = vmatprep.subr.mxu0 0.0
        %1366 = vmatpush1.msra.mxu0 0.0
        %1367 = vmatprep.subr.mxu0 0.0
        %1368 = vmatpush1.msra.mxu0 0.0
        %1369 = vmatprep.subr.mxu0 0.0
        %1370 = vmatpush1.msra.mxu0 0.0
        %1371 = vmatprep.subr.mxu0 0.0
        %1372 = vmatpush1.msra.mxu0 0.0
        %1373 = vmatprep.subr.mxu0 0.0
        %1374 = vmatpush1.msra.mxu0 0.0
        %1375 = vmatprep.subr.mxu0 0.0
        %1376 = vmatpush1.msra.mxu0 0.0
        %1377 = vmatprep.subr.mxu0 0.0
        %1378 = vmatpush1.msra.mxu0 0.0
        %1379 = vmatprep.subr.mxu0 0.0
        %1380 = vmatpush1.msra.mxu0 0.0
        %1381 = vmatprep.subr.mxu0 0.0
        %1382 = vmatpush1.msra.mxu0 0.0
        %1383 = vmatprep.subr.mxu0 0.0
        %1384 = vmatpush1.msra.mxu0 0.0
        %1385 = vmatprep.subr.mxu0 0.0
        %1386 = vmatpush1.msra.mxu0 0.0
        %1387 = vmatprep.subr.mxu0 0.0
        %1388 = vmatpush1.msra.mxu0 0.0
        %1389 = vmatprep.subr.mxu0 0.0
        %1390 = vmatpush1.msra.mxu0 0.0
        %1391 = vmatprep.subr.mxu0 0.0
        %1392 = vmatpush1.msra.mxu0 0.0
        %1393 = vmatprep.subr.mxu0 0.0
        %1394 = vmatpush1.msra.mxu0 0.0
        %1395 = vmatprep.subr.mxu0 0.0
        %1396 = vmatpush1.msra.mxu0 0.0
        %1397 = vmatprep.subr.mxu0 0.0
        %1398 = vmatpush1.msra.mxu0 0.0
        %1399 = vmatprep.subr.mxu0 0.0
        %1400 = vmatpush1.msra.mxu0 0.0
        %1401 = vmatprep.subr.mxu0 0.0
        %1402 = vmatpush1.msra.mxu0 0.0
        %1403 = vmatprep.subr.mxu0 0.0
        %1404 = vmatpush1.msra.mxu0 0.0
        %1405 = vmatprep.subr.mxu0 0.0
        %1406 = vmatpush1.msra.mxu0 0.0
        %1407 = vmatprep.subr.mxu0 0.0
        %1408 = vmatpush1.msra.mxu0 0.0
        %1409 = vmatprep.subr.mxu0 0.0
        %1410 = vmatpush1.msra.mxu0 0.0
        %1411 = vmatprep.mubr.f32.mxu0 0.0
        %1412 = vmatmul.mubr.f32.gmra.mrb[0].mxu0 %v1324
        %v1413 = vpop.f32.mrb[0].mxu0
        %v1414 = vadd.f32 0.0, %v1413
        %v1415 = vpop.f32.mrb[0].mxu0
        %1416 = vmatprep.mubr.f32.mxu0 0.0
        %1417 = vmatmul.mubr.f32.gmra.mrb[0].mxu0 %v1327
        %v1418 = vpop.f32.mrb[0].mxu0
        %v1419 = vadd.f32 0.0, %v1418
        %v1420 = vpop.f32.mrb[0].mxu0
        %1421 = vmatprep.mubr.f32.mxu0 0.0
        %1422 = vmatmul.mubr.f32.gmra.mrb[0].mxu0 %v1330
        %v1423 = vpop.f32.mrb[0].mxu0
        %v1424 = vadd.f32 0.0, %v1423
        %v1425 = vpop.f32.mrb[0].mxu0
        %1426 = vmatprep.mubr.f32.mxu0 0.0
        %1427 = vmatmul.mubr.f32.gmra.mrb[0].mxu0 %v1333
        %v1428 = vpop.f32.mrb[0].mxu0
        %v1429 = vadd.f32 0.0, %v1428
        %v1430 = vpop.f32.mrb[0].mxu0
        %1431 = vmatprep.mubr.f32.mxu0 0.0
        %1432 = vmatmul.mubr.f32.gmra.mrb[0].mxu0 %v1336
        %v1433 = vpop.f32.mrb[0].mxu0
        %v1434 = vadd.f32 0.0, %v1433
        %v1435 = vpop.f32.mrb[0].mxu0
        %1436 = vmatprep.mubr.f32.mxu0 0.0
        %1437 = vmatmul.mubr.f32.gmra.mrb[0].mxu0 %v1339
        %v1438 = vpop.f32.mrb[0].mxu0
        %v1439 = vadd.f32 0.0, %v1438
        %v1440 = vpop.f32.mrb[0].mxu0
        %1441 = vmatprep.mubr.f32.mxu0 0.0
        %1442 = vmatmul.mubr.f32.gmra.mrb[0].mxu0 %v1342
        %v1443 = vpop.f32.mrb[0].mxu0
        %v1444 = vadd.f32 0.0, %v1443
        %v1445 = vpop.f32.mrb[0].mxu0
        %1446 = vmatprep.mubr.f32.mxu0 0.0
        %1447 = vmatmul.mubr.f32.gmra.mrb[0].mxu0 %v1345
        %v1448 = vpop.f32.mrb[0].mxu0
        %v1449 = vadd.f32 0.0, %v1448
        %v1450 = vpop.f32.mrb[0].mxu0
        %1451 = vdwg.mxu0
        %s1452 = scalar_lea.vmem [#allocation7], 384
        %v1453 = vld [vmem:[%s1452] sm:$0xff]
        %v1454 = vld [vmem:[%s1452 + $0x8] sm:$0xff]
        %v1455 = vld [vmem:[%s1452 + $0x10] sm:$0xff]
        %v1456 = vld [vmem:[%s1452 + $0x18] sm:$0xff]
        %v1457 = vld [vmem:[%s1452 + $0x20] sm:$0xff]
        %v1458 = vld [vmem:[%s1452 + $0x28] sm:$0xff]
        %v1459 = vld [vmem:[%s1452 + $0x30] sm:$0xff]
        %v1460 = vld [vmem:[%s1452 + $0x38] sm:$0xff]
        %v1461 = vld [vmem:[%s1452 + $0x40] sm:$0xff]
        %v1462 = vld [vmem:[%s1452 + $0x48] sm:$0xff]
        %v1463 = vld [vmem:[%s1452 + $0x50] sm:$0xff]
        %v1464 = vld [vmem:[%s1452 + $0x58] sm:$0xff]
        %v1465 = vld [vmem:[%s1452 + $0x60] sm:$0xff]
        %v1466 = vld [vmem:[%s1452 + $0x68] sm:$0xff]
        %v1467 = vld [vmem:[%s1452 + $0x70] sm:$0xff]
        %v1468 = vld [vmem:[%s1452 + $0x78] sm:$0xff]
        %1469 = vmatprep.subr.mxu0 0.0
        %1470 = vmatpush1.msra.mxu0 %v1453
        %1471 = vmatprep.subr.mxu0 0.0
        %1472 = vmatpush1.msra.mxu0 %v1454
        %1473 = vmatprep.subr.mxu0 0.0
        %1474 = vmatpush1.msra.mxu0 %v1455
        %1475 = vmatprep.subr.mxu0 0.0
        %1476 = vmatpush1.msra.mxu0 %v1456
        %1477 = vmatprep.subr.mxu0 0.0
        %1478 = vmatpush1.msra.mxu0 %v1457
        %1479 = vmatprep.subr.mxu0 0.0
        %1480 = vmatpush1.msra.mxu0 %v1458
        %1481 = vmatprep.subr.mxu0 0.0
        %1482 = vmatpush1.msra.mxu0 %v1459
        %1483 = vmatprep.subr.mxu0 0.0
        %1484 = vmatpush1.msra.mxu0 %v1460
        %1485 = vmatprep.subr.mxu0 0.0
        %1486 = vmatpush1.msra.mxu0 %v1461
        %1487 = vmatprep.subr.mxu0 0.0
        %1488 = vmatpush1.msra.mxu0 %v1462
        %1489 = vmatprep.subr.mxu0 0.0
        %1490 = vmatpush1.msra.mxu0 %v1463
        %1491 = vmatprep.subr.mxu0 0.0
        %1492 = vmatpush1.msra.mxu0 %v1464
        %1493 = vmatprep.subr.mxu0 0.0
        %1494 = vmatpush1.msra.mxu0 %v1465
        %1495 = vmatprep.subr.mxu0 0.0
        %1496 = vmatpush1.msra.mxu0 %v1466
        %1497 = vmatprep.subr.mxu0 0.0
        %1498 = vmatpush1.msra.mxu0 %v1467
        %1499 = vmatprep.subr.mxu0 0.0
        %1500 = vmatpush1.msra.mxu0 %v1468
        %1501 = vmatprep.subr.mxu0 0.0
        %1502 = vmatpush1.msra.mxu0 0.0
        %1503 = vmatprep.subr.mxu0 0.0
        %1504 = vmatpush1.msra.mxu0 0.0
        %1505 = vmatprep.subr.mxu0 0.0
        %1506 = vmatpush1.msra.mxu0 0.0
        %1507 = vmatprep.subr.mxu0 0.0
        %1508 = vmatpush1.msra.mxu0 0.0
        %1509 = vmatprep.subr.mxu0 0.0
        %1510 = vmatpush1.msra.mxu0 0.0
        %1511 = vmatprep.subr.mxu0 0.0
        %1512 = vmatpush1.msra.mxu0 0.0
        %1513 = vmatprep.subr.mxu0 0.0
        %1514 = vmatpush1.msra.mxu0 0.0
        %1515 = vmatprep.subr.mxu0 0.0
        %1516 = vmatpush1.msra.mxu0 0.0
        %1517 = vmatprep.subr.mxu0 0.0
        %1518 = vmatpush1.msra.mxu0 0.0
        %1519 = vmatprep.subr.mxu0 0.0
        %1520 = vmatpush1.msra.mxu0 0.0
        %1521 = vmatprep.subr.mxu0 0.0
        %1522 = vmatpush1.msra.mxu0 0.0
        %1523 = vmatprep.subr.mxu0 0.0
        %1524 = vmatpush1.msra.mxu0 0.0
        %1525 = vmatprep.subr.mxu0 0.0
        %1526 = vmatpush1.msra.mxu0 0.0
        %1527 = vmatprep.subr.mxu0 0.0
        %1528 = vmatpush1.msra.mxu0 0.0
        %1529 = vmatprep.subr.mxu0 0.0
        %1530 = vmatpush1.msra.mxu0 0.0
        %1531 = vmatprep.subr.mxu0 0.0
        %1532 = vmatpush1.msra.mxu0 0.0
        %1533 = vmatprep.mubr.f32.mxu0 0.0
        %1534 = vmatmul.mubr.f32.gmra.mrb[0].mxu0 %v1414
        %v1535 = vpop.f32.mrb[0].mxu0
        %v1536 = vadd.f32 0.0, %v1535
        %v1537 = vpop.f32.mrb[0].mxu0
        %1538 = vmatprep.mubr.f32.mxu0 0.0
        %1539 = vmatmul.mubr.f32.gmra.mrb[0].mxu0 %v1419
        %v1540 = vpop.f32.mrb[0].mxu0
        %v1541 = vadd.f32 0.0, %v1540
        %v1542 = vpop.f32.mrb[0].mxu0
        %1543 = vmatprep.mubr.f32.mxu0 0.0
        %1544 = vmatmul.mubr.f32.gmra.mrb[0].mxu0 %v1424
        %v1545 = vpop.f32.mrb[0].mxu0
        %v1546 = vadd.f32 0.0, %v1545
        %v1547 = vpop.f32.mrb[0].mxu0
        %1548 = vmatprep.mubr.f32.mxu0 0.0
        %1549 = vmatmul.mubr.f32.gmra.mrb[0].mxu0 %v1429
        %v1550 = vpop.f32.mrb[0].mxu0
        %v1551 = vadd.f32 0.0, %v1550
        %v1552 = vpop.f32.mrb[0].mxu0
        %1553 = vmatprep.mubr.f32.mxu0 0.0
        %1554 = vmatmul.mubr.f32.gmra.mrb[0].mxu0 %v1434
        %v1555 = vpop.f32.mrb[0].mxu0
        %v1556 = vadd.f32 0.0, %v1555
        %v1557 = vpop.f32.mrb[0].mxu0
        %1558 = vmatprep.mubr.f32.mxu0 0.0
        %1559 = vmatmul.mubr.f32.gmra.mrb[0].mxu0 %v1439
        %v1560 = vpop.f32.mrb[0].mxu0
        %v1561 = vadd.f32 0.0, %v1560
        %v1562 = vpop.f32.mrb[0].mxu0
        %1563 = vmatprep.mubr.f32.mxu0 0.0
        %1564 = vmatmul.mubr.f32.gmra.mrb[0].mxu0 %v1444
        %v1565 = vpop.f32.mrb[0].mxu0
        %v1566 = vadd.f32 0.0, %v1565
        %v1567 = vpop.f32.mrb[0].mxu0
        %1568 = vmatprep.mubr.f32.mxu0 0.0
        %1569 = vmatmul.mubr.f32.gmra.mrb[0].mxu0 %v1449
        %v1570 = vpop.f32.mrb[0].mxu0
        %v1571 = vadd.f32 0.0, %v1570
        %v1572 = vpop.f32.mrb[0].mxu0
        %1573 = vdwg.mxu0
        %v1574 = vadd.f32 %v1306, %v1536
        %v1575 = vadd.f32 %v1307, %v1541
        %v1576 = vadd.f32 %v1308, %v1546
        %v1577 = vadd.f32 %v1309, %v1551
        %v1578 = vadd.f32 %v1310, %v1556
        %v1579 = vadd.f32 %v1311, %v1561
        %v1580 = vadd.f32 %v1312, %v1566
        %v1581 = vadd.f32 %v1313, %v1571
        %s1582 = scalar_lea.vmem [#allocation5], 256
        %v1583 = vld [vmem:[%s1582] sm:$0xff]
        %v1584 = vld [vmem:[%s1582 + $0x8] sm:$0xff]
        %v1585 = vld [vmem:[%s1582 + $0x10] sm:$0xff]
        %v1586 = vld [vmem:[%s1582 + $0x18] sm:$0xff]
        %v1587 = vld [vmem:[%s1582 + $0x20] sm:$0xff]
        %v1588 = vld [vmem:[%s1582 + $0x28] sm:$0xff]
        %v1589 = vld [vmem:[%s1582 + $0x30] sm:$0xff]
        %v1590 = vld [vmem:[%s1582 + $0x38] sm:$0xff]
        %v1592 = vsel %vm535, %v1583, 0
        %v1595 = vsel %vm535, %v1584, 0
        %v1598 = vsel %vm535, %v1585, 0
        %v1601 = vsel %vm535, %v1586, 0
        %v1604 = vsel %vm535, %v1587, 0
        %v1607 = vsel %vm535, %v1588, 0
        %v1610 = vsel %vm535, %v1589, 0
        %v1613 = vsel %vm535, %v1590, 0
        %1615 = vmatprep.subr.mxu0 0.0
        %1616 = vmatpush1.msra.mxu0 %v519
        %1617 = vmatprep.subr.mxu0 0.0
        %1618 = vmatpush1.msra.mxu0 %v520
        %1619 = vmatprep.subr.mxu0 0.0
        %1620 = vmatpush1.msra.mxu0 %v521
        %1621 = vmatprep.subr.mxu0 0.0
        %1622 = vmatpush1.msra.mxu0 %v522
        %1623 = vmatprep.subr.mxu0 0.0
        %1624 = vmatpush1.msra.mxu0 %v523
        %1625 = vmatprep.subr.mxu0 0.0
        %1626 = vmatpush1.msra.mxu0 %v524
        %1627 = vmatprep.subr.mxu0 0.0
        %1628 = vmatpush1.msra.mxu0 %v525
        %1629 = vmatprep.subr.mxu0 0.0
        %1630 = vmatpush1.msra.mxu0 %v526
        %1631 = vmatprep.subr.mxu0 0.0
        %1632 = vmatpush1.msra.mxu0 0.0
        %1633 = vmatprep.subr.mxu0 0.0
        %1634 = vmatpush1.msra.mxu0 0.0
        %1635 = vmatprep.subr.mxu0 0.0
        %1636 = vmatpush1.msra.mxu0 0.0
        %1637 = vmatprep.subr.mxu0 0.0
        %1638 = vmatpush1.msra.mxu0 0.0
        %1639 = vmatprep.subr.mxu0 0.0
        %1640 = vmatpush1.msra.mxu0 0.0
        %1641 = vmatprep.subr.mxu0 0.0
        %1642 = vmatpush1.msra.mxu0 0.0
        %1643 = vmatprep.subr.mxu0 0.0
        %1644 = vmatpush1.msra.mxu0 0.0
        %1645 = vmatprep.subr.mxu0 0.0
        %1646 = vmatpush1.msra.mxu0 0.0
        %1647 = vmatprep.subr.mxu0 0.0
        %1648 = vmatpush1.msra.mxu0 0.0
        %1649 = vmatprep.subr.mxu0 0.0
        %1650 = vmatpush1.msra.mxu0 0.0
        %1651 = vmatprep.subr.mxu0 0.0
        %1652 = vmatpush1.msra.mxu0 0.0
        %1653 = vmatprep.subr.mxu0 0.0
        %1654 = vmatpush1.msra.mxu0 0.0
        %1655 = vmatprep.subr.mxu0 0.0
        %1656 = vmatpush1.msra.mxu0 0.0
        %1657 = vmatprep.subr.mxu0 0.0
        %1658 = vmatpush1.msra.mxu0 0.0
        %1659 = vmatprep.subr.mxu0 0.0
        %1660 = vmatpush1.msra.mxu0 0.0
        %1661 = vmatprep.subr.mxu0 0.0
        %1662 = vmatpush1.msra.mxu0 0.0
        %1663 = vmatprep.subr.mxu0 0.0
        %1664 = vmatpush1.msra.mxu0 0.0
        %1665 = vmatprep.subr.mxu0 0.0
        %1666 = vmatpush1.msra.mxu0 0.0
        %1667 = vmatprep.subr.mxu0 0.0
        %1668 = vmatpush1.msra.mxu0 0.0
        %1669 = vmatprep.subr.mxu0 0.0
        %1670 = vmatpush1.msra.mxu0 0.0
        %1671 = vmatprep.subr.mxu0 0.0
        %1672 = vmatpush1.msra.mxu0 0.0
        %1673 = vmatprep.subr.mxu0 0.0
        %1674 = vmatpush1.msra.mxu0 0.0
        %1675 = vmatprep.subr.mxu0 0.0
        %1676 = vmatpush1.msra.mxu0 0.0
        %1677 = vmatprep.subr.mxu0 0.0
        %1678 = vmatpush1.msra.mxu0 0.0
        %1679 = vmatprep.mubr.f32.mxu0 0.0
        %1680 = vmatmul.mubr.f32.gmra.mrb[0].mxu0 %v1592
        %v1681 = vpop.f32.mrb[0].mxu0
        %v1682 = vadd.f32 0.0, %v1681
        %v1683 = vpop.f32.mrb[0].mxu0
        %1684 = vmatprep.mubr.f32.mxu0 0.0
        %1685 = vmatmul.mubr.f32.gmra.mrb[0].mxu0 %v1595
        %v1686 = vpop.f32.mrb[0].mxu0
        %v1687 = vadd.f32 0.0, %v1686
        %v1688 = vpop.f32.mrb[0].mxu0
        %1689 = vmatprep.mubr.f32.mxu0 0.0
        %1690 = vmatmul.mubr.f32.gmra.mrb[0].mxu0 %v1598
        %v1691 = vpop.f32.mrb[0].mxu0
        %v1692 = vadd.f32 0.0, %v1691
        %v1693 = vpop.f32.mrb[0].mxu0
        %1694 = vmatprep.mubr.f32.mxu0 0.0
        %1695 = vmatmul.mubr.f32.gmra.mrb[0].mxu0 %v1601
        %v1696 = vpop.f32.mrb[0].mxu0
        %v1697 = vadd.f32 0.0, %v1696
        %v1698 = vpop.f32.mrb[0].mxu0
        %1699 = vmatprep.mubr.f32.mxu0 0.0
        %1700 = vmatmul.mubr.f32.gmra.mrb[0].mxu0 %v1604
        %v1701 = vpop.f32.mrb[0].mxu0
        %v1702 = vadd.f32 0.0, %v1701
        %v1703 = vpop.f32.mrb[0].mxu0
        %1704 = vmatprep.mubr.f32.mxu0 0.0
        %1705 = vmatmul.mubr.f32.gmra.mrb[0].mxu0 %v1607
        %v1706 = vpop.f32.mrb[0].mxu0
        %v1707 = vadd.f32 0.0, %v1706
        %v1708 = vpop.f32.mrb[0].mxu0
        %1709 = vmatprep.mubr.f32.mxu0 0.0
        %1710 = vmatmul.mubr.f32.gmra.mrb[0].mxu0 %v1610
        %v1711 = vpop.f32.mrb[0].mxu0
        %v1712 = vadd.f32 0.0, %v1711
        %v1713 = vpop.f32.mrb[0].mxu0
        %1714 = vmatprep.mubr.f32.mxu0 0.0
        %1715 = vmatmul.mubr.f32.gmra.mrb[0].mxu0 %v1613
        %v1716 = vpop.f32.mrb[0].mxu0
        %v1717 = vadd.f32 0.0, %v1716
        %v1718 = vpop.f32.mrb[0].mxu0
        %1719 = vdwg.mxu0
        %s1720 = scalar_lea.vmem [#allocation7], 512
        %v1721 = vld [vmem:[%s1720] sm:$0xff]
        %v1722 = vld [vmem:[%s1720 + $0x8] sm:$0xff]
        %v1723 = vld [vmem:[%s1720 + $0x10] sm:$0xff]
        %v1724 = vld [vmem:[%s1720 + $0x18] sm:$0xff]
        %v1725 = vld [vmem:[%s1720 + $0x20] sm:$0xff]
        %v1726 = vld [vmem:[%s1720 + $0x28] sm:$0xff]
        %v1727 = vld [vmem:[%s1720 + $0x30] sm:$0xff]
        %v1728 = vld [vmem:[%s1720 + $0x38] sm:$0xff]
        %v1729 = vld [vmem:[%s1720 + $0x40] sm:$0xff]
        %v1730 = vld [vmem:[%s1720 + $0x48] sm:$0xff]
        %v1731 = vld [vmem:[%s1720 + $0x50] sm:$0xff]
        %v1732 = vld [vmem:[%s1720 + $0x58] sm:$0xff]
        %v1733 = vld [vmem:[%s1720 + $0x60] sm:$0xff]
        %v1734 = vld [vmem:[%s1720 + $0x68] sm:$0xff]
        %v1735 = vld [vmem:[%s1720 + $0x70] sm:$0xff]
        %v1736 = vld [vmem:[%s1720 + $0x78] sm:$0xff]
        %1737 = vmatprep.subr.mxu0 0.0
        %1738 = vmatpush1.msra.mxu0 %v1721
        %1739 = vmatprep.subr.mxu0 0.0
        %1740 = vmatpush1.msra.mxu0 %v1722
        %1741 = vmatprep.subr.mxu0 0.0
        %1742 = vmatpush1.msra.mxu0 %v1723
        %1743 = vmatprep.subr.mxu0 0.0
        %1744 = vmatpush1.msra.mxu0 %v1724
        %1745 = vmatprep.subr.mxu0 0.0
        %1746 = vmatpush1.msra.mxu0 %v1725
        %1747 = vmatprep.subr.mxu0 0.0
        %1748 = vmatpush1.msra.mxu0 %v1726
        %1749 = vmatprep.subr.mxu0 0.0
        %1750 = vmatpush1.msra.mxu0 %v1727
        %1751 = vmatprep.subr.mxu0 0.0
        %1752 = vmatpush1.msra.mxu0 %v1728
        %1753 = vmatprep.subr.mxu0 0.0
        %1754 = vmatpush1.msra.mxu0 %v1729
        %1755 = vmatprep.subr.mxu0 0.0
        %1756 = vmatpush1.msra.mxu0 %v1730
        %1757 = vmatprep.subr.mxu0 0.0
        %1758 = vmatpush1.msra.mxu0 %v1731
        %1759 = vmatprep.subr.mxu0 0.0
        %1760 = vmatpush1.msra.mxu0 %v1732
        %1761 = vmatprep.subr.mxu0 0.0
        %1762 = vmatpush1.msra.mxu0 %v1733
        %1763 = vmatprep.subr.mxu0 0.0
        %1764 = vmatpush1.msra.mxu0 %v1734
        %1765 = vmatprep.subr.mxu0 0.0
        %1766 = vmatpush1.msra.mxu0 %v1735
        %1767 = vmatprep.subr.mxu0 0.0
        %1768 = vmatpush1.msra.mxu0 %v1736
        %1769 = vmatprep.subr.mxu0 0.0
        %1770 = vmatpush1.msra.mxu0 0.0
        %1771 = vmatprep.subr.mxu0 0.0
        %1772 = vmatpush1.msra.mxu0 0.0
        %1773 = vmatprep.subr.mxu0 0.0
        %1774 = vmatpush1.msra.mxu0 0.0
        %1775 = vmatprep.subr.mxu0 0.0
        %1776 = vmatpush1.msra.mxu0 0.0
        %1777 = vmatprep.subr.mxu0 0.0
        %1778 = vmatpush1.msra.mxu0 0.0
        %1779 = vmatprep.subr.mxu0 0.0
        %1780 = vmatpush1.msra.mxu0 0.0
        %1781 = vmatprep.subr.mxu0 0.0
        %1782 = vmatpush1.msra.mxu0 0.0
        %1783 = vmatprep.subr.mxu0 0.0
        %1784 = vmatpush1.msra.mxu0 0.0
        %1785 = vmatprep.subr.mxu0 0.0
        %1786 = vmatpush1.msra.mxu0 0.0
        %1787 = vmatprep.subr.mxu0 0.0
        %1788 = vmatpush1.msra.mxu0 0.0
        %1789 = vmatprep.subr.mxu0 0.0
        %1790 = vmatpush1.msra.mxu0 0.0
        %1791 = vmatprep.subr.mxu0 0.0
        %1792 = vmatpush1.msra.mxu0 0.0
        %1793 = vmatprep.subr.mxu0 0.0
        %1794 = vmatpush1.msra.mxu0 0.0
        %1795 = vmatprep.subr.mxu0 0.0
        %1796 = vmatpush1.msra.mxu0 0.0
        %1797 = vmatprep.subr.mxu0 0.0
        %1798 = vmatpush1.msra.mxu0 0.0
        %1799 = vmatprep.subr.mxu0 0.0
        %1800 = vmatpush1.msra.mxu0 0.0
        %1801 = vmatprep.mubr.f32.mxu0 0.0
        %1802 = vmatmul.mubr.f32.gmra.mrb[0].mxu0 %v1682
        %v1803 = vpop.f32.mrb[0].mxu0
        %v1804 = vadd.f32 0.0, %v1803
        %v1805 = vpop.f32.mrb[0].mxu0
        %1806 = vmatprep.mubr.f32.mxu0 0.0
        %1807 = vmatmul.mubr.f32.gmra.mrb[0].mxu0 %v1687
        %v1808 = vpop.f32.mrb[0].mxu0
        %v1809 = vadd.f32 0.0, %v1808
        %v1810 = vpop.f32.mrb[0].mxu0
        %1811 = vmatprep.mubr.f32.mxu0 0.0
        %1812 = vmatmul.mubr.f32.gmra.mrb[0].mxu0 %v1692
        %v1813 = vpop.f32.mrb[0].mxu0
        %v1814 = vadd.f32 0.0, %v1813
        %v1815 = vpop.f32.mrb[0].mxu0
        %1816 = vmatprep.mubr.f32.mxu0 0.0
        %1817 = vmatmul.mubr.f32.gmra.mrb[0].mxu0 %v1697
        %v1818 = vpop.f32.mrb[0].mxu0
        %v1819 = vadd.f32 0.0, %v1818
        %v1820 = vpop.f32.mrb[0].mxu0
        %1821 = vmatprep.mubr.f32.mxu0 0.0
        %1822 = vmatmul.mubr.f32.gmra.mrb[0].mxu0 %v1702
        %v1823 = vpop.f32.mrb[0].mxu0
        %v1824 = vadd.f32 0.0, %v1823
        %v1825 = vpop.f32.mrb[0].mxu0
        %1826 = vmatprep.mubr.f32.mxu0 0.0
        %1827 = vmatmul.mubr.f32.gmra.mrb[0].mxu0 %v1707
        %v1828 = vpop.f32.mrb[0].mxu0
        %v1829 = vadd.f32 0.0, %v1828
        %v1830 = vpop.f32.mrb[0].mxu0
        %1831 = vmatprep.mubr.f32.mxu0 0.0
        %1832 = vmatmul.mubr.f32.gmra.mrb[0].mxu0 %v1712
        %v1833 = vpop.f32.mrb[0].mxu0
        %v1834 = vadd.f32 0.0, %v1833
        %v1835 = vpop.f32.mrb[0].mxu0
        %1836 = vmatprep.mubr.f32.mxu0 0.0
        %1837 = vmatmul.mubr.f32.gmra.mrb[0].mxu0 %v1717
        %v1838 = vpop.f32.mrb[0].mxu0
        %v1839 = vadd.f32 0.0, %v1838
        %v1840 = vpop.f32.mrb[0].mxu0
        %1841 = vdwg.mxu0
        %v1842 = vadd.f32 %v1574, %v1804
        %v1843 = vadd.f32 %v1575, %v1809
        %v1844 = vadd.f32 %v1576, %v1814
        %v1845 = vadd.f32 %v1577, %v1819
        %v1846 = vadd.f32 %v1578, %v1824
        %v1847 = vadd.f32 %v1579, %v1829
        %v1848 = vadd.f32 %v1580, %v1834
        %v1849 = vadd.f32 %v1581, %v1839
        %s1850 = scalar_lea.vmem [#allocation5], 320
        %v1851 = vld [vmem:[%s1850] sm:$0xff]
        %v1852 = vld [vmem:[%s1850 + $0x8] sm:$0xff]
        %v1853 = vld [vmem:[%s1850 + $0x10] sm:$0xff]
        %v1854 = vld [vmem:[%s1850 + $0x18] sm:$0xff]
        %v1855 = vld [vmem:[%s1850 + $0x20] sm:$0xff]
        %v1856 = vld [vmem:[%s1850 + $0x28] sm:$0xff]
        %v1857 = vld [vmem:[%s1850 + $0x30] sm:$0xff]
        %v1858 = vld [vmem:[%s1850 + $0x38] sm:$0xff]
        %v1860 = vsel %vm535, %v1851, 0
        %v1863 = vsel %vm535, %v1852, 0
        %v1866 = vsel %vm535, %v1853, 0
        %v1869 = vsel %vm535, %v1854, 0
        %v1872 = vsel %vm535, %v1855, 0
        %v1875 = vsel %vm535, %v1856, 0
        %v1878 = vsel %vm535, %v1857, 0
        %v1881 = vsel %vm535, %v1858, 0
        %1883 = vmatprep.subr.mxu0 0.0
        %1884 = vmatpush1.msra.mxu0 %v519
        %1885 = vmatprep.subr.mxu0 0.0
        %1886 = vmatpush1.msra.mxu0 %v520
        %1887 = vmatprep.subr.mxu0 0.0
        %1888 = vmatpush1.msra.mxu0 %v521
        %1889 = vmatprep.subr.mxu0 0.0
        %1890 = vmatpush1.msra.mxu0 %v522
        %1891 = vmatprep.subr.mxu0 0.0
        %1892 = vmatpush1.msra.mxu0 %v523
        %1893 = vmatprep.subr.mxu0 0.0
        %1894 = vmatpush1.msra.mxu0 %v524
        %1895 = vmatprep.subr.mxu0 0.0
        %1896 = vmatpush1.msra.mxu0 %v525
        %1897 = vmatprep.subr.mxu0 0.0
        %1898 = vmatpush1.msra.mxu0 %v526
        %1899 = vmatprep.subr.mxu0 0.0
        %1900 = vmatpush1.msra.mxu0 0.0
        %1901 = vmatprep.subr.mxu0 0.0
        %1902 = vmatpush1.msra.mxu0 0.0
        %1903 = vmatprep.subr.mxu0 0.0
        %1904 = vmatpush1.msra.mxu0 0.0
        %1905 = vmatprep.subr.mxu0 0.0
        %1906 = vmatpush1.msra.mxu0 0.0
        %1907 = vmatprep.subr.mxu0 0.0
        %1908 = vmatpush1.msra.mxu0 0.0
        %1909 = vmatprep.subr.mxu0 0.0
        %1910 = vmatpush1.msra.mxu0 0.0
        %1911 = vmatprep.subr.mxu0 0.0
        %1912 = vmatpush1.msra.mxu0 0.0
        %1913 = vmatprep.subr.mxu0 0.0
        %1914 = vmatpush1.msra.mxu0 0.0
        %1915 = vmatprep.subr.mxu0 0.0
        %1916 = vmatpush1.msra.mxu0 0.0
        %1917 = vmatprep.subr.mxu0 0.0
        %1918 = vmatpush1.msra.mxu0 0.0
        %1919 = vmatprep.subr.mxu0 0.0
        %1920 = vmatpush1.msra.mxu0 0.0
        %1921 = vmatprep.subr.mxu0 0.0
        %1922 = vmatpush1.msra.mxu0 0.0
        %1923 = vmatprep.subr.mxu0 0.0
        %1924 = vmatpush1.msra.mxu0 0.0
        %1925 = vmatprep.subr.mxu0 0.0
        %1926 = vmatpush1.msra.mxu0 0.0
        %1927 = vmatprep.subr.mxu0 0.0
        %1928 = vmatpush1.msra.mxu0 0.0
        %1929 = vmatprep.subr.mxu0 0.0
        %1930 = vmatpush1.msra.mxu0 0.0
        %1931 = vmatprep.subr.mxu0 0.0
        %1932 = vmatpush1.msra.mxu0 0.0
        %1933 = vmatprep.subr.mxu0 0.0
        %1934 = vmatpush1.msra.mxu0 0.0
        %1935 = vmatprep.subr.mxu0 0.0
        %1936 = vmatpush1.msra.mxu0 0.0
        %1937 = vmatprep.subr.mxu0 0.0
        %1938 = vmatpush1.msra.mxu0 0.0
        %1939 = vmatprep.subr.mxu0 0.0
        %1940 = vmatpush1.msra.mxu0 0.0
        %1941 = vmatprep.subr.mxu0 0.0
        %1942 = vmatpush1.msra.mxu0 0.0
        %1943 = vmatprep.subr.mxu0 0.0
        %1944 = vmatpush1.msra.mxu0 0.0
        %1945 = vmatprep.subr.mxu0 0.0
        %1946 = vmatpush1.msra.mxu0 0.0
        %1947 = vmatprep.mubr.f32.mxu0 0.0
        %1948 = vmatmul.mubr.f32.gmra.mrb[0].mxu0 %v1860
        %v1949 = vpop.f32.mrb[0].mxu0
        %v1950 = vadd.f32 0.0, %v1949
        %v1951 = vpop.f32.mrb[0].mxu0
        %1952 = vmatprep.mubr.f32.mxu0 0.0
        %1953 = vmatmul.mubr.f32.gmra.mrb[0].mxu0 %v1863
        %v1954 = vpop.f32.mrb[0].mxu0
        %v1955 = vadd.f32 0.0, %v1954
        %v1956 = vpop.f32.mrb[0].mxu0
        %1957 = vmatprep.mubr.f32.mxu0 0.0
        %1958 = vmatmul.mubr.f32.gmra.mrb[0].mxu0 %v1866
        %v1959 = vpop.f32.mrb[0].mxu0
        %v1960 = vadd.f32 0.0, %v1959
        %v1961 = vpop.f32.mrb[0].mxu0
        %1962 = vmatprep.mubr.f32.mxu0 0.0
        %1963 = vmatmul.mubr.f32.gmra.mrb[0].mxu0 %v1869
        %v1964 = vpop.f32.mrb[0].mxu0
        %v1965 = vadd.f32 0.0, %v1964
        %v1966 = vpop.f32.mrb[0].mxu0
        %1967 = vmatprep.mubr.f32.mxu0 0.0
        %1968 = vmatmul.mubr.f32.gmra.mrb[0].mxu0 %v1872
        %v1969 = vpop.f32.mrb[0].mxu0
        %v1970 = vadd.f32 0.0, %v1969
        %v1971 = vpop.f32.mrb[0].mxu0
        %1972 = vmatprep.mubr.f32.mxu0 0.0
        %1973 = vmatmul.mubr.f32.gmra.mrb[0].mxu0 %v1875
        %v1974 = vpop.f32.mrb[0].mxu0
        %v1975 = vadd.f32 0.0, %v1974
        %v1976 = vpop.f32.mrb[0].mxu0
        %1977 = vmatprep.mubr.f32.mxu0 0.0
        %1978 = vmatmul.mubr.f32.gmra.mrb[0].mxu0 %v1878
        %v1979 = vpop.f32.mrb[0].mxu0
        %v1980 = vadd.f32 0.0, %v1979
        %v1981 = vpop.f32.mrb[0].mxu0
        %1982 = vmatprep.mubr.f32.mxu0 0.0
        %1983 = vmatmul.mubr.f32.gmra.mrb[0].mxu0 %v1881
        %v1984 = vpop.f32.mrb[0].mxu0
        %v1985 = vadd.f32 0.0, %v1984
        %v1986 = vpop.f32.mrb[0].mxu0
        %1987 = vdwg.mxu0
        %s1988 = scalar_lea.vmem [#allocation7], 640
        %v1989 = vld [vmem:[%s1988] sm:$0xff]
        %v1990 = vld [vmem:[%s1988 + $0x8] sm:$0xff]
        %v1991 = vld [vmem:[%s1988 + $0x10] sm:$0xff]
        %v1992 = vld [vmem:[%s1988 + $0x18] sm:$0xff]
        %v1993 = vld [vmem:[%s1988 + $0x20] sm:$0xff]
        %v1994 = vld [vmem:[%s1988 + $0x28] sm:$0xff]
        %v1995 = vld [vmem:[%s1988 + $0x30] sm:$0xff]
        %v1996 = vld [vmem:[%s1988 + $0x38] sm:$0xff]
        %v1997 = vld [vmem:[%s1988 + $0x40] sm:$0xff]
        %v1998 = vld [vmem:[%s1988 + $0x48] sm:$0xff]
        %v1999 = vld [vmem:[%s1988 + $0x50] sm:$0xff]
        %v2000 = vld [vmem:[%s1988 + $0x58] sm:$0xff]
        %v2001 = vld [vmem:[%s1988 + $0x60] sm:$0xff]
        %v2002 = vld [vmem:[%s1988 + $0x68] sm:$0xff]
        %v2003 = vld [vmem:[%s1988 + $0x70] sm:$0xff]
        %v2004 = vld [vmem:[%s1988 + $0x78] sm:$0xff]
        %2005 = vmatprep.subr.mxu0 0.0
        %2006 = vmatpush1.msra.mxu0 %v1989
        %2007 = vmatprep.subr.mxu0 0.0
        %2008 = vmatpush1.msra.mxu0 %v1990
        %2009 = vmatprep.subr.mxu0 0.0
        %2010 = vmatpush1.msra.mxu0 %v1991
        %2011 = vmatprep.subr.mxu0 0.0
        %2012 = vmatpush1.msra.mxu0 %v1992
        %2013 = vmatprep.subr.mxu0 0.0
        %2014 = vmatpush1.msra.mxu0 %v1993
        %2015 = vmatprep.subr.mxu0 0.0
        %2016 = vmatpush1.msra.mxu0 %v1994
        %2017 = vmatprep.subr.mxu0 0.0
        %2018 = vmatpush1.msra.mxu0 %v1995
        %2019 = vmatprep.subr.mxu0 0.0
        %2020 = vmatpush1.msra.mxu0 %v1996
        %2021 = vmatprep.subr.mxu0 0.0
        %2022 = vmatpush1.msra.mxu0 %v1997
        %2023 = vmatprep.subr.mxu0 0.0
        %2024 = vmatpush1.msra.mxu0 %v1998
        %2025 = vmatprep.subr.mxu0 0.0
        %2026 = vmatpush1.msra.mxu0 %v1999
        %2027 = vmatprep.subr.mxu0 0.0
        %2028 = vmatpush1.msra.mxu0 %v2000
        %2029 = vmatprep.subr.mxu0 0.0
        %2030 = vmatpush1.msra.mxu0 %v2001
        %2031 = vmatprep.subr.mxu0 0.0
        %2032 = vmatpush1.msra.mxu0 %v2002
        %2033 = vmatprep.subr.mxu0 0.0
        %2034 = vmatpush1.msra.mxu0 %v2003
        %2035 = vmatprep.subr.mxu0 0.0
        %2036 = vmatpush1.msra.mxu0 %v2004
        %2037 = vmatprep.subr.mxu0 0.0
        %2038 = vmatpush1.msra.mxu0 0.0
        %2039 = vmatprep.subr.mxu0 0.0
        %2040 = vmatpush1.msra.mxu0 0.0
        %2041 = vmatprep.subr.mxu0 0.0
        %2042 = vmatpush1.msra.mxu0 0.0
        %2043 = vmatprep.subr.mxu0 0.0
        %2044 = vmatpush1.msra.mxu0 0.0
        %2045 = vmatprep.subr.mxu0 0.0
        %2046 = vmatpush1.msra.mxu0 0.0
        %2047 = vmatprep.subr.mxu0 0.0
        %2048 = vmatpush1.msra.mxu0 0.0
        %2049 = vmatprep.subr.mxu0 0.0
        %2050 = vmatpush1.msra.mxu0 0.0
        %2051 = vmatprep.subr.mxu0 0.0
        %2052 = vmatpush1.msra.mxu0 0.0
        %2053 = vmatprep.subr.mxu0 0.0
        %2054 = vmatpush1.msra.mxu0 0.0
        %2055 = vmatprep.subr.mxu0 0.0
        %2056 = vmatpush1.msra.mxu0 0.0
        %2057 = vmatprep.subr.mxu0 0.0
        %2058 = vmatpush1.msra.mxu0 0.0
        %2059 = vmatprep.subr.mxu0 0.0
        %2060 = vmatpush1.msra.mxu0 0.0
        %2061 = vmatprep.subr.mxu0 0.0
        %2062 = vmatpush1.msra.mxu0 0.0
        %2063 = vmatprep.subr.mxu0 0.0
        %2064 = vmatpush1.msra.mxu0 0.0
        %2065 = vmatprep.subr.mxu0 0.0
        %2066 = vmatpush1.msra.mxu0 0.0
        %2067 = vmatprep.subr.mxu0 0.0
        %2068 = vmatpush1.msra.mxu0 0.0
        %2069 = vmatprep.mubr.f32.mxu0 0.0
        %2070 = vmatmul.mubr.f32.gmra.mrb[0].mxu0 %v1950
        %v2071 = vpop.f32.mrb[0].mxu0
        %v2072 = vadd.f32 0.0, %v2071
        %v2073 = vpop.f32.mrb[0].mxu0
        %2074 = vmatprep.mubr.f32.mxu0 0.0
        %2075 = vmatmul.mubr.f32.gmra.mrb[0].mxu0 %v1955
        %v2076 = vpop.f32.mrb[0].mxu0
        %v2077 = vadd.f32 0.0, %v2076
        %v2078 = vpop.f32.mrb[0].mxu0
        %2079 = vmatprep.mubr.f32.mxu0 0.0
        %2080 = vmatmul.mubr.f32.gmra.mrb[0].mxu0 %v1960
        %v2081 = vpop.f32.mrb[0].mxu0
        %v2082 = vadd.f32 0.0, %v2081
        %v2083 = vpop.f32.mrb[0].mxu0
        %2084 = vmatprep.mubr.f32.mxu0 0.0
        %2085 = vmatmul.mubr.f32.gmra.mrb[0].mxu0 %v1965
        %v2086 = vpop.f32.mrb[0].mxu0
        %v2087 = vadd.f32 0.0, %v2086
        %v2088 = vpop.f32.mrb[0].mxu0
        %2089 = vmatprep.mubr.f32.mxu0 0.0
        %2090 = vmatmul.mubr.f32.gmra.mrb[0].mxu0 %v1970
        %v2091 = vpop.f32.mrb[0].mxu0
        %v2092 = vadd.f32 0.0, %v2091
        %v2093 = vpop.f32.mrb[0].mxu0
        %2094 = vmatprep.mubr.f32.mxu0 0.0
        %2095 = vmatmul.mubr.f32.gmra.mrb[0].mxu0 %v1975
        %v2096 = vpop.f32.mrb[0].mxu0
        %v2097 = vadd.f32 0.0, %v2096
        %v2098 = vpop.f32.mrb[0].mxu0
        %2099 = vmatprep.mubr.f32.mxu0 0.0
        %2100 = vmatmul.mubr.f32.gmra.mrb[0].mxu0 %v1980
        %v2101 = vpop.f32.mrb[0].mxu0
        %v2102 = vadd.f32 0.0, %v2101
        %v2103 = vpop.f32.mrb[0].mxu0
        %2104 = vmatprep.mubr.f32.mxu0 0.0
        %2105 = vmatmul.mubr.f32.gmra.mrb[0].mxu0 %v1985
        %v2106 = vpop.f32.mrb[0].mxu0
        %v2107 = vadd.f32 0.0, %v2106
        %v2108 = vpop.f32.mrb[0].mxu0
        %2109 = vdwg.mxu0
        %v2110 = vadd.f32 %v1842, %v2072
        %v2111 = vadd.f32 %v1843, %v2077
        %v2112 = vadd.f32 %v1844, %v2082
        %v2113 = vadd.f32 %v1845, %v2087
        %v2114 = vadd.f32 %v1846, %v2092
        %v2115 = vadd.f32 %v1847, %v2097
        %v2116 = vadd.f32 %v1848, %v2102
        %v2117 = vadd.f32 %v1849, %v2107
        %s2118 = scalar_lea.vmem [#allocation5], 384
        %v2119 = vld [vmem:[%s2118] sm:$0xff]
        %v2120 = vld [vmem:[%s2118 + $0x8] sm:$0xff]
        %v2121 = vld [vmem:[%s2118 + $0x10] sm:$0xff]
        %v2122 = vld [vmem:[%s2118 + $0x18] sm:$0xff]
        %v2123 = vld [vmem:[%s2118 + $0x20] sm:$0xff]
        %v2124 = vld [vmem:[%s2118 + $0x28] sm:$0xff]
        %v2125 = vld [vmem:[%s2118 + $0x30] sm:$0xff]
        %v2126 = vld [vmem:[%s2118 + $0x38] sm:$0xff]
        %v2128 = vsel %vm535, %v2119, 0
        %v2131 = vsel %vm535, %v2120, 0
        %v2134 = vsel %vm535, %v2121, 0
        %v2137 = vsel %vm535, %v2122, 0
        %v2140 = vsel %vm535, %v2123, 0
        %v2143 = vsel %vm535, %v2124, 0
        %v2146 = vsel %vm535, %v2125, 0
        %v2149 = vsel %vm535, %v2126, 0
        %2151 = vmatprep.subr.mxu0 0.0
        %2152 = vmatpush1.msra.mxu0 %v519
        %2153 = vmatprep.subr.mxu0 0.0
        %2154 = vmatpush1.msra.mxu0 %v520
        %2155 = vmatprep.subr.mxu0 0.0
        %2156 = vmatpush1.msra.mxu0 %v521
        %2157 = vmatprep.subr.mxu0 0.0
        %2158 = vmatpush1.msra.mxu0 %v522
        %2159 = vmatprep.subr.mxu0 0.0
        %2160 = vmatpush1.msra.mxu0 %v523
        %2161 = vmatprep.subr.mxu0 0.0
        %2162 = vmatpush1.msra.mxu0 %v524
        %2163 = vmatprep.subr.mxu0 0.0
        %2164 = vmatpush1.msra.mxu0 %v525
        %2165 = vmatprep.subr.mxu0 0.0
        %2166 = vmatpush1.msra.mxu0 %v526
        %2167 = vmatprep.subr.mxu0 0.0
        %2168 = vmatpush1.msra.mxu0 0.0
        %2169 = vmatprep.subr.mxu0 0.0
        %2170 = vmatpush1.msra.mxu0 0.0
        %2171 = vmatprep.subr.mxu0 0.0
        %2172 = vmatpush1.msra.mxu0 0.0
        %2173 = vmatprep.subr.mxu0 0.0
        %2174 = vmatpush1.msra.mxu0 0.0
        %2175 = vmatprep.subr.mxu0 0.0
        %2176 = vmatpush1.msra.mxu0 0.0
        %2177 = vmatprep.subr.mxu0 0.0
        %2178 = vmatpush1.msra.mxu0 0.0
        %2179 = vmatprep.subr.mxu0 0.0
        %2180 = vmatpush1.msra.mxu0 0.0
        %2181 = vmatprep.subr.mxu0 0.0
        %2182 = vmatpush1.msra.mxu0 0.0
        %2183 = vmatprep.subr.mxu0 0.0
        %2184 = vmatpush1.msra.mxu0 0.0
        %2185 = vmatprep.subr.mxu0 0.0
        %2186 = vmatpush1.msra.mxu0 0.0
        %2187 = vmatprep.subr.mxu0 0.0
        %2188 = vmatpush1.msra.mxu0 0.0
        %2189 = vmatprep.subr.mxu0 0.0
        %2190 = vmatpush1.msra.mxu0 0.0
        %2191 = vmatprep.subr.mxu0 0.0
        %2192 = vmatpush1.msra.mxu0 0.0
        %2193 = vmatprep.subr.mxu0 0.0
        %2194 = vmatpush1.msra.mxu0 0.0
        %2195 = vmatprep.subr.mxu0 0.0
        %2196 = vmatpush1.msra.mxu0 0.0
        %2197 = vmatprep.subr.mxu0 0.0
        %2198 = vmatpush1.msra.mxu0 0.0
        %2199 = vmatprep.subr.mxu0 0.0
        %2200 = vmatpush1.msra.mxu0 0.0
        %2201 = vmatprep.subr.mxu0 0.0
        %2202 = vmatpush1.msra.mxu0 0.0
        %2203 = vmatprep.subr.mxu0 0.0
        %2204 = vmatpush1.msra.mxu0 0.0
        %2205 = vmatprep.subr.mxu0 0.0
        %2206 = vmatpush1.msra.mxu0 0.0
        %2207 = vmatprep.subr.mxu0 0.0
        %2208 = vmatpush1.msra.mxu0 0.0
        %2209 = vmatprep.subr.mxu0 0.0
        %2210 = vmatpush1.msra.mxu0 0.0
        %2211 = vmatprep.subr.mxu0 0.0
        %2212 = vmatpush1.msra.mxu0 0.0
        %2213 = vmatprep.subr.mxu0 0.0
        %2214 = vmatpush1.msra.mxu0 0.0
        %2215 = vmatprep.mubr.f32.mxu0 0.0
        %2216 = vmatmul.mubr.f32.gmra.mrb[0].mxu0 %v2128
        %v2217 = vpop.f32.mrb[0].mxu0
        %v2218 = vadd.f32 0.0, %v2217
        %v2219 = vpop.f32.mrb[0].mxu0
        %2220 = vmatprep.mubr.f32.mxu0 0.0
        %2221 = vmatmul.mubr.f32.gmra.mrb[0].mxu0 %v2131
        %v2222 = vpop.f32.mrb[0].mxu0
        %v2223 = vadd.f32 0.0, %v2222
        %v2224 = vpop.f32.mrb[0].mxu0
        %2225 = vmatprep.mubr.f32.mxu0 0.0
        %2226 = vmatmul.mubr.f32.gmra.mrb[0].mxu0 %v2134
        %v2227 = vpop.f32.mrb[0].mxu0
        %v2228 = vadd.f32 0.0, %v2227
        %v2229 = vpop.f32.mrb[0].mxu0
        %2230 = vmatprep.mubr.f32.mxu0 0.0
        %2231 = vmatmul.mubr.f32.gmra.mrb[0].mxu0 %v2137
        %v2232 = vpop.f32.mrb[0].mxu0
        %v2233 = vadd.f32 0.0, %v2232
        %v2234 = vpop.f32.mrb[0].mxu0
        %2235 = vmatprep.mubr.f32.mxu0 0.0
        %2236 = vmatmul.mubr.f32.gmra.mrb[0].mxu0 %v2140
        %v2237 = vpop.f32.mrb[0].mxu0
        %v2238 = vadd.f32 0.0, %v2237
        %v2239 = vpop.f32.mrb[0].mxu0
        %2240 = vmatprep.mubr.f32.mxu0 0.0
        %2241 = vmatmul.mubr.f32.gmra.mrb[0].mxu0 %v2143
        %v2242 = vpop.f32.mrb[0].mxu0
        %v2243 = vadd.f32 0.0, %v2242
        %v2244 = vpop.f32.mrb[0].mxu0
        %2245 = vmatprep.mubr.f32.mxu0 0.0
        %2246 = vmatmul.mubr.f32.gmra.mrb[0].mxu0 %v2146
        %v2247 = vpop.f32.mrb[0].mxu0
        %v2248 = vadd.f32 0.0, %v2247
        %v2249 = vpop.f32.mrb[0].mxu0
        %2250 = vmatprep.mubr.f32.mxu0 0.0
        %2251 = vmatmul.mubr.f32.gmra.mrb[0].mxu0 %v2149
        %v2252 = vpop.f32.mrb[0].mxu0
        %v2253 = vadd.f32 0.0, %v2252
        %v2254 = vpop.f32.mrb[0].mxu0
        %2255 = vdwg.mxu0
        %s2256 = scalar_lea.vmem [#allocation7], 768
        %v2257 = vld [vmem:[%s2256] sm:$0xff]
        %v2258 = vld [vmem:[%s2256 + $0x8] sm:$0xff]
        %v2259 = vld [vmem:[%s2256 + $0x10] sm:$0xff]
        %v2260 = vld [vmem:[%s2256 + $0x18] sm:$0xff]
        %v2261 = vld [vmem:[%s2256 + $0x20] sm:$0xff]
        %v2262 = vld [vmem:[%s2256 + $0x28] sm:$0xff]
        %v2263 = vld [vmem:[%s2256 + $0x30] sm:$0xff]
        %v2264 = vld [vmem:[%s2256 + $0x38] sm:$0xff]
        %v2265 = vld [vmem:[%s2256 + $0x40] sm:$0xff]
        %v2266 = vld [vmem:[%s2256 + $0x48] sm:$0xff]
        %v2267 = vld [vmem:[%s2256 + $0x50] sm:$0xff]
        %v2268 = vld [vmem:[%s2256 + $0x58] sm:$0xff]
        %v2269 = vld [vmem:[%s2256 + $0x60] sm:$0xff]
        %v2270 = vld [vmem:[%s2256 + $0x68] sm:$0xff]
        %v2271 = vld [vmem:[%s2256 + $0x70] sm:$0xff]
        %v2272 = vld [vmem:[%s2256 + $0x78] sm:$0xff]
        %2273 = vmatprep.subr.mxu0 0.0
        %2274 = vmatpush1.msra.mxu0 %v2257
        %2275 = vmatprep.subr.mxu0 0.0
        %2276 = vmatpush1.msra.mxu0 %v2258
        %2277 = vmatprep.subr.mxu0 0.0
        %2278 = vmatpush1.msra.mxu0 %v2259
        %2279 = vmatprep.subr.mxu0 0.0
        %2280 = vmatpush1.msra.mxu0 %v2260
        %2281 = vmatprep.subr.mxu0 0.0
        %2282 = vmatpush1.msra.mxu0 %v2261
        %2283 = vmatprep.subr.mxu0 0.0
        %2284 = vmatpush1.msra.mxu0 %v2262
        %2285 = vmatprep.subr.mxu0 0.0
        %2286 = vmatpush1.msra.mxu0 %v2263
        %2287 = vmatprep.subr.mxu0 0.0
        %2288 = vmatpush1.msra.mxu0 %v2264
        %2289 = vmatprep.subr.mxu0 0.0
        %2290 = vmatpush1.msra.mxu0 %v2265
        %2291 = vmatprep.subr.mxu0 0.0
        %2292 = vmatpush1.msra.mxu0 %v2266
        %2293 = vmatprep.subr.mxu0 0.0
        %2294 = vmatpush1.msra.mxu0 %v2267
        %2295 = vmatprep.subr.mxu0 0.0
        %2296 = vmatpush1.msra.mxu0 %v2268
        %2297 = vmatprep.subr.mxu0 0.0
        %2298 = vmatpush1.msra.mxu0 %v2269
        %2299 = vmatprep.subr.mxu0 0.0
        %2300 = vmatpush1.msra.mxu0 %v2270
        %2301 = vmatprep.subr.mxu0 0.0
        %2302 = vmatpush1.msra.mxu0 %v2271
        %2303 = vmatprep.subr.mxu0 0.0
        %2304 = vmatpush1.msra.mxu0 %v2272
        %2305 = vmatprep.subr.mxu0 0.0
        %2306 = vmatpush1.msra.mxu0 0.0
        %2307 = vmatprep.subr.mxu0 0.0
        %2308 = vmatpush1.msra.mxu0 0.0
        %2309 = vmatprep.subr.mxu0 0.0
        %2310 = vmatpush1.msra.mxu0 0.0
        %2311 = vmatprep.subr.mxu0 0.0
        %2312 = vmatpush1.msra.mxu0 0.0
        %2313 = vmatprep.subr.mxu0 0.0
        %2314 = vmatpush1.msra.mxu0 0.0
        %2315 = vmatprep.subr.mxu0 0.0
        %2316 = vmatpush1.msra.mxu0 0.0
        %2317 = vmatprep.subr.mxu0 0.0
        %2318 = vmatpush1.msra.mxu0 0.0
        %2319 = vmatprep.subr.mxu0 0.0
        %2320 = vmatpush1.msra.mxu0 0.0
        %2321 = vmatprep.subr.mxu0 0.0
        %2322 = vmatpush1.msra.mxu0 0.0
        %2323 = vmatprep.subr.mxu0 0.0
        %2324 = vmatpush1.msra.mxu0 0.0
        %2325 = vmatprep.subr.mxu0 0.0
        %2326 = vmatpush1.msra.mxu0 0.0
        %2327 = vmatprep.subr.mxu0 0.0
        %2328 = vmatpush1.msra.mxu0 0.0
        %2329 = vmatprep.subr.mxu0 0.0
        %2330 = vmatpush1.msra.mxu0 0.0
        %2331 = vmatprep.subr.mxu0 0.0
        %2332 = vmatpush1.msra.mxu0 0.0
        %2333 = vmatprep.subr.mxu0 0.0
        %2334 = vmatpush1.msra.mxu0 0.0
        %2335 = vmatprep.subr.mxu0 0.0
        %2336 = vmatpush1.msra.mxu0 0.0
        %2337 = vmatprep.mubr.f32.mxu0 0.0
        %2338 = vmatmul.mubr.f32.gmra.mrb[0].mxu0 %v2218
        %v2339 = vpop.f32.mrb[0].mxu0
        %v2340 = vadd.f32 0.0, %v2339
        %v2341 = vpop.f32.mrb[0].mxu0
        %2342 = vmatprep.mubr.f32.mxu0 0.0
        %2343 = vmatmul.mubr.f32.gmra.mrb[0].mxu0 %v2223
        %v2344 = vpop.f32.mrb[0].mxu0
        %v2345 = vadd.f32 0.0, %v2344
        %v2346 = vpop.f32.mrb[0].mxu0
        %2347 = vmatprep.mubr.f32.mxu0 0.0
        %2348 = vmatmul.mubr.f32.gmra.mrb[0].mxu0 %v2228
        %v2349 = vpop.f32.mrb[0].mxu0
        %v2350 = vadd.f32 0.0, %v2349
        %v2351 = vpop.f32.mrb[0].mxu0
        %2352 = vmatprep.mubr.f32.mxu0 0.0
        %2353 = vmatmul.mubr.f32.gmra.mrb[0].mxu0 %v2233
        %v2354 = vpop.f32.mrb[0].mxu0
        %v2355 = vadd.f32 0.0, %v2354
        %v2356 = vpop.f32.mrb[0].mxu0
        %2357 = vmatprep.mubr.f32.mxu0 0.0
        %2358 = vmatmul.mubr.f32.gmra.mrb[0].mxu0 %v2238
        %v2359 = vpop.f32.mrb[0].mxu0
        %v2360 = vadd.f32 0.0, %v2359
        %v2361 = vpop.f32.mrb[0].mxu0
        %2362 = vmatprep.mubr.f32.mxu0 0.0
        %2363 = vmatmul.mubr.f32.gmra.mrb[0].mxu0 %v2243
        %v2364 = vpop.f32.mrb[0].mxu0
        %v2365 = vadd.f32 0.0, %v2364
        %v2366 = vpop.f32.mrb[0].mxu0
        %2367 = vmatprep.mubr.f32.mxu0 0.0
        %2368 = vmatmul.mubr.f32.gmra.mrb[0].mxu0 %v2248
        %v2369 = vpop.f32.mrb[0].mxu0
        %v2370 = vadd.f32 0.0, %v2369
        %v2371 = vpop.f32.mrb[0].mxu0
        %2372 = vmatprep.mubr.f32.mxu0 0.0
        %2373 = vmatmul.mubr.f32.gmra.mrb[0].mxu0 %v2253
        %v2374 = vpop.f32.mrb[0].mxu0
        %v2375 = vadd.f32 0.0, %v2374
        %v2376 = vpop.f32.mrb[0].mxu0
        %2377 = vdwg.mxu0
        %v2378 = vadd.f32 %v2110, %v2340
        %v2379 = vadd.f32 %v2111, %v2345
        %v2380 = vadd.f32 %v2112, %v2350
        %v2381 = vadd.f32 %v2113, %v2355
        %v2382 = vadd.f32 %v2114, %v2360
        %v2383 = vadd.f32 %v2115, %v2365
        %v2384 = vadd.f32 %v2116, %v2370
        %v2385 = vadd.f32 %v2117, %v2375
        %s2386 = scalar_lea.vmem [#allocation5], 448
        %v2387 = vld [vmem:[%s2386] sm:$0xff]
        %v2388 = vld [vmem:[%s2386 + $0x8] sm:$0xff]
        %v2389 = vld [vmem:[%s2386 + $0x10] sm:$0xff]
        %v2390 = vld [vmem:[%s2386 + $0x18] sm:$0xff]
        %v2391 = vld [vmem:[%s2386 + $0x20] sm:$0xff]
        %v2392 = vld [vmem:[%s2386 + $0x28] sm:$0xff]
        %v2393 = vld [vmem:[%s2386 + $0x30] sm:$0xff]
        %v2394 = vld [vmem:[%s2386 + $0x38] sm:$0xff]
        %v2396 = vsel %vm535, %v2387, 0
        %v2399 = vsel %vm535, %v2388, 0
        %v2402 = vsel %vm535, %v2389, 0
        %v2405 = vsel %vm535, %v2390, 0
        %v2408 = vsel %vm535, %v2391, 0
        %v2411 = vsel %vm535, %v2392, 0
        %v2414 = vsel %vm535, %v2393, 0
        %v2417 = vsel %vm535, %v2394, 0
        %2419 = vmatprep.subr.mxu0 0.0
        %2420 = vmatpush1.msra.mxu0 %v519
        %2421 = vmatprep.subr.mxu0 0.0
        %2422 = vmatpush1.msra.mxu0 %v520
        %2423 = vmatprep.subr.mxu0 0.0
        %2424 = vmatpush1.msra.mxu0 %v521
        %2425 = vmatprep.subr.mxu0 0.0
        %2426 = vmatpush1.msra.mxu0 %v522
        %2427 = vmatprep.subr.mxu0 0.0
        %2428 = vmatpush1.msra.mxu0 %v523
        %2429 = vmatprep.subr.mxu0 0.0
        %2430 = vmatpush1.msra.mxu0 %v524
        %2431 = vmatprep.subr.mxu0 0.0
        %2432 = vmatpush1.msra.mxu0 %v525
        %2433 = vmatprep.subr.mxu0 0.0
        %2434 = vmatpush1.msra.mxu0 %v526
        %2435 = vmatprep.subr.mxu0 0.0
        %2436 = vmatpush1.msra.mxu0 0.0
        %2437 = vmatprep.subr.mxu0 0.0
        %2438 = vmatpush1.msra.mxu0 0.0
        %2439 = vmatprep.subr.mxu0 0.0
        %2440 = vmatpush1.msra.mxu0 0.0
        %2441 = vmatprep.subr.mxu0 0.0
        %2442 = vmatpush1.msra.mxu0 0.0
        %2443 = vmatprep.subr.mxu0 0.0
        %2444 = vmatpush1.msra.mxu0 0.0
        %2445 = vmatprep.subr.mxu0 0.0
        %2446 = vmatpush1.msra.mxu0 0.0
        %2447 = vmatprep.subr.mxu0 0.0
        %2448 = vmatpush1.msra.mxu0 0.0
        %2449 = vmatprep.subr.mxu0 0.0
        %2450 = vmatpush1.msra.mxu0 0.0
        %2451 = vmatprep.subr.mxu0 0.0
        %2452 = vmatpush1.msra.mxu0 0.0
        %2453 = vmatprep.subr.mxu0 0.0
        %2454 = vmatpush1.msra.mxu0 0.0
        %2455 = vmatprep.subr.mxu0 0.0
        %2456 = vmatpush1.msra.mxu0 0.0
        %2457 = vmatprep.subr.mxu0 0.0
        %2458 = vmatpush1.msra.mxu0 0.0
        %2459 = vmatprep.subr.mxu0 0.0
        %2460 = vmatpush1.msra.mxu0 0.0
        %2461 = vmatprep.subr.mxu0 0.0
        %2462 = vmatpush1.msra.mxu0 0.0
        %2463 = vmatprep.subr.mxu0 0.0
        %2464 = vmatpush1.msra.mxu0 0.0
        %2465 = vmatprep.subr.mxu0 0.0
        %2466 = vmatpush1.msra.mxu0 0.0
        %2467 = vmatprep.subr.mxu0 0.0
        %2468 = vmatpush1.msra.mxu0 0.0
        %2469 = vmatprep.subr.mxu0 0.0
        %2470 = vmatpush1.msra.mxu0 0.0
        %2471 = vmatprep.subr.mxu0 0.0
        %2472 = vmatpush1.msra.mxu0 0.0
        %2473 = vmatprep.subr.mxu0 0.0
        %2474 = vmatpush1.msra.mxu0 0.0
        %2475 = vmatprep.subr.mxu0 0.0
        %2476 = vmatpush1.msra.mxu0 0.0
        %2477 = vmatprep.subr.mxu0 0.0
        %2478 = vmatpush1.msra.mxu0 0.0
        %2479 = vmatprep.subr.mxu0 0.0
        %2480 = vmatpush1.msra.mxu0 0.0
        %2481 = vmatprep.subr.mxu0 0.0
        %2482 = vmatpush1.msra.mxu0 0.0
        %2483 = vmatprep.mubr.f32.mxu0 0.0
        %2484 = vmatmul.mubr.f32.gmra.mrb[0].mxu0 %v2396
        %v2485 = vpop.f32.mrb[0].mxu0
        %v2486 = vadd.f32 0.0, %v2485
        %v2487 = vpop.f32.mrb[0].mxu0
        %2488 = vmatprep.mubr.f32.mxu0 0.0
        %2489 = vmatmul.mubr.f32.gmra.mrb[0].mxu0 %v2399
        %v2490 = vpop.f32.mrb[0].mxu0
        %v2491 = vadd.f32 0.0, %v2490
        %v2492 = vpop.f32.mrb[0].mxu0
        %2493 = vmatprep.mubr.f32.mxu0 0.0
        %2494 = vmatmul.mubr.f32.gmra.mrb[0].mxu0 %v2402
        %v2495 = vpop.f32.mrb[0].mxu0
        %v2496 = vadd.f32 0.0, %v2495
        %v2497 = vpop.f32.mrb[0].mxu0
        %2498 = vmatprep.mubr.f32.mxu0 0.0
        %2499 = vmatmul.mubr.f32.gmra.mrb[0].mxu0 %v2405
        %v2500 = vpop.f32.mrb[0].mxu0
        %v2501 = vadd.f32 0.0, %v2500
        %v2502 = vpop.f32.mrb[0].mxu0
        %2503 = vmatprep.mubr.f32.mxu0 0.0
        %2504 = vmatmul.mubr.f32.gmra.mrb[0].mxu0 %v2408
        %v2505 = vpop.f32.mrb[0].mxu0
        %v2506 = vadd.f32 0.0, %v2505
        %v2507 = vpop.f32.mrb[0].mxu0
        %2508 = vmatprep.mubr.f32.mxu0 0.0
        %2509 = vmatmul.mubr.f32.gmra.mrb[0].mxu0 %v2411
        %v2510 = vpop.f32.mrb[0].mxu0
        %v2511 = vadd.f32 0.0, %v2510
        %v2512 = vpop.f32.mrb[0].mxu0
        %2513 = vmatprep.mubr.f32.mxu0 0.0
        %2514 = vmatmul.mubr.f32.gmra.mrb[0].mxu0 %v2414
        %v2515 = vpop.f32.mrb[0].mxu0
        %v2516 = vadd.f32 0.0, %v2515
        %v2517 = vpop.f32.mrb[0].mxu0
        %2518 = vmatprep.mubr.f32.mxu0 0.0
        %2519 = vmatmul.mubr.f32.gmra.mrb[0].mxu0 %v2417
        %v2520 = vpop.f32.mrb[0].mxu0
        %v2521 = vadd.f32 0.0, %v2520
        %v2522 = vpop.f32.mrb[0].mxu0
        %2523 = vdwg.mxu0
        %s2524 = scalar_lea.vmem [#allocation7], 896
        %v2525 = vld [vmem:[%s2524] sm:$0xff]
        %v2526 = vld [vmem:[%s2524 + $0x8] sm:$0xff]
        %v2527 = vld [vmem:[%s2524 + $0x10] sm:$0xff]
        %v2528 = vld [vmem:[%s2524 + $0x18] sm:$0xff]
        %v2529 = vld [vmem:[%s2524 + $0x20] sm:$0xff]
        %v2530 = vld [vmem:[%s2524 + $0x28] sm:$0xff]
        %v2531 = vld [vmem:[%s2524 + $0x30] sm:$0xff]
        %v2532 = vld [vmem:[%s2524 + $0x38] sm:$0xff]
        %v2533 = vld [vmem:[%s2524 + $0x40] sm:$0xff]
        %v2534 = vld [vmem:[%s2524 + $0x48] sm:$0xff]
        %v2535 = vld [vmem:[%s2524 + $0x50] sm:$0xff]
        %v2536 = vld [vmem:[%s2524 + $0x58] sm:$0xff]
        %v2537 = vld [vmem:[%s2524 + $0x60] sm:$0xff]
        %v2538 = vld [vmem:[%s2524 + $0x68] sm:$0xff]
        %v2539 = vld [vmem:[%s2524 + $0x70] sm:$0xff]
        %v2540 = vld [vmem:[%s2524 + $0x78] sm:$0xff]
        %2541 = vmatprep.subr.mxu0 0.0
        %2542 = vmatpush1.msra.mxu0 %v2525
        %2543 = vmatprep.subr.mxu0 0.0
        %2544 = vmatpush1.msra.mxu0 %v2526
        %2545 = vmatprep.subr.mxu0 0.0
        %2546 = vmatpush1.msra.mxu0 %v2527
        %2547 = vmatprep.subr.mxu0 0.0
        %2548 = vmatpush1.msra.mxu0 %v2528
        %2549 = vmatprep.subr.mxu0 0.0
        %2550 = vmatpush1.msra.mxu0 %v2529
        %2551 = vmatprep.subr.mxu0 0.0
        %2552 = vmatpush1.msra.mxu0 %v2530
        %2553 = vmatprep.subr.mxu0 0.0
        %2554 = vmatpush1.msra.mxu0 %v2531
        %2555 = vmatprep.subr.mxu0 0.0
        %2556 = vmatpush1.msra.mxu0 %v2532
        %2557 = vmatprep.subr.mxu0 0.0
        %2558 = vmatpush1.msra.mxu0 %v2533
        %2559 = vmatprep.subr.mxu0 0.0
        %2560 = vmatpush1.msra.mxu0 %v2534
        %2561 = vmatprep.subr.mxu0 0.0
        %2562 = vmatpush1.msra.mxu0 %v2535
        %2563 = vmatprep.subr.mxu0 0.0
        %2564 = vmatpush1.msra.mxu0 %v2536
        %2565 = vmatprep.subr.mxu0 0.0
        %2566 = vmatpush1.msra.mxu0 %v2537
        %2567 = vmatprep.subr.mxu0 0.0
        %2568 = vmatpush1.msra.mxu0 %v2538
        %2569 = vmatprep.subr.mxu0 0.0
        %2570 = vmatpush1.msra.mxu0 %v2539
        %2571 = vmatprep.subr.mxu0 0.0
        %2572 = vmatpush1.msra.mxu0 %v2540
        %2573 = vmatprep.subr.mxu0 0.0
        %2574 = vmatpush1.msra.mxu0 0.0
        %2575 = vmatprep.subr.mxu0 0.0
        %2576 = vmatpush1.msra.mxu0 0.0
        %2577 = vmatprep.subr.mxu0 0.0
        %2578 = vmatpush1.msra.mxu0 0.0
        %2579 = vmatprep.subr.mxu0 0.0
        %2580 = vmatpush1.msra.mxu0 0.0
        %2581 = vmatprep.subr.mxu0 0.0
        %2582 = vmatpush1.msra.mxu0 0.0
        %2583 = vmatprep.subr.mxu0 0.0
        %2584 = vmatpush1.msra.mxu0 0.0
        %2585 = vmatprep.subr.mxu0 0.0
        %2586 = vmatpush1.msra.mxu0 0.0
        %2587 = vmatprep.subr.mxu0 0.0
        %2588 = vmatpush1.msra.mxu0 0.0
        %2589 = vmatprep.subr.mxu0 0.0
        %2590 = vmatpush1.msra.mxu0 0.0
        %2591 = vmatprep.subr.mxu0 0.0
        %2592 = vmatpush1.msra.mxu0 0.0
        %2593 = vmatprep.subr.mxu0 0.0
        %2594 = vmatpush1.msra.mxu0 0.0
        %2595 = vmatprep.subr.mxu0 0.0
        %2596 = vmatpush1.msra.mxu0 0.0
        %2597 = vmatprep.subr.mxu0 0.0
        %2598 = vmatpush1.msra.mxu0 0.0
        %2599 = vmatprep.subr.mxu0 0.0
        %2600 = vmatpush1.msra.mxu0 0.0
        %2601 = vmatprep.subr.mxu0 0.0
        %2602 = vmatpush1.msra.mxu0 0.0
        %2603 = vmatprep.subr.mxu0 0.0
        %2604 = vmatpush1.msra.mxu0 0.0
        %2605 = vmatprep.mubr.f32.mxu0 0.0
        %2606 = vmatmul.mubr.f32.gmra.mrb[0].mxu0 %v2486
        %v2607 = vpop.f32.mrb[0].mxu0
        %v2608 = vadd.f32 0.0, %v2607
        %v2609 = vpop.f32.mrb[0].mxu0
        %2610 = vmatprep.mubr.f32.mxu0 0.0
        %2611 = vmatmul.mubr.f32.gmra.mrb[0].mxu0 %v2491
        %v2612 = vpop.f32.mrb[0].mxu0
        %v2613 = vadd.f32 0.0, %v2612
        %v2614 = vpop.f32.mrb[0].mxu0
        %2615 = vmatprep.mubr.f32.mxu0 0.0
        %2616 = vmatmul.mubr.f32.gmra.mrb[0].mxu0 %v2496
        %v2617 = vpop.f32.mrb[0].mxu0
        %v2618 = vadd.f32 0.0, %v2617
        %v2619 = vpop.f32.mrb[0].mxu0
        %2620 = vmatprep.mubr.f32.mxu0 0.0
        %2621 = vmatmul.mubr.f32.gmra.mrb[0].mxu0 %v2501
        %v2622 = vpop.f32.mrb[0].mxu0
        %v2623 = vadd.f32 0.0, %v2622
        %v2624 = vpop.f32.mrb[0].mxu0
        %2625 = vmatprep.mubr.f32.mxu0 0.0
        %2626 = vmatmul.mubr.f32.gmra.mrb[0].mxu0 %v2506
        %v2627 = vpop.f32.mrb[0].mxu0
        %v2628 = vadd.f32 0.0, %v2627
        %v2629 = vpop.f32.mrb[0].mxu0
        %2630 = vmatprep.mubr.f32.mxu0 0.0
        %2631 = vmatmul.mubr.f32.gmra.mrb[0].mxu0 %v2511
        %v2632 = vpop.f32.mrb[0].mxu0
        %v2633 = vadd.f32 0.0, %v2632
        %v2634 = vpop.f32.mrb[0].mxu0
        %2635 = vmatprep.mubr.f32.mxu0 0.0
        %2636 = vmatmul.mubr.f32.gmra.mrb[0].mxu0 %v2516
        %v2637 = vpop.f32.mrb[0].mxu0
        %v2638 = vadd.f32 0.0, %v2637
        %v2639 = vpop.f32.mrb[0].mxu0
        %2640 = vmatprep.mubr.f32.mxu0 0.0
        %2641 = vmatmul.mubr.f32.gmra.mrb[0].mxu0 %v2521
        %v2642 = vpop.f32.mrb[0].mxu0
        %v2643 = vadd.f32 0.0, %v2642
        %v2644 = vpop.f32.mrb[0].mxu0
        %2645 = vdwg.mxu0
        %v2646 = vadd.f32 %v2378, %v2608
        %v2647 = vadd.f32 %v2379, %v2613
        %v2648 = vadd.f32 %v2380, %v2618
        %v2649 = vadd.f32 %v2381, %v2623
        %v2650 = vadd.f32 %v2382, %v2628
        %v2651 = vadd.f32 %v2383, %v2633
        %v2652 = vadd.f32 %v2384, %v2638
        %v2653 = vadd.f32 %v2385, %v2643
        %s2654 = scalar_lea.vmem [#allocation5], 512
        %v2655 = vld [vmem:[%s2654] sm:$0xff]
        %v2656 = vld [vmem:[%s2654 + $0x8] sm:$0xff]
        %v2657 = vld [vmem:[%s2654 + $0x10] sm:$0xff]
        %v2658 = vld [vmem:[%s2654 + $0x18] sm:$0xff]
        %v2659 = vld [vmem:[%s2654 + $0x20] sm:$0xff]
        %v2660 = vld [vmem:[%s2654 + $0x28] sm:$0xff]
        %v2661 = vld [vmem:[%s2654 + $0x30] sm:$0xff]
        %v2662 = vld [vmem:[%s2654 + $0x38] sm:$0xff]
        %v2664 = vsel %vm535, %v2655, 0
        %v2667 = vsel %vm535, %v2656, 0
        %v2670 = vsel %vm535, %v2657, 0
        %v2673 = vsel %vm535, %v2658, 0
        %v2676 = vsel %vm535, %v2659, 0
        %v2679 = vsel %vm535, %v2660, 0
        %v2682 = vsel %vm535, %v2661, 0
        %v2685 = vsel %vm535, %v2662, 0
        %2687 = vmatprep.subr.mxu0 0.0
        %2688 = vmatpush1.msra.mxu0 %v519
        %2689 = vmatprep.subr.mxu0 0.0
        %2690 = vmatpush1.msra.mxu0 %v520
        %2691 = vmatprep.subr.mxu0 0.0
        %2692 = vmatpush1.msra.mxu0 %v521
        %2693 = vmatprep.subr.mxu0 0.0
        %2694 = vmatpush1.msra.mxu0 %v522
        %2695 = vmatprep.subr.mxu0 0.0
        %2696 = vmatpush1.msra.mxu0 %v523
        %2697 = vmatprep.subr.mxu0 0.0
        %2698 = vmatpush1.msra.mxu0 %v524
        %2699 = vmatprep.subr.mxu0 0.0
        %2700 = vmatpush1.msra.mxu0 %v525
        %2701 = vmatprep.subr.mxu0 0.0
        %2702 = vmatpush1.msra.mxu0 %v526
        %2703 = vmatprep.subr.mxu0 0.0
        %2704 = vmatpush1.msra.mxu0 0.0
        %2705 = vmatprep.subr.mxu0 0.0
        %2706 = vmatpush1.msra.mxu0 0.0
        %2707 = vmatprep.subr.mxu0 0.0
        %2708 = vmatpush1.msra.mxu0 0.0
        %2709 = vmatprep.subr.mxu0 0.0
        %2710 = vmatpush1.msra.mxu0 0.0
        %2711 = vmatprep.subr.mxu0 0.0
        %2712 = vmatpush1.msra.mxu0 0.0
        %2713 = vmatprep.subr.mxu0 0.0
        %2714 = vmatpush1.msra.mxu0 0.0
        %2715 = vmatprep.subr.mxu0 0.0
        %2716 = vmatpush1.msra.mxu0 0.0
        %2717 = vmatprep.subr.mxu0 0.0
        %2718 = vmatpush1.msra.mxu0 0.0
        %2719 = vmatprep.subr.mxu0 0.0
        %2720 = vmatpush1.msra.mxu0 0.0
        %2721 = vmatprep.subr.mxu0 0.0
        %2722 = vmatpush1.msra.mxu0 0.0
        %2723 = vmatprep.subr.mxu0 0.0
        %2724 = vmatpush1.msra.mxu0 0.0
        %2725 = vmatprep.subr.mxu0 0.0
        %2726 = vmatpush1.msra.mxu0 0.0
        %2727 = vmatprep.subr.mxu0 0.0
        %2728 = vmatpush1.msra.mxu0 0.0
        %2729 = vmatprep.subr.mxu0 0.0
        %2730 = vmatpush1.msra.mxu0 0.0
        %2731 = vmatprep.subr.mxu0 0.0
        %2732 = vmatpush1.msra.mxu0 0.0
        %2733 = vmatprep.subr.mxu0 0.0
        %2734 = vmatpush1.msra.mxu0 0.0
        %2735 = vmatprep.subr.mxu0 0.0
        %2736 = vmatpush1.msra.mxu0 0.0
        %2737 = vmatprep.subr.mxu0 0.0
        %2738 = vmatpush1.msra.mxu0 0.0
        %2739 = vmatprep.subr.mxu0 0.0
        %2740 = vmatpush1.msra.mxu0 0.0
        %2741 = vmatprep.subr.mxu0 0.0
        %2742 = vmatpush1.msra.mxu0 0.0
        %2743 = vmatprep.subr.mxu0 0.0
        %2744 = vmatpush1.msra.mxu0 0.0
        %2745 = vmatprep.subr.mxu0 0.0
        %2746 = vmatpush1.msra.mxu0 0.0
        %2747 = vmatprep.subr.mxu0 0.0
        %2748 = vmatpush1.msra.mxu0 0.0
        %2749 = vmatprep.subr.mxu0 0.0
        %2750 = vmatpush1.msra.mxu0 0.0
        %2751 = vmatprep.mubr.f32.mxu0 0.0
        %2752 = vmatmul.mubr.f32.gmra.mrb[0].mxu0 %v2664
        %v2753 = vpop.f32.mrb[0].mxu0
        %v2754 = vadd.f32 0.0, %v2753
        %v2755 = vpop.f32.mrb[0].mxu0
        %2756 = vmatprep.mubr.f32.mxu0 0.0
        %2757 = vmatmul.mubr.f32.gmra.mrb[0].mxu0 %v2667
        %v2758 = vpop.f32.mrb[0].mxu0
        %v2759 = vadd.f32 0.0, %v2758
        %v2760 = vpop.f32.mrb[0].mxu0
        %2761 = vmatprep.mubr.f32.mxu0 0.0
        %2762 = vmatmul.mubr.f32.gmra.mrb[0].mxu0 %v2670
        %v2763 = vpop.f32.mrb[0].mxu0
        %v2764 = vadd.f32 0.0, %v2763
        %v2765 = vpop.f32.mrb[0].mxu0
        %2766 = vmatprep.mubr.f32.mxu0 0.0
        %2767 = vmatmul.mubr.f32.gmra.mrb[0].mxu0 %v2673
        %v2768 = vpop.f32.mrb[0].mxu0
        %v2769 = vadd.f32 0.0, %v2768
        %v2770 = vpop.f32.mrb[0].mxu0
        %2771 = vmatprep.mubr.f32.mxu0 0.0
        %2772 = vmatmul.mubr.f32.gmra.mrb[0].mxu0 %v2676
        %v2773 = vpop.f32.mrb[0].mxu0
        %v2774 = vadd.f32 0.0, %v2773
        %v2775 = vpop.f32.mrb[0].mxu0
        %2776 = vmatprep.mubr.f32.mxu0 0.0
        %2777 = vmatmul.mubr.f32.gmra.mrb[0].mxu0 %v2679
        %v2778 = vpop.f32.mrb[0].mxu0
        %v2779 = vadd.f32 0.0, %v2778
        %v2780 = vpop.f32.mrb[0].mxu0
        %2781 = vmatprep.mubr.f32.mxu0 0.0
        %2782 = vmatmul.mubr.f32.gmra.mrb[0].mxu0 %v2682
        %v2783 = vpop.f32.mrb[0].mxu0
        %v2784 = vadd.f32 0.0, %v2783
        %v2785 = vpop.f32.mrb[0].mxu0
        %2786 = vmatprep.mubr.f32.mxu0 0.0
        %2787 = vmatmul.mubr.f32.gmra.mrb[0].mxu0 %v2685
        %v2788 = vpop.f32.mrb[0].mxu0
        %v2789 = vadd.f32 0.0, %v2788
        %v2790 = vpop.f32.mrb[0].mxu0
        %2791 = vdwg.mxu0
        %s2792 = scalar_lea.vmem [#allocation7], 1024
        %v2793 = vld [vmem:[%s2792] sm:$0xff]
        %v2794 = vld [vmem:[%s2792 + $0x8] sm:$0xff]
        %v2795 = vld [vmem:[%s2792 + $0x10] sm:$0xff]
        %v2796 = vld [vmem:[%s2792 + $0x18] sm:$0xff]
        %v2797 = vld [vmem:[%s2792 + $0x20] sm:$0xff]
        %v2798 = vld [vmem:[%s2792 + $0x28] sm:$0xff]
        %v2799 = vld [vmem:[%s2792 + $0x30] sm:$0xff]
        %v2800 = vld [vmem:[%s2792 + $0x38] sm:$0xff]
        %v2801 = vld [vmem:[%s2792 + $0x40] sm:$0xff]
        %v2802 = vld [vmem:[%s2792 + $0x48] sm:$0xff]
        %v2803 = vld [vmem:[%s2792 + $0x50] sm:$0xff]
        %v2804 = vld [vmem:[%s2792 + $0x58] sm:$0xff]
        %v2805 = vld [vmem:[%s2792 + $0x60] sm:$0xff]
        %v2806 = vld [vmem:[%s2792 + $0x68] sm:$0xff]
        %v2807 = vld [vmem:[%s2792 + $0x70] sm:$0xff]
        %v2808 = vld [vmem:[%s2792 + $0x78] sm:$0xff]
        %2809 = vmatprep.subr.mxu0 0.0
        %2810 = vmatpush1.msra.mxu0 %v2793
        %2811 = vmatprep.subr.mxu0 0.0
        %2812 = vmatpush1.msra.mxu0 %v2794
        %2813 = vmatprep.subr.mxu0 0.0
        %2814 = vmatpush1.msra.mxu0 %v2795
        %2815 = vmatprep.subr.mxu0 0.0
        %2816 = vmatpush1.msra.mxu0 %v2796
        %2817 = vmatprep.subr.mxu0 0.0
        %2818 = vmatpush1.msra.mxu0 %v2797
        %2819 = vmatprep.subr.mxu0 0.0
        %2820 = vmatpush1.msra.mxu0 %v2798
        %2821 = vmatprep.subr.mxu0 0.0
        %2822 = vmatpush1.msra.mxu0 %v2799
        %2823 = vmatprep.subr.mxu0 0.0
        %2824 = vmatpush1.msra.mxu0 %v2800
        %2825 = vmatprep.subr.mxu0 0.0
        %2826 = vmatpush1.msra.mxu0 %v2801
        %2827 = vmatprep.subr.mxu0 0.0
        %2828 = vmatpush1.msra.mxu0 %v2802
        %2829 = vmatprep.subr.mxu0 0.0
        %2830 = vmatpush1.msra.mxu0 %v2803
        %2831 = vmatprep.subr.mxu0 0.0
        %2832 = vmatpush1.msra.mxu0 %v2804
        %2833 = vmatprep.subr.mxu0 0.0
        %2834 = vmatpush1.msra.mxu0 %v2805
        %2835 = vmatprep.subr.mxu0 0.0
        %2836 = vmatpush1.msra.mxu0 %v2806
        %2837 = vmatprep.subr.mxu0 0.0
        %2838 = vmatpush1.msra.mxu0 %v2807
        %2839 = vmatprep.subr.mxu0 0.0
        %2840 = vmatpush1.msra.mxu0 %v2808
        %2841 = vmatprep.subr.mxu0 0.0
        %2842 = vmatpush1.msra.mxu0 0.0
        %2843 = vmatprep.subr.mxu0 0.0
        %2844 = vmatpush1.msra.mxu0 0.0
        %2845 = vmatprep.subr.mxu0 0.0
        %2846 = vmatpush1.msra.mxu0 0.0
        %2847 = vmatprep.subr.mxu0 0.0
        %2848 = vmatpush1.msra.mxu0 0.0
        %2849 = vmatprep.subr.mxu0 0.0
        %2850 = vmatpush1.msra.mxu0 0.0
        %2851 = vmatprep.subr.mxu0 0.0
        %2852 = vmatpush1.msra.mxu0 0.0
        %2853 = vmatprep.subr.mxu0 0.0
        %2854 = vmatpush1.msra.mxu0 0.0
        %2855 = vmatprep.subr.mxu0 0.0
        %2856 = vmatpush1.msra.mxu0 0.0
        %2857 = vmatprep.subr.mxu0 0.0
        %2858 = vmatpush1.msra.mxu0 0.0
        %2859 = vmatprep.subr.mxu0 0.0
        %2860 = vmatpush1.msra.mxu0 0.0
        %2861 = vmatprep.subr.mxu0 0.0
        %2862 = vmatpush1.msra.mxu0 0.0
        %2863 = vmatprep.subr.mxu0 0.0
        %2864 = vmatpush1.msra.mxu0 0.0
        %2865 = vmatprep.subr.mxu0 0.0
        %2866 = vmatpush1.msra.mxu0 0.0
        %2867 = vmatprep.subr.mxu0 0.0
        %2868 = vmatpush1.msra.mxu0 0.0
        %2869 = vmatprep.subr.mxu0 0.0
        %2870 = vmatpush1.msra.mxu0 0.0
        %2871 = vmatprep.subr.mxu0 0.0
        %2872 = vmatpush1.msra.mxu0 0.0
        %2873 = vmatprep.mubr.f32.mxu0 0.0
        %2874 = vmatmul.mubr.f32.gmra.mrb[0].mxu0 %v2754
        %v2875 = vpop.f32.mrb[0].mxu0
        %v2876 = vadd.f32 0.0, %v2875
        %v2877 = vpop.f32.mrb[0].mxu0
        %2878 = vmatprep.mubr.f32.mxu0 0.0
        %2879 = vmatmul.mubr.f32.gmra.mrb[0].mxu0 %v2759
        %v2880 = vpop.f32.mrb[0].mxu0
        %v2881 = vadd.f32 0.0, %v2880
        %v2882 = vpop.f32.mrb[0].mxu0
        %2883 = vmatprep.mubr.f32.mxu0 0.0
        %2884 = vmatmul.mubr.f32.gmra.mrb[0].mxu0 %v2764
        %v2885 = vpop.f32.mrb[0].mxu0
        %v2886 = vadd.f32 0.0, %v2885
        %v2887 = vpop.f32.mrb[0].mxu0
        %2888 = vmatprep.mubr.f32.mxu0 0.0
        %2889 = vmatmul.mubr.f32.gmra.mrb[0].mxu0 %v2769
        %v2890 = vpop.f32.mrb[0].mxu0
        %v2891 = vadd.f32 0.0, %v2890
        %v2892 = vpop.f32.mrb[0].mxu0
        %2893 = vmatprep.mubr.f32.mxu0 0.0
        %2894 = vmatmul.mubr.f32.gmra.mrb[0].mxu0 %v2774
        %v2895 = vpop.f32.mrb[0].mxu0
        %v2896 = vadd.f32 0.0, %v2895
        %v2897 = vpop.f32.mrb[0].mxu0
        %2898 = vmatprep.mubr.f32.mxu0 0.0
        %2899 = vmatmul.mubr.f32.gmra.mrb[0].mxu0 %v2779
        %v2900 = vpop.f32.mrb[0].mxu0
        %v2901 = vadd.f32 0.0, %v2900
        %v2902 = vpop.f32.mrb[0].mxu0
        %2903 = vmatprep.mubr.f32.mxu0 0.0
        %2904 = vmatmul.mubr.f32.gmra.mrb[0].mxu0 %v2784
        %v2905 = vpop.f32.mrb[0].mxu0
        %v2906 = vadd.f32 0.0, %v2905
        %v2907 = vpop.f32.mrb[0].mxu0
        %2908 = vmatprep.mubr.f32.mxu0 0.0
        %2909 = vmatmul.mubr.f32.gmra.mrb[0].mxu0 %v2789
        %v2910 = vpop.f32.mrb[0].mxu0
        %v2911 = vadd.f32 0.0, %v2910
        %v2912 = vpop.f32.mrb[0].mxu0
        %2913 = vdwg.mxu0
        %v2914 = vadd.f32 %v2646, %v2876
        %v2915 = vadd.f32 %v2647, %v2881
        %v2916 = vadd.f32 %v2648, %v2886
        %v2917 = vadd.f32 %v2649, %v2891
        %v2918 = vadd.f32 %v2650, %v2896
        %v2919 = vadd.f32 %v2651, %v2901
        %v2920 = vadd.f32 %v2652, %v2906
        %v2921 = vadd.f32 %v2653, %v2911
        %v2922 = vld [vmem:[%s3] sm:$0x1]
        %v2924 = vlaneseq
        %v2925 = vshrl.u32 %v2924, 7
        %v2926 = vsub.s32 0, %v2925
        %v2927 = vrot.slane %v2922, %v2926
        %v2929 = vadd.f32 %v2914, %v2927
        %v2930 = vadd.f32 %v2915, %v2927
        %v2931 = vadd.f32 %v2916, %v2927
        %v2932 = vadd.f32 %v2917, %v2927
        %v2933 = vadd.f32 %v2918, %v2927
        %v2934 = vadd.f32 %v2919, %v2927
        %v2935 = vadd.f32 %v2920, %v2927
        %v2936 = vadd.f32 %v2921, %v2927
        %v2937 = vmax.f32 %v2929, 0.0
        %v2938 = vmax.f32 %v2930, 0.0
        %v2939 = vmax.f32 %v2931, 0.0
        %v2940 = vmax.f32 %v2932, 0.0
        %v2941 = vmax.f32 %v2933, 0.0
        %v2942 = vmax.f32 %v2934, 0.0
        %v2943 = vmax.f32 %v2935, 0.0
        %v2944 = vmax.f32 %v2936, 0.0
        %2945 = vmatprep.subr.mxu0 0.0
        %2946 = vmatpush1.msra.mxu0 %v2937
        %2947 = vmatprep.subr.mxu0 0.0
        %2948 = vmatpush1.msra.mxu0 %v2938
        %2949 = vmatprep.subr.mxu0 0.0
        %2950 = vmatpush1.msra.mxu0 %v2939
        %2951 = vmatprep.subr.mxu0 0.0
        %2952 = vmatpush1.msra.mxu0 %v2940
        %2953 = vmatprep.subr.mxu0 0.0
        %2954 = vmatpush1.msra.mxu0 %v2941
        %2955 = vmatprep.subr.mxu0 0.0
        %2956 = vmatpush1.msra.mxu0 %v2942
        %2957 = vmatprep.subr.mxu0 0.0
        %2958 = vmatpush1.msra.mxu0 %v2943
        %2959 = vmatprep.subr.mxu0 0.0
        %2960 = vmatpush1.msra.mxu0 %v2944
        %2961 = vmatprep.subr.mxu0 0.0
        %2962 = vmatpush1.msra.mxu0 0.0
        %2963 = vmatprep.subr.mxu0 0.0
        %2964 = vmatpush1.msra.mxu0 0.0
        %2965 = vmatprep.subr.mxu0 0.0
        %2966 = vmatpush1.msra.mxu0 0.0
        %2967 = vmatprep.subr.mxu0 0.0
        %2968 = vmatpush1.msra.mxu0 0.0
        %2969 = vmatprep.subr.mxu0 0.0
        %2970 = vmatpush1.msra.mxu0 0.0
        %2971 = vmatprep.subr.mxu0 0.0
        %2972 = vmatpush1.msra.mxu0 0.0
        %2973 = vmatprep.subr.mxu0 0.0
        %2974 = vmatpush1.msra.mxu0 0.0
        %2975 = vmatprep.subr.mxu0 0.0
        %2976 = vmatpush1.msra.mxu0 0.0
        %2977 = vmatprep.subr.mxu0 0.0
        %2978 = vmatpush1.msra.mxu0 0.0
        %2979 = vmatprep.subr.mxu0 0.0
        %2980 = vmatpush1.msra.mxu0 0.0
        %2981 = vmatprep.subr.mxu0 0.0
        %2982 = vmatpush1.msra.mxu0 0.0
        %2983 = vmatprep.subr.mxu0 0.0
        %2984 = vmatpush1.msra.mxu0 0.0
        %2985 = vmatprep.subr.mxu0 0.0
        %2986 = vmatpush1.msra.mxu0 0.0
        %2987 = vmatprep.subr.mxu0 0.0
        %2988 = vmatpush1.msra.mxu0 0.0
        %2989 = vmatprep.subr.mxu0 0.0
        %2990 = vmatpush1.msra.mxu0 0.0
        %2991 = vmatprep.subr.mxu0 0.0
        %2992 = vmatpush1.msra.mxu0 0.0
        %2993 = vmatprep.subr.mxu0 0.0
        %2994 = vmatpush1.msra.mxu0 0.0
        %2995 = vmatprep.subr.mxu0 0.0
        %2996 = vmatpush1.msra.mxu0 0.0
        %2997 = vmatprep.subr.mxu0 0.0
        %2998 = vmatpush1.msra.mxu0 0.0
        %2999 = vmatprep.subr.mxu0 0.0
        %3000 = vmatpush1.msra.mxu0 0.0
        %3001 = vmatprep.subr.mxu0 0.0
        %3002 = vmatpush1.msra.mxu0 0.0
        %3003 = vmatprep.subr.mxu0 0.0
        %3004 = vmatpush1.msra.mxu0 0.0
        %3005 = vmatprep.subr.mxu0 0.0
        %3006 = vmatpush1.msra.mxu0 0.0
        %3007 = vmatprep.subr.mxu0 0.0
        %3008 = vmatpush1.msra.mxu0 0.0
        %3009 = vmatprep.mubr.f32.mxu0 0.0
        %3010 = vmatmul.mubr.f32.gmra.mrb[0].mxu0 %v537
        %v3011 = vpop.f32.mrb[0].mxu0
        %v3012 = vadd.f32 0.0, %v3011
        %v3013 = vpop.f32.mrb[0].mxu0
        %3014 = vmatprep.mubr.f32.mxu0 0.0
        %3015 = vmatmul.mubr.f32.gmra.mrb[0].mxu0 %v540
        %v3016 = vpop.f32.mrb[0].mxu0
        %v3017 = vadd.f32 0.0, %v3016
        %v3018 = vpop.f32.mrb[0].mxu0
        %3019 = vmatprep.mubr.f32.mxu0 0.0
        %3020 = vmatmul.mubr.f32.gmra.mrb[0].mxu0 %v543
        %v3021 = vpop.f32.mrb[0].mxu0
        %v3022 = vadd.f32 0.0, %v3021
        %v3023 = vpop.f32.mrb[0].mxu0
        %3024 = vmatprep.mubr.f32.mxu0 0.0
        %3025 = vmatmul.mubr.f32.gmra.mrb[0].mxu0 %v546
        %v3026 = vpop.f32.mrb[0].mxu0
        %v3027 = vadd.f32 0.0, %v3026
        %v3028 = vpop.f32.mrb[0].mxu0
        %3029 = vmatprep.mubr.f32.mxu0 0.0
        %3030 = vmatmul.mubr.f32.gmra.mrb[0].mxu0 %v549
        %v3031 = vpop.f32.mrb[0].mxu0
        %v3032 = vadd.f32 0.0, %v3031
        %v3033 = vpop.f32.mrb[0].mxu0
        %3034 = vmatprep.mubr.f32.mxu0 0.0
        %3035 = vmatmul.mubr.f32.gmra.mrb[0].mxu0 %v552
        %v3036 = vpop.f32.mrb[0].mxu0
        %v3037 = vadd.f32 0.0, %v3036
        %v3038 = vpop.f32.mrb[0].mxu0
        %3039 = vmatprep.mubr.f32.mxu0 0.0
        %3040 = vmatmul.mubr.f32.gmra.mrb[0].mxu0 %v555
        %v3041 = vpop.f32.mrb[0].mxu0
        %v3042 = vadd.f32 0.0, %v3041
        %v3043 = vpop.f32.mrb[0].mxu0
        %3044 = vmatprep.mubr.f32.mxu0 0.0
        %3045 = vmatmul.mubr.f32.gmra.mrb[0].mxu0 %v558
        %v3046 = vpop.f32.mrb[0].mxu0
        %v3047 = vadd.f32 0.0, %v3046
        %v3048 = vpop.f32.mrb[0].mxu0
        %3049 = vdwg.mxu0
        %v3050 = vld [vmem:[#allocation8] sm:$0xff]
        %v3051 = vld [vmem:[#allocation8 + $0x8] sm:$0xff]
        %v3052 = vld [vmem:[#allocation8 + $0x10] sm:$0xff]
        %v3053 = vld [vmem:[#allocation8 + $0x18] sm:$0xff]
        %v3054 = vld [vmem:[#allocation8 + $0x20] sm:$0xff]
        %v3055 = vld [vmem:[#allocation8 + $0x28] sm:$0xff]
        %v3056 = vld [vmem:[#allocation8 + $0x30] sm:$0xff]
        %v3057 = vld [vmem:[#allocation8 + $0x38] sm:$0xff]
        %v3058 = vld [vmem:[#allocation8 + $0x40] sm:$0xff]
        %v3059 = vld [vmem:[#allocation8 + $0x48] sm:$0xff]
        %v3060 = vld [vmem:[#allocation8 + $0x50] sm:$0xff]
        %v3061 = vld [vmem:[#allocation8 + $0x58] sm:$0xff]
        %v3062 = vld [vmem:[#allocation8 + $0x60] sm:$0xff]
        %v3063 = vld [vmem:[#allocation8 + $0x68] sm:$0xff]
        %v3064 = vld [vmem:[#allocation8 + $0x70] sm:$0xff]
        %v3065 = vld [vmem:[#allocation8 + $0x78] sm:$0xff]
        %3066 = vmatprep.subr.mxu0 0.0
        %3067 = vmatpush1.msra.mxu0 %v2937
        %3068 = vmatprep.subr.mxu0 0.0
        %3069 = vmatpush1.msra.mxu0 %v2938
        %3070 = vmatprep.subr.mxu0 0.0
        %3071 = vmatpush1.msra.mxu0 %v2939
        %3072 = vmatprep.subr.mxu0 0.0
        %3073 = vmatpush1.msra.mxu0 %v2940
        %3074 = vmatprep.subr.mxu0 0.0
        %3075 = vmatpush1.msra.mxu0 %v2941
        %3076 = vmatprep.subr.mxu0 0.0
        %3077 = vmatpush1.msra.mxu0 %v2942
        %3078 = vmatprep.subr.mxu0 0.0
        %3079 = vmatpush1.msra.mxu0 %v2943
        %3080 = vmatprep.subr.mxu0 0.0
        %3081 = vmatpush1.msra.mxu0 %v2944
        %3082 = vmatprep.subr.mxu0 0.0
        %3083 = vmatpush1.msra.mxu0 0.0
        %3084 = vmatprep.subr.mxu0 0.0
        %3085 = vmatpush1.msra.mxu0 0.0
        %3086 = vmatprep.subr.mxu0 0.0
        %3087 = vmatpush1.msra.mxu0 0.0
        %3088 = vmatprep.subr.mxu0 0.0
        %3089 = vmatpush1.msra.mxu0 0.0
        %3090 = vmatprep.subr.mxu0 0.0
        %3091 = vmatpush1.msra.mxu0 0.0
        %3092 = vmatprep.subr.mxu0 0.0
        %3093 = vmatpush1.msra.mxu0 0.0
        %3094 = vmatprep.subr.mxu0 0.0
        %3095 = vmatpush1.msra.mxu0 0.0
        %3096 = vmatprep.subr.mxu0 0.0
        %3097 = vmatpush1.msra.mxu0 0.0
        %3098 = vmatprep.subr.mxu0 0.0
        %3099 = vmatpush1.msra.mxu0 0.0
        %3100 = vmatprep.subr.mxu0 0.0
        %3101 = vmatpush1.msra.mxu0 0.0
        %3102 = vmatprep.subr.mxu0 0.0
        %3103 = vmatpush1.msra.mxu0 0.0
        %3104 = vmatprep.subr.mxu0 0.0
        %3105 = vmatpush1.msra.mxu0 0.0
        %3106 = vmatprep.subr.mxu0 0.0
        %3107 = vmatpush1.msra.mxu0 0.0
        %3108 = vmatprep.subr.mxu0 0.0
        %3109 = vmatpush1.msra.mxu0 0.0
        %3110 = vmatprep.subr.mxu0 0.0
        %3111 = vmatpush1.msra.mxu0 0.0
        %3112 = vmatprep.subr.mxu0 0.0
        %3113 = vmatpush1.msra.mxu0 0.0
        %3114 = vmatprep.subr.mxu0 0.0
        %3115 = vmatpush1.msra.mxu0 0.0
        %3116 = vmatprep.subr.mxu0 0.0
        %3117 = vmatpush1.msra.mxu0 0.0
        %3118 = vmatprep.subr.mxu0 0.0
        %3119 = vmatpush1.msra.mxu0 0.0
        %3120 = vmatprep.subr.mxu0 0.0
        %3121 = vmatpush1.msra.mxu0 0.0
        %3122 = vmatprep.subr.mxu0 0.0
        %3123 = vmatpush1.msra.mxu0 0.0
        %3124 = vmatprep.subr.mxu0 0.0
        %3125 = vmatpush1.msra.mxu0 0.0
        %3126 = vmatprep.subr.mxu0 0.0
        %3127 = vmatpush1.msra.mxu0 0.0
        %3128 = vmatprep.subr.mxu0 0.0
        %3129 = vmatpush1.msra.mxu0 0.0
        %3130 = vmatprep.mubr.f32.mxu0 0.0
        %3131 = vmatmul.mubr.f32.gmra.mrb[0].mxu0 %v691
        %v3132 = vpop.f32.mrb[0].mxu0
        %v3133 = vadd.f32 0.0, %v3132
        %v3134 = vpop.f32.mrb[0].mxu0
        %3135 = vmatprep.mubr.f32.mxu0 0.0
        %3136 = vmatmul.mubr.f32.gmra.mrb[0].mxu0 %v694
        %v3137 = vpop.f32.mrb[0].mxu0
        %v3138 = vadd.f32 0.0, %v3137
        %v3139 = vpop.f32.mrb[0].mxu0
        %3140 = vmatprep.mubr.f32.mxu0 0.0
        %3141 = vmatmul.mubr.f32.gmra.mrb[0].mxu0 %v697
        %v3142 = vpop.f32.mrb[0].mxu0
        %v3143 = vadd.f32 0.0, %v3142
        %v3144 = vpop.f32.mrb[0].mxu0
        %3145 = vmatprep.mubr.f32.mxu0 0.0
        %3146 = vmatmul.mubr.f32.gmra.mrb[0].mxu0 %v700
        %v3147 = vpop.f32.mrb[0].mxu0
        %v3148 = vadd.f32 0.0, %v3147
        %v3149 = vpop.f32.mrb[0].mxu0
        %3150 = vmatprep.mubr.f32.mxu0 0.0
        %3151 = vmatmul.mubr.f32.gmra.mrb[0].mxu0 %v703
        %v3152 = vpop.f32.mrb[0].mxu0
        %v3153 = vadd.f32 0.0, %v3152
        %v3154 = vpop.f32.mrb[0].mxu0
        %3155 = vmatprep.mubr.f32.mxu0 0.0
        %3156 = vmatmul.mubr.f32.gmra.mrb[0].mxu0 %v706
        %v3157 = vpop.f32.mrb[0].mxu0
        %v3158 = vadd.f32 0.0, %v3157
        %v3159 = vpop.f32.mrb[0].mxu0
        %3160 = vmatprep.mubr.f32.mxu0 0.0
        %3161 = vmatmul.mubr.f32.gmra.mrb[0].mxu0 %v709
        %v3162 = vpop.f32.mrb[0].mxu0
        %v3163 = vadd.f32 0.0, %v3162
        %v3164 = vpop.f32.mrb[0].mxu0
        %3165 = vmatprep.mubr.f32.mxu0 0.0
        %3166 = vmatmul.mubr.f32.gmra.mrb[0].mxu0 %v712
        %v3167 = vpop.f32.mrb[0].mxu0
        %v3168 = vadd.f32 0.0, %v3167
        %v3169 = vpop.f32.mrb[0].mxu0
        %3170 = vdwg.mxu0
        %s3171 = scalar_lea.vmem [#allocation8], 128
        %v3172 = vld [vmem:[%s3171] sm:$0xff]
        %v3173 = vld [vmem:[%s3171 + $0x8] sm:$0xff]
        %v3174 = vld [vmem:[%s3171 + $0x10] sm:$0xff]
        %v3175 = vld [vmem:[%s3171 + $0x18] sm:$0xff]
        %v3176 = vld [vmem:[%s3171 + $0x20] sm:$0xff]
        %v3177 = vld [vmem:[%s3171 + $0x28] sm:$0xff]
        %v3178 = vld [vmem:[%s3171 + $0x30] sm:$0xff]
        %v3179 = vld [vmem:[%s3171 + $0x38] sm:$0xff]
        %v3180 = vld [vmem:[%s3171 + $0x40] sm:$0xff]
        %v3181 = vld [vmem:[%s3171 + $0x48] sm:$0xff]
        %v3182 = vld [vmem:[%s3171 + $0x50] sm:$0xff]
        %v3183 = vld [vmem:[%s3171 + $0x58] sm:$0xff]
        %v3184 = vld [vmem:[%s3171 + $0x60] sm:$0xff]
        %v3185 = vld [vmem:[%s3171 + $0x68] sm:$0xff]
        %v3186 = vld [vmem:[%s3171 + $0x70] sm:$0xff]
        %v3187 = vld [vmem:[%s3171 + $0x78] sm:$0xff]
        %3188 = vmatprep.subr.mxu0 0.0
        %3189 = vmatpush1.msra.mxu0 %v3172
        %3190 = vmatprep.subr.mxu0 0.0
        %3191 = vmatpush1.msra.mxu0 %v3173
        %3192 = vmatprep.subr.mxu0 0.0
        %3193 = vmatpush1.msra.mxu0 %v3174
        %3194 = vmatprep.subr.mxu0 0.0
        %3195 = vmatpush1.msra.mxu0 %v3175
        %3196 = vmatprep.subr.mxu0 0.0
        %3197 = vmatpush1.msra.mxu0 %v3176
        %3198 = vmatprep.subr.mxu0 0.0
        %3199 = vmatpush1.msra.mxu0 %v3177
        %3200 = vmatprep.subr.mxu0 0.0
        %3201 = vmatpush1.msra.mxu0 %v3178
        %3202 = vmatprep.subr.mxu0 0.0
        %3203 = vmatpush1.msra.mxu0 %v3179
        %3204 = vmatprep.subr.mxu0 0.0
        %3205 = vmatpush1.msra.mxu0 %v3180
        %3206 = vmatprep.subr.mxu0 0.0
        %3207 = vmatpush1.msra.mxu0 %v3181
        %3208 = vmatprep.subr.mxu0 0.0
        %3209 = vmatpush1.msra.mxu0 %v3182
        %3210 = vmatprep.subr.mxu0 0.0
        %3211 = vmatpush1.msra.mxu0 %v3183
        %3212 = vmatprep.subr.mxu0 0.0
        %3213 = vmatpush1.msra.mxu0 %v3184
        %3214 = vmatprep.subr.mxu0 0.0
        %3215 = vmatpush1.msra.mxu0 %v3185
        %3216 = vmatprep.subr.mxu0 0.0
        %3217 = vmatpush1.msra.mxu0 %v3186
        %3218 = vmatprep.subr.mxu0 0.0
        %3219 = vmatpush1.msra.mxu0 %v3187
        %3220 = vmatprep.subr.mxu0 0.0
        %3221 = vmatpush1.msra.mxu0 0.0
        %3222 = vmatprep.subr.mxu0 0.0
        %3223 = vmatpush1.msra.mxu0 0.0
        %3224 = vmatprep.subr.mxu0 0.0
        %3225 = vmatpush1.msra.mxu0 0.0
        %3226 = vmatprep.subr.mxu0 0.0
        %3227 = vmatpush1.msra.mxu0 0.0
        %3228 = vmatprep.subr.mxu0 0.0
        %3229 = vmatpush1.msra.mxu0 0.0
        %3230 = vmatprep.subr.mxu0 0.0
        %3231 = vmatpush1.msra.mxu0 0.0
        %3232 = vmatprep.subr.mxu0 0.0
        %3233 = vmatpush1.msra.mxu0 0.0
        %3234 = vmatprep.subr.mxu0 0.0
        %3235 = vmatpush1.msra.mxu0 0.0
        %3236 = vmatprep.subr.mxu0 0.0
        %3237 = vmatpush1.msra.mxu0 0.0
        %3238 = vmatprep.subr.mxu0 0.0
        %3239 = vmatpush1.msra.mxu0 0.0
        %3240 = vmatprep.subr.mxu0 0.0
        %3241 = vmatpush1.msra.mxu0 0.0
        %3242 = vmatprep.subr.mxu0 0.0
        %3243 = vmatpush1.msra.mxu0 0.0
        %3244 = vmatprep.subr.mxu0 0.0
        %3245 = vmatpush1.msra.mxu0 0.0
        %3246 = vmatprep.subr.mxu0 0.0
        %3247 = vmatpush1.msra.mxu0 0.0
        %3248 = vmatprep.subr.mxu0 0.0
        %3249 = vmatpush1.msra.mxu0 0.0
        %3250 = vmatprep.subr.mxu0 0.0
        %3251 = vmatpush1.msra.mxu0 0.0
        %3252 = vmatprep.mubr.f32.mxu0 0.0
        %3253 = vmatmul.mubr.f32.gmra.mrb[0].mxu0 %v3133
        %v3254 = vpop.f32.mrb[0].mxu0
        %v3255 = vadd.f32 0.0, %v3254
        %v3256 = vpop.f32.mrb[0].mxu0
        %3257 = vmatprep.mubr.f32.mxu0 0.0
        %3258 = vmatmul.mubr.f32.gmra.mrb[0].mxu0 %v3138
        %v3259 = vpop.f32.mrb[0].mxu0
        %v3260 = vadd.f32 0.0, %v3259
        %v3261 = vpop.f32.mrb[0].mxu0
        %3262 = vmatprep.mubr.f32.mxu0 0.0
        %3263 = vmatmul.mubr.f32.gmra.mrb[0].mxu0 %v3143
        %v3264 = vpop.f32.mrb[0].mxu0
        %v3265 = vadd.f32 0.0, %v3264
        %v3266 = vpop.f32.mrb[0].mxu0
        %3267 = vmatprep.mubr.f32.mxu0 0.0
        %3268 = vmatmul.mubr.f32.gmra.mrb[0].mxu0 %v3148
        %v3269 = vpop.f32.mrb[0].mxu0
        %v3270 = vadd.f32 0.0, %v3269
        %v3271 = vpop.f32.mrb[0].mxu0
        %3272 = vmatprep.mubr.f32.mxu0 0.0
        %3273 = vmatmul.mubr.f32.gmra.mrb[0].mxu0 %v3153
        %v3274 = vpop.f32.mrb[0].mxu0
        %v3275 = vadd.f32 0.0, %v3274
        %v3276 = vpop.f32.mrb[0].mxu0
        %3277 = vmatprep.mubr.f32.mxu0 0.0
        %3278 = vmatmul.mubr.f32.gmra.mrb[0].mxu0 %v3158
        %v3279 = vpop.f32.mrb[0].mxu0
        %v3280 = vadd.f32 0.0, %v3279
        %v3281 = vpop.f32.mrb[0].mxu0
        %3282 = vmatprep.mubr.f32.mxu0 0.0
        %3283 = vmatmul.mubr.f32.gmra.mrb[0].mxu0 %v3163
        %v3284 = vpop.f32.mrb[0].mxu0
        %v3285 = vadd.f32 0.0, %v3284
        %v3286 = vpop.f32.mrb[0].mxu0
        %3287 = vmatprep.mubr.f32.mxu0 0.0
        %3288 = vmatmul.mubr.f32.gmra.mrb[0].mxu0 %v3168
        %v3289 = vpop.f32.mrb[0].mxu0
        %v3290 = vadd.f32 0.0, %v3289
        %v3291 = vpop.f32.mrb[0].mxu0
        %3292 = vdwg.mxu0
        %3293 = vmatprep.subr.mxu0 0.0
        %3294 = vmatpush1.msra.mxu0 %v3050
        %3295 = vmatprep.subr.mxu0 0.0
        %3296 = vmatpush1.msra.mxu0 %v3051
        %3297 = vmatprep.subr.mxu0 0.0
        %3298 = vmatpush1.msra.mxu0 %v3052
        %3299 = vmatprep.subr.mxu0 0.0
        %3300 = vmatpush1.msra.mxu0 %v3053
        %3301 = vmatprep.subr.mxu0 0.0
        %3302 = vmatpush1.msra.mxu0 %v3054
        %3303 = vmatprep.subr.mxu0 0.0
        %3304 = vmatpush1.msra.mxu0 %v3055
        %3305 = vmatprep.subr.mxu0 0.0
        %3306 = vmatpush1.msra.mxu0 %v3056
        %3307 = vmatprep.subr.mxu0 0.0
        %3308 = vmatpush1.msra.mxu0 %v3057
        %3309 = vmatprep.subr.mxu0 0.0
        %3310 = vmatpush1.msra.mxu0 %v3058
        %3311 = vmatprep.subr.mxu0 0.0
        %3312 = vmatpush1.msra.mxu0 %v3059
        %3313 = vmatprep.subr.mxu0 0.0
        %3314 = vmatpush1.msra.mxu0 %v3060
        %3315 = vmatprep.subr.mxu0 0.0
        %3316 = vmatpush1.msra.mxu0 %v3061
        %3317 = vmatprep.subr.mxu0 0.0
        %3318 = vmatpush1.msra.mxu0 %v3062
        %3319 = vmatprep.subr.mxu0 0.0
        %3320 = vmatpush1.msra.mxu0 %v3063
        %3321 = vmatprep.subr.mxu0 0.0
        %3322 = vmatpush1.msra.mxu0 %v3064
        %3323 = vmatprep.subr.mxu0 0.0
        %3324 = vmatpush1.msra.mxu0 %v3065
        %3325 = vmatprep.subr.mxu0 0.0
        %3326 = vmatpush1.msra.mxu0 0.0
        %3327 = vmatprep.subr.mxu0 0.0
        %3328 = vmatpush1.msra.mxu0 0.0
        %3329 = vmatprep.subr.mxu0 0.0
        %3330 = vmatpush1.msra.mxu0 0.0
        %3331 = vmatprep.subr.mxu0 0.0
        %3332 = vmatpush1.msra.mxu0 0.0
        %3333 = vmatprep.subr.mxu0 0.0
        %3334 = vmatpush1.msra.mxu0 0.0
        %3335 = vmatprep.subr.mxu0 0.0
        %3336 = vmatpush1.msra.mxu0 0.0
        %3337 = vmatprep.subr.mxu0 0.0
        %3338 = vmatpush1.msra.mxu0 0.0
        %3339 = vmatprep.subr.mxu0 0.0
        %3340 = vmatpush1.msra.mxu0 0.0
        %3341 = vmatprep.subr.mxu0 0.0
        %3342 = vmatpush1.msra.mxu0 0.0
        %3343 = vmatprep.subr.mxu0 0.0
        %3344 = vmatpush1.msra.mxu0 0.0
        %3345 = vmatprep.subr.mxu0 0.0
        %3346 = vmatpush1.msra.mxu0 0.0
        %3347 = vmatprep.subr.mxu0 0.0
        %3348 = vmatpush1.msra.mxu0 0.0
        %3349 = vmatprep.subr.mxu0 0.0
        %3350 = vmatpush1.msra.mxu0 0.0
        %3351 = vmatprep.subr.mxu0 0.0
        %3352 = vmatpush1.msra.mxu0 0.0
        %3353 = vmatprep.subr.mxu0 0.0
        %3354 = vmatpush1.msra.mxu0 0.0
        %3355 = vmatprep.subr.mxu0 0.0
        %3356 = vmatpush1.msra.mxu0 0.0
        %3357 = vmatprep.mubr.f32.mxu0 0.0
        %3358 = vmatmul.mubr.f32.gmra.mrb[0].mxu0 %v3012
        %v3359 = vpop.f32.mrb[0].mxu0
        %v3360 = vadd.f32 %v3255, %v3359
        %v3361 = vpop.f32.mrb[0].mxu0
        %3362 = vmatprep.mubr.f32.mxu0 0.0
        %3363 = vmatmul.mubr.f32.gmra.mrb[0].mxu0 %v3017
        %v3364 = vpop.f32.mrb[0].mxu0
        %v3365 = vadd.f32 %v3260, %v3364
        %v3366 = vpop.f32.mrb[0].mxu0
        %3367 = vmatprep.mubr.f32.mxu0 0.0
        %3368 = vmatmul.mubr.f32.gmra.mrb[0].mxu0 %v3022
        %v3369 = vpop.f32.mrb[0].mxu0
        %v3370 = vadd.f32 %v3265, %v3369
        %v3371 = vpop.f32.mrb[0].mxu0
        %3372 = vmatprep.mubr.f32.mxu0 0.0
        %3373 = vmatmul.mubr.f32.gmra.mrb[0].mxu0 %v3027
        %v3374 = vpop.f32.mrb[0].mxu0
        %v3375 = vadd.f32 %v3270, %v3374
        %v3376 = vpop.f32.mrb[0].mxu0
        %3377 = vmatprep.mubr.f32.mxu0 0.0
        %3378 = vmatmul.mubr.f32.gmra.mrb[0].mxu0 %v3032
        %v3379 = vpop.f32.mrb[0].mxu0
        %v3380 = vadd.f32 %v3275, %v3379
        %v3381 = vpop.f32.mrb[0].mxu0
        %3382 = vmatprep.mubr.f32.mxu0 0.0
        %3383 = vmatmul.mubr.f32.gmra.mrb[0].mxu0 %v3037
        %v3384 = vpop.f32.mrb[0].mxu0
        %v3385 = vadd.f32 %v3280, %v3384
        %v3386 = vpop.f32.mrb[0].mxu0
        %3387 = vmatprep.mubr.f32.mxu0 0.0
        %3388 = vmatmul.mubr.f32.gmra.mrb[0].mxu0 %v3042
        %v3389 = vpop.f32.mrb[0].mxu0
        %v3390 = vadd.f32 %v3285, %v3389
        %v3391 = vpop.f32.mrb[0].mxu0
        %3392 = vmatprep.mubr.f32.mxu0 0.0
        %3393 = vmatmul.mubr.f32.gmra.mrb[0].mxu0 %v3047
        %v3394 = vpop.f32.mrb[0].mxu0
        %v3395 = vadd.f32 %v3290, %v3394
        %v3396 = vpop.f32.mrb[0].mxu0
        %3397 = vdwg.mxu0
        %3398 = vmatprep.subr.mxu0 0.0
        %3399 = vmatpush1.msra.mxu0 %v2937
        %3400 = vmatprep.subr.mxu0 0.0
        %3401 = vmatpush1.msra.mxu0 %v2938
        %3402 = vmatprep.subr.mxu0 0.0
        %3403 = vmatpush1.msra.mxu0 %v2939
        %3404 = vmatprep.subr.mxu0 0.0
        %3405 = vmatpush1.msra.mxu0 %v2940
        %3406 = vmatprep.subr.mxu0 0.0
        %3407 = vmatpush1.msra.mxu0 %v2941
        %3408 = vmatprep.subr.mxu0 0.0
        %3409 = vmatpush1.msra.mxu0 %v2942
        %3410 = vmatprep.subr.mxu0 0.0
        %3411 = vmatpush1.msra.mxu0 %v2943
        %3412 = vmatprep.subr.mxu0 0.0
        %3413 = vmatpush1.msra.mxu0 %v2944
        %3414 = vmatprep.subr.mxu0 0.0
        %3415 = vmatpush1.msra.mxu0 0.0
        %3416 = vmatprep.subr.mxu0 0.0
        %3417 = vmatpush1.msra.mxu0 0.0
        %3418 = vmatprep.subr.mxu0 0.0
        %3419 = vmatpush1.msra.mxu0 0.0
        %3420 = vmatprep.subr.mxu0 0.0
        %3421 = vmatpush1.msra.mxu0 0.0
        %3422 = vmatprep.subr.mxu0 0.0
        %3423 = vmatpush1.msra.mxu0 0.0
        %3424 = vmatprep.subr.mxu0 0.0
        %3425 = vmatpush1.msra.mxu0 0.0
        %3426 = vmatprep.subr.mxu0 0.0
        %3427 = vmatpush1.msra.mxu0 0.0
        %3428 = vmatprep.subr.mxu0 0.0
        %3429 = vmatpush1.msra.mxu0 0.0
        %3430 = vmatprep.subr.mxu0 0.0
        %3431 = vmatpush1.msra.mxu0 0.0
        %3432 = vmatprep.subr.mxu0 0.0
        %3433 = vmatpush1.msra.mxu0 0.0
        %3434 = vmatprep.subr.mxu0 0.0
        %3435 = vmatpush1.msra.mxu0 0.0
        %3436 = vmatprep.subr.mxu0 0.0
        %3437 = vmatpush1.msra.mxu0 0.0
        %3438 = vmatprep.subr.mxu0 0.0
        %3439 = vmatpush1.msra.mxu0 0.0
        %3440 = vmatprep.subr.mxu0 0.0
        %3441 = vmatpush1.msra.mxu0 0.0
        %3442 = vmatprep.subr.mxu0 0.0
        %3443 = vmatpush1.msra.mxu0 0.0
        %3444 = vmatprep.subr.mxu0 0.0
        %3445 = vmatpush1.msra.mxu0 0.0
        %3446 = vmatprep.subr.mxu0 0.0
        %3447 = vmatpush1.msra.mxu0 0.0
        %3448 = vmatprep.subr.mxu0 0.0
        %3449 = vmatpush1.msra.mxu0 0.0
        %3450 = vmatprep.subr.mxu0 0.0
        %3451 = vmatpush1.msra.mxu0 0.0
        %3452 = vmatprep.subr.mxu0 0.0
        %3453 = vmatpush1.msra.mxu0 0.0
        %3454 = vmatprep.subr.mxu0 0.0
        %3455 = vmatpush1.msra.mxu0 0.0
        %3456 = vmatprep.subr.mxu0 0.0
        %3457 = vmatpush1.msra.mxu0 0.0
        %3458 = vmatprep.subr.mxu0 0.0
        %3459 = vmatpush1.msra.mxu0 0.0
        %3460 = vmatprep.subr.mxu0 0.0
        %3461 = vmatpush1.msra.mxu0 0.0
        %3462 = vmatprep.mubr.f32.mxu0 0.0
        %3463 = vmatmul.mubr.f32.gmra.mrb[0].mxu0 %v1056
        %v3464 = vpop.f32.mrb[0].mxu0
        %v3465 = vadd.f32 0.0, %v3464
        %v3466 = vpop.f32.mrb[0].mxu0
        %3467 = vmatprep.mubr.f32.mxu0 0.0
        %3468 = vmatmul.mubr.f32.gmra.mrb[0].mxu0 %v1059
        %v3469 = vpop.f32.mrb[0].mxu0
        %v3470 = vadd.f32 0.0, %v3469
        %v3471 = vpop.f32.mrb[0].mxu0
        %3472 = vmatprep.mubr.f32.mxu0 0.0
        %3473 = vmatmul.mubr.f32.gmra.mrb[0].mxu0 %v1062
        %v3474 = vpop.f32.mrb[0].mxu0
        %v3475 = vadd.f32 0.0, %v3474
        %v3476 = vpop.f32.mrb[0].mxu0
        %3477 = vmatprep.mubr.f32.mxu0 0.0
        %3478 = vmatmul.mubr.f32.gmra.mrb[0].mxu0 %v1065
        %v3479 = vpop.f32.mrb[0].mxu0
        %v3480 = vadd.f32 0.0, %v3479
        %v3481 = vpop.f32.mrb[0].mxu0
        %3482 = vmatprep.mubr.f32.mxu0 0.0
        %3483 = vmatmul.mubr.f32.gmra.mrb[0].mxu0 %v1068
        %v3484 = vpop.f32.mrb[0].mxu0
        %v3485 = vadd.f32 0.0, %v3484
        %v3486 = vpop.f32.mrb[0].mxu0
        %3487 = vmatprep.mubr.f32.mxu0 0.0
        %3488 = vmatmul.mubr.f32.gmra.mrb[0].mxu0 %v1071
        %v3489 = vpop.f32.mrb[0].mxu0
        %v3490 = vadd.f32 0.0, %v3489
        %v3491 = vpop.f32.mrb[0].mxu0
        %3492 = vmatprep.mubr.f32.mxu0 0.0
        %3493 = vmatmul.mubr.f32.gmra.mrb[0].mxu0 %v1074
        %v3494 = vpop.f32.mrb[0].mxu0
        %v3495 = vadd.f32 0.0, %v3494
        %v3496 = vpop.f32.mrb[0].mxu0
        %3497 = vmatprep.mubr.f32.mxu0 0.0
        %3498 = vmatmul.mubr.f32.gmra.mrb[0].mxu0 %v1077
        %v3499 = vpop.f32.mrb[0].mxu0
        %v3500 = vadd.f32 0.0, %v3499
        %v3501 = vpop.f32.mrb[0].mxu0
        %3502 = vdwg.mxu0
        %s3503 = scalar_lea.vmem [#allocation8], 256
        %v3504 = vld [vmem:[%s3503] sm:$0xff]
        %v3505 = vld [vmem:[%s3503 + $0x8] sm:$0xff]
        %v3506 = vld [vmem:[%s3503 + $0x10] sm:$0xff]
        %v3507 = vld [vmem:[%s3503 + $0x18] sm:$0xff]
        %v3508 = vld [vmem:[%s3503 + $0x20] sm:$0xff]
        %v3509 = vld [vmem:[%s3503 + $0x28] sm:$0xff]
        %v3510 = vld [vmem:[%s3503 + $0x30] sm:$0xff]
        %v3511 = vld [vmem:[%s3503 + $0x38] sm:$0xff]
        %v3512 = vld [vmem:[%s3503 + $0x40] sm:$0xff]
        %v3513 = vld [vmem:[%s3503 + $0x48] sm:$0xff]
        %v3514 = vld [vmem:[%s3503 + $0x50] sm:$0xff]
        %v3515 = vld [vmem:[%s3503 + $0x58] sm:$0xff]
        %v3516 = vld [vmem:[%s3503 + $0x60] sm:$0xff]
        %v3517 = vld [vmem:[%s3503 + $0x68] sm:$0xff]
        %v3518 = vld [vmem:[%s3503 + $0x70] sm:$0xff]
        %v3519 = vld [vmem:[%s3503 + $0x78] sm:$0xff]
        %3520 = vmatprep.subr.mxu0 0.0
        %3521 = vmatpush1.msra.mxu0 %v3504
        %3522 = vmatprep.subr.mxu0 0.0
        %3523 = vmatpush1.msra.mxu0 %v3505
        %3524 = vmatprep.subr.mxu0 0.0
        %3525 = vmatpush1.msra.mxu0 %v3506
        %3526 = vmatprep.subr.mxu0 0.0
        %3527 = vmatpush1.msra.mxu0 %v3507
        %3528 = vmatprep.subr.mxu0 0.0
        %3529 = vmatpush1.msra.mxu0 %v3508
        %3530 = vmatprep.subr.mxu0 0.0
        %3531 = vmatpush1.msra.mxu0 %v3509
        %3532 = vmatprep.subr.mxu0 0.0
        %3533 = vmatpush1.msra.mxu0 %v3510
        %3534 = vmatprep.subr.mxu0 0.0
        %3535 = vmatpush1.msra.mxu0 %v3511
        %3536 = vmatprep.subr.mxu0 0.0
        %3537 = vmatpush1.msra.mxu0 %v3512
        %3538 = vmatprep.subr.mxu0 0.0
        %3539 = vmatpush1.msra.mxu0 %v3513
        %3540 = vmatprep.subr.mxu0 0.0
        %3541 = vmatpush1.msra.mxu0 %v3514
        %3542 = vmatprep.subr.mxu0 0.0
        %3543 = vmatpush1.msra.mxu0 %v3515
        %3544 = vmatprep.subr.mxu0 0.0
        %3545 = vmatpush1.msra.mxu0 %v3516
        %3546 = vmatprep.subr.mxu0 0.0
        %3547 = vmatpush1.msra.mxu0 %v3517
        %3548 = vmatprep.subr.mxu0 0.0
        %3549 = vmatpush1.msra.mxu0 %v3518
        %3550 = vmatprep.subr.mxu0 0.0
        %3551 = vmatpush1.msra.mxu0 %v3519
        %3552 = vmatprep.subr.mxu0 0.0
        %3553 = vmatpush1.msra.mxu0 0.0
        %3554 = vmatprep.subr.mxu0 0.0
        %3555 = vmatpush1.msra.mxu0 0.0
        %3556 = vmatprep.subr.mxu0 0.0
        %3557 = vmatpush1.msra.mxu0 0.0
        %3558 = vmatprep.subr.mxu0 0.0
        %3559 = vmatpush1.msra.mxu0 0.0
        %3560 = vmatprep.subr.mxu0 0.0
        %3561 = vmatpush1.msra.mxu0 0.0
        %3562 = vmatprep.subr.mxu0 0.0
        %3563 = vmatpush1.msra.mxu0 0.0
        %3564 = vmatprep.subr.mxu0 0.0
        %3565 = vmatpush1.msra.mxu0 0.0
        %3566 = vmatprep.subr.mxu0 0.0
        %3567 = vmatpush1.msra.mxu0 0.0
        %3568 = vmatprep.subr.mxu0 0.0
        %3569 = vmatpush1.msra.mxu0 0.0
        %3570 = vmatprep.subr.mxu0 0.0
        %3571 = vmatpush1.msra.mxu0 0.0
        %3572 = vmatprep.subr.mxu0 0.0
        %3573 = vmatpush1.msra.mxu0 0.0
        %3574 = vmatprep.subr.mxu0 0.0
        %3575 = vmatpush1.msra.mxu0 0.0
        %3576 = vmatprep.subr.mxu0 0.0
        %3577 = vmatpush1.msra.mxu0 0.0
        %3578 = vmatprep.subr.mxu0 0.0
        %3579 = vmatpush1.msra.mxu0 0.0
        %3580 = vmatprep.subr.mxu0 0.0
        %3581 = vmatpush1.msra.mxu0 0.0
        %3582 = vmatprep.subr.mxu0 0.0
        %3583 = vmatpush1.msra.mxu0 0.0
        %3584 = vmatprep.mubr.f32.mxu0 0.0
        %3585 = vmatmul.mubr.f32.gmra.mrb[0].mxu0 %v3465
        %v3586 = vpop.f32.mrb[0].mxu0
        %v3587 = vadd.f32 0.0, %v3586
        %v3588 = vpop.f32.mrb[0].mxu0
        %3589 = vmatprep.mubr.f32.mxu0 0.0
        %3590 = vmatmul.mubr.f32.gmra.mrb[0].mxu0 %v3470
        %v3591 = vpop.f32.mrb[0].mxu0
        %v3592 = vadd.f32 0.0, %v3591
        %v3593 = vpop.f32.mrb[0].mxu0
        %3594 = vmatprep.mubr.f32.mxu0 0.0
        %3595 = vmatmul.mubr.f32.gmra.mrb[0].mxu0 %v3475
        %v3596 = vpop.f32.mrb[0].mxu0
        %v3597 = vadd.f32 0.0, %v3596
        %v3598 = vpop.f32.mrb[0].mxu0
        %3599 = vmatprep.mubr.f32.mxu0 0.0
        %3600 = vmatmul.mubr.f32.gmra.mrb[0].mxu0 %v3480
        %v3601 = vpop.f32.mrb[0].mxu0
        %v3602 = vadd.f32 0.0, %v3601
        %v3603 = vpop.f32.mrb[0].mxu0
        %3604 = vmatprep.mubr.f32.mxu0 0.0
        %3605 = vmatmul.mubr.f32.gmra.mrb[0].mxu0 %v3485
        %v3606 = vpop.f32.mrb[0].mxu0
        %v3607 = vadd.f32 0.0, %v3606
        %v3608 = vpop.f32.mrb[0].mxu0
        %3609 = vmatprep.mubr.f32.mxu0 0.0
        %3610 = vmatmul.mubr.f32.gmra.mrb[0].mxu0 %v3490
        %v3611 = vpop.f32.mrb[0].mxu0
        %v3612 = vadd.f32 0.0, %v3611
        %v3613 = vpop.f32.mrb[0].mxu0
        %3614 = vmatprep.mubr.f32.mxu0 0.0
        %3615 = vmatmul.mubr.f32.gmra.mrb[0].mxu0 %v3495
        %v3616 = vpop.f32.mrb[0].mxu0
        %v3617 = vadd.f32 0.0, %v3616
        %v3618 = vpop.f32.mrb[0].mxu0
        %3619 = vmatprep.mubr.f32.mxu0 0.0
        %3620 = vmatmul.mubr.f32.gmra.mrb[0].mxu0 %v3500
        %v3621 = vpop.f32.mrb[0].mxu0
        %v3622 = vadd.f32 0.0, %v3621
        %v3623 = vpop.f32.mrb[0].mxu0
        %3624 = vdwg.mxu0
        %v3625 = vadd.f32 %v3360, %v3587
        %v3626 = vadd.f32 %v3365, %v3592
        %v3627 = vadd.f32 %v3370, %v3597
        %v3628 = vadd.f32 %v3375, %v3602
        %v3629 = vadd.f32 %v3380, %v3607
        %v3630 = vadd.f32 %v3385, %v3612
        %v3631 = vadd.f32 %v3390, %v3617
        %v3632 = vadd.f32 %v3395, %v3622
        %3633 = vmatprep.subr.mxu0 0.0
        %3634 = vmatpush1.msra.mxu0 %v2937
        %3635 = vmatprep.subr.mxu0 0.0
        %3636 = vmatpush1.msra.mxu0 %v2938
        %3637 = vmatprep.subr.mxu0 0.0
        %3638 = vmatpush1.msra.mxu0 %v2939
        %3639 = vmatprep.subr.mxu0 0.0
        %3640 = vmatpush1.msra.mxu0 %v2940
        %3641 = vmatprep.subr.mxu0 0.0
        %3642 = vmatpush1.msra.mxu0 %v2941
        %3643 = vmatprep.subr.mxu0 0.0
        %3644 = vmatpush1.msra.mxu0 %v2942
        %3645 = vmatprep.subr.mxu0 0.0
        %3646 = vmatpush1.msra.mxu0 %v2943
        %3647 = vmatprep.subr.mxu0 0.0
        %3648 = vmatpush1.msra.mxu0 %v2944
        %3649 = vmatprep.subr.mxu0 0.0
        %3650 = vmatpush1.msra.mxu0 0.0
        %3651 = vmatprep.subr.mxu0 0.0
        %3652 = vmatpush1.msra.mxu0 0.0
        %3653 = vmatprep.subr.mxu0 0.0
        %3654 = vmatpush1.msra.mxu0 0.0
        %3655 = vmatprep.subr.mxu0 0.0
        %3656 = vmatpush1.msra.mxu0 0.0
        %3657 = vmatprep.subr.mxu0 0.0
        %3658 = vmatpush1.msra.mxu0 0.0
        %3659 = vmatprep.subr.mxu0 0.0
        %3660 = vmatpush1.msra.mxu0 0.0
        %3661 = vmatprep.subr.mxu0 0.0
        %3662 = vmatpush1.msra.mxu0 0.0
        %3663 = vmatprep.subr.mxu0 0.0
        %3664 = vmatpush1.msra.mxu0 0.0
        %3665 = vmatprep.subr.mxu0 0.0
        %3666 = vmatpush1.msra.mxu0 0.0
        %3667 = vmatprep.subr.mxu0 0.0
        %3668 = vmatpush1.msra.mxu0 0.0
        %3669 = vmatprep.subr.mxu0 0.0
        %3670 = vmatpush1.msra.mxu0 0.0
        %3671 = vmatprep.subr.mxu0 0.0
        %3672 = vmatpush1.msra.mxu0 0.0
        %3673 = vmatprep.subr.mxu0 0.0
        %3674 = vmatpush1.msra.mxu0 0.0
        %3675 = vmatprep.subr.mxu0 0.0
        %3676 = vmatpush1.msra.mxu0 0.0
        %3677 = vmatprep.subr.mxu0 0.0
        %3678 = vmatpush1.msra.mxu0 0.0
        %3679 = vmatprep.subr.mxu0 0.0
        %3680 = vmatpush1.msra.mxu0 0.0
        %3681 = vmatprep.subr.mxu0 0.0
        %3682 = vmatpush1.msra.mxu0 0.0
        %3683 = vmatprep.subr.mxu0 0.0
        %3684 = vmatpush1.msra.mxu0 0.0
        %3685 = vmatprep.subr.mxu0 0.0
        %3686 = vmatpush1.msra.mxu0 0.0
        %3687 = vmatprep.subr.mxu0 0.0
        %3688 = vmatpush1.msra.mxu0 0.0
        %3689 = vmatprep.subr.mxu0 0.0
        %3690 = vmatpush1.msra.mxu0 0.0
        %3691 = vmatprep.subr.mxu0 0.0
        %3692 = vmatpush1.msra.mxu0 0.0
        %3693 = vmatprep.subr.mxu0 0.0
        %3694 = vmatpush1.msra.mxu0 0.0
        %3695 = vmatprep.subr.mxu0 0.0
        %3696 = vmatpush1.msra.mxu0 0.0
        %3697 = vmatprep.mubr.f32.mxu0 0.0
        %3698 = vmatmul.mubr.f32.gmra.mrb[0].mxu0 %v1324
        %v3699 = vpop.f32.mrb[0].mxu0
        %v3700 = vadd.f32 0.0, %v3699
        %v3701 = vpop.f32.mrb[0].mxu0
        %3702 = vmatprep.mubr.f32.mxu0 0.0
        %3703 = vmatmul.mubr.f32.gmra.mrb[0].mxu0 %v1327
        %v3704 = vpop.f32.mrb[0].mxu0
        %v3705 = vadd.f32 0.0, %v3704
        %v3706 = vpop.f32.mrb[0].mxu0
        %3707 = vmatprep.mubr.f32.mxu0 0.0
        %3708 = vmatmul.mubr.f32.gmra.mrb[0].mxu0 %v1330
        %v3709 = vpop.f32.mrb[0].mxu0
        %v3710 = vadd.f32 0.0, %v3709
        %v3711 = vpop.f32.mrb[0].mxu0
        %3712 = vmatprep.mubr.f32.mxu0 0.0
        %3713 = vmatmul.mubr.f32.gmra.mrb[0].mxu0 %v1333
        %v3714 = vpop.f32.mrb[0].mxu0
        %v3715 = vadd.f32 0.0, %v3714
        %v3716 = vpop.f32.mrb[0].mxu0
        %3717 = vmatprep.mubr.f32.mxu0 0.0
        %3718 = vmatmul.mubr.f32.gmra.mrb[0].mxu0 %v1336
        %v3719 = vpop.f32.mrb[0].mxu0
        %v3720 = vadd.f32 0.0, %v3719
        %v3721 = vpop.f32.mrb[0].mxu0
        %3722 = vmatprep.mubr.f32.mxu0 0.0
        %3723 = vmatmul.mubr.f32.gmra.mrb[0].mxu0 %v1339
        %v3724 = vpop.f32.mrb[0].mxu0
        %v3725 = vadd.f32 0.0, %v3724
        %v3726 = vpop.f32.mrb[0].mxu0
        %3727 = vmatprep.mubr.f32.mxu0 0.0
        %3728 = vmatmul.mubr.f32.gmra.mrb[0].mxu0 %v1342
        %v3729 = vpop.f32.mrb[0].mxu0
        %v3730 = vadd.f32 0.0, %v3729
        %v3731 = vpop.f32.mrb[0].mxu0
        %3732 = vmatprep.mubr.f32.mxu0 0.0
        %3733 = vmatmul.mubr.f32.gmra.mrb[0].mxu0 %v1345
        %v3734 = vpop.f32.mrb[0].mxu0
        %v3735 = vadd.f32 0.0, %v3734
        %v3736 = vpop.f32.mrb[0].mxu0
        %3737 = vdwg.mxu0
        %s3738 = scalar_lea.vmem [#allocation8], 384
        %v3739 = vld [vmem:[%s3738] sm:$0xff]
        %v3740 = vld [vmem:[%s3738 + $0x8] sm:$0xff]
        %v3741 = vld [vmem:[%s3738 + $0x10] sm:$0xff]
        %v3742 = vld [vmem:[%s3738 + $0x18] sm:$0xff]
        %v3743 = vld [vmem:[%s3738 + $0x20] sm:$0xff]
        %v3744 = vld [vmem:[%s3738 + $0x28] sm:$0xff]
        %v3745 = vld [vmem:[%s3738 + $0x30] sm:$0xff]
        %v3746 = vld [vmem:[%s3738 + $0x38] sm:$0xff]
        %v3747 = vld [vmem:[%s3738 + $0x40] sm:$0xff]
        %v3748 = vld [vmem:[%s3738 + $0x48] sm:$0xff]
        %v3749 = vld [vmem:[%s3738 + $0x50] sm:$0xff]
        %v3750 = vld [vmem:[%s3738 + $0x58] sm:$0xff]
        %v3751 = vld [vmem:[%s3738 + $0x60] sm:$0xff]
        %v3752 = vld [vmem:[%s3738 + $0x68] sm:$0xff]
        %v3753 = vld [vmem:[%s3738 + $0x70] sm:$0xff]
        %v3754 = vld [vmem:[%s3738 + $0x78] sm:$0xff]
        %3755 = vmatprep.subr.mxu0 0.0
        %3756 = vmatpush1.msra.mxu0 %v3739
        %3757 = vmatprep.subr.mxu0 0.0
        %3758 = vmatpush1.msra.mxu0 %v3740
        %3759 = vmatprep.subr.mxu0 0.0
        %3760 = vmatpush1.msra.mxu0 %v3741
        %3761 = vmatprep.subr.mxu0 0.0
        %3762 = vmatpush1.msra.mxu0 %v3742
        %3763 = vmatprep.subr.mxu0 0.0
        %3764 = vmatpush1.msra.mxu0 %v3743
        %3765 = vmatprep.subr.mxu0 0.0
        %3766 = vmatpush1.msra.mxu0 %v3744
        %3767 = vmatprep.subr.mxu0 0.0
        %3768 = vmatpush1.msra.mxu0 %v3745
        %3769 = vmatprep.subr.mxu0 0.0
        %3770 = vmatpush1.msra.mxu0 %v3746
        %3771 = vmatprep.subr.mxu0 0.0
        %3772 = vmatpush1.msra.mxu0 %v3747
        %3773 = vmatprep.subr.mxu0 0.0
        %3774 = vmatpush1.msra.mxu0 %v3748
        %3775 = vmatprep.subr.mxu0 0.0
        %3776 = vmatpush1.msra.mxu0 %v3749
        %3777 = vmatprep.subr.mxu0 0.0
        %3778 = vmatpush1.msra.mxu0 %v3750
        %3779 = vmatprep.subr.mxu0 0.0
        %3780 = vmatpush1.msra.mxu0 %v3751
        %3781 = vmatprep.subr.mxu0 0.0
        %3782 = vmatpush1.msra.mxu0 %v3752
        %3783 = vmatprep.subr.mxu0 0.0
        %3784 = vmatpush1.msra.mxu0 %v3753
        %3785 = vmatprep.subr.mxu0 0.0
        %3786 = vmatpush1.msra.mxu0 %v3754
        %3787 = vmatprep.subr.mxu0 0.0
        %3788 = vmatpush1.msra.mxu0 0.0
        %3789 = vmatprep.subr.mxu0 0.0
        %3790 = vmatpush1.msra.mxu0 0.0
        %3791 = vmatprep.subr.mxu0 0.0
        %3792 = vmatpush1.msra.mxu0 0.0
        %3793 = vmatprep.subr.mxu0 0.0
        %3794 = vmatpush1.msra.mxu0 0.0
        %3795 = vmatprep.subr.mxu0 0.0
        %3796 = vmatpush1.msra.mxu0 0.0
        %3797 = vmatprep.subr.mxu0 0.0
        %3798 = vmatpush1.msra.mxu0 0.0
        %3799 = vmatprep.subr.mxu0 0.0
        %3800 = vmatpush1.msra.mxu0 0.0
        %3801 = vmatprep.subr.mxu0 0.0
        %3802 = vmatpush1.msra.mxu0 0.0
        %3803 = vmatprep.subr.mxu0 0.0
        %3804 = vmatpush1.msra.mxu0 0.0
        %3805 = vmatprep.subr.mxu0 0.0
        %3806 = vmatpush1.msra.mxu0 0.0
        %3807 = vmatprep.subr.mxu0 0.0
        %3808 = vmatpush1.msra.mxu0 0.0
        %3809 = vmatprep.subr.mxu0 0.0
        %3810 = vmatpush1.msra.mxu0 0.0
        %3811 = vmatprep.subr.mxu0 0.0
        %3812 = vmatpush1.msra.mxu0 0.0
        %3813 = vmatprep.subr.mxu0 0.0
        %3814 = vmatpush1.msra.mxu0 0.0
        %3815 = vmatprep.subr.mxu0 0.0
        %3816 = vmatpush1.msra.mxu0 0.0
        %3817 = vmatprep.subr.mxu0 0.0
        %3818 = vmatpush1.msra.mxu0 0.0
        %3819 = vmatprep.mubr.f32.mxu0 0.0
        %3820 = vmatmul.mubr.f32.gmra.mrb[0].mxu0 %v3700
        %v3821 = vpop.f32.mrb[0].mxu0
        %v3822 = vadd.f32 0.0, %v3821
        %v3823 = vpop.f32.mrb[0].mxu0
        %3824 = vmatprep.mubr.f32.mxu0 0.0
        %3825 = vmatmul.mubr.f32.gmra.mrb[0].mxu0 %v3705
        %v3826 = vpop.f32.mrb[0].mxu0
        %v3827 = vadd.f32 0.0, %v3826
        %v3828 = vpop.f32.mrb[0].mxu0
        %3829 = vmatprep.mubr.f32.mxu0 0.0
        %3830 = vmatmul.mubr.f32.gmra.mrb[0].mxu0 %v3710
        %v3831 = vpop.f32.mrb[0].mxu0
        %v3832 = vadd.f32 0.0, %v3831
        %v3833 = vpop.f32.mrb[0].mxu0
        %3834 = vmatprep.mubr.f32.mxu0 0.0
        %3835 = vmatmul.mubr.f32.gmra.mrb[0].mxu0 %v3715
        %v3836 = vpop.f32.mrb[0].mxu0
        %v3837 = vadd.f32 0.0, %v3836
        %v3838 = vpop.f32.mrb[0].mxu0
        %3839 = vmatprep.mubr.f32.mxu0 0.0
        %3840 = vmatmul.mubr.f32.gmra.mrb[0].mxu0 %v3720
        %v3841 = vpop.f32.mrb[0].mxu0
        %v3842 = vadd.f32 0.0, %v3841
        %v3843 = vpop.f32.mrb[0].mxu0
        %3844 = vmatprep.mubr.f32.mxu0 0.0
        %3845 = vmatmul.mubr.f32.gmra.mrb[0].mxu0 %v3725
        %v3846 = vpop.f32.mrb[0].mxu0
        %v3847 = vadd.f32 0.0, %v3846
        %v3848 = vpop.f32.mrb[0].mxu0
        %3849 = vmatprep.mubr.f32.mxu0 0.0
        %3850 = vmatmul.mubr.f32.gmra.mrb[0].mxu0 %v3730
        %v3851 = vpop.f32.mrb[0].mxu0
        %v3852 = vadd.f32 0.0, %v3851
        %v3853 = vpop.f32.mrb[0].mxu0
        %3854 = vmatprep.mubr.f32.mxu0 0.0
        %3855 = vmatmul.mubr.f32.gmra.mrb[0].mxu0 %v3735
        %v3856 = vpop.f32.mrb[0].mxu0
        %v3857 = vadd.f32 0.0, %v3856
        %v3858 = vpop.f32.mrb[0].mxu0
        %3859 = vdwg.mxu0
        %v3860 = vadd.f32 %v3625, %v3822
        %v3861 = vadd.f32 %v3626, %v3827
        %v3862 = vadd.f32 %v3627, %v3832
        %v3863 = vadd.f32 %v3628, %v3837
        %v3864 = vadd.f32 %v3629, %v3842
        %v3865 = vadd.f32 %v3630, %v3847
        %v3866 = vadd.f32 %v3631, %v3852
        %v3867 = vadd.f32 %v3632, %v3857
        %3868 = vmatprep.subr.mxu0 0.0
        %3869 = vmatpush1.msra.mxu0 %v2937
        %3870 = vmatprep.subr.mxu0 0.0
        %3871 = vmatpush1.msra.mxu0 %v2938
        %3872 = vmatprep.subr.mxu0 0.0
        %3873 = vmatpush1.msra.mxu0 %v2939
        %3874 = vmatprep.subr.mxu0 0.0
        %3875 = vmatpush1.msra.mxu0 %v2940
        %3876 = vmatprep.subr.mxu0 0.0
        %3877 = vmatpush1.msra.mxu0 %v2941
        %3878 = vmatprep.subr.mxu0 0.0
        %3879 = vmatpush1.msra.mxu0 %v2942
        %3880 = vmatprep.subr.mxu0 0.0
        %3881 = vmatpush1.msra.mxu0 %v2943
        %3882 = vmatprep.subr.mxu0 0.0
        %3883 = vmatpush1.msra.mxu0 %v2944
        %3884 = vmatprep.subr.mxu0 0.0
        %3885 = vmatpush1.msra.mxu0 0.0
        %3886 = vmatprep.subr.mxu0 0.0
        %3887 = vmatpush1.msra.mxu0 0.0
        %3888 = vmatprep.subr.mxu0 0.0
        %3889 = vmatpush1.msra.mxu0 0.0
        %3890 = vmatprep.subr.mxu0 0.0
        %3891 = vmatpush1.msra.mxu0 0.0
        %3892 = vmatprep.subr.mxu0 0.0
        %3893 = vmatpush1.msra.mxu0 0.0
        %3894 = vmatprep.subr.mxu0 0.0
        %3895 = vmatpush1.msra.mxu0 0.0
        %3896 = vmatprep.subr.mxu0 0.0
        %3897 = vmatpush1.msra.mxu0 0.0
        %3898 = vmatprep.subr.mxu0 0.0
        %3899 = vmatpush1.msra.mxu0 0.0
        %3900 = vmatprep.subr.mxu0 0.0
        %3901 = vmatpush1.msra.mxu0 0.0
        %3902 = vmatprep.subr.mxu0 0.0
        %3903 = vmatpush1.msra.mxu0 0.0
        %3904 = vmatprep.subr.mxu0 0.0
        %3905 = vmatpush1.msra.mxu0 0.0
        %3906 = vmatprep.subr.mxu0 0.0
        %3907 = vmatpush1.msra.mxu0 0.0
        %3908 = vmatprep.subr.mxu0 0.0
        %3909 = vmatpush1.msra.mxu0 0.0
        %3910 = vmatprep.subr.mxu0 0.0
        %3911 = vmatpush1.msra.mxu0 0.0
        %3912 = vmatprep.subr.mxu0 0.0
        %3913 = vmatpush1.msra.mxu0 0.0
        %3914 = vmatprep.subr.mxu0 0.0
        %3915 = vmatpush1.msra.mxu0 0.0
        %3916 = vmatprep.subr.mxu0 0.0
        %3917 = vmatpush1.msra.mxu0 0.0
        %3918 = vmatprep.subr.mxu0 0.0
        %3919 = vmatpush1.msra.mxu0 0.0
        %3920 = vmatprep.subr.mxu0 0.0
        %3921 = vmatpush1.msra.mxu0 0.0
        %3922 = vmatprep.subr.mxu0 0.0
        %3923 = vmatpush1.msra.mxu0 0.0
        %3924 = vmatprep.subr.mxu0 0.0
        %3925 = vmatpush1.msra.mxu0 0.0
        %3926 = vmatprep.subr.mxu0 0.0
        %3927 = vmatpush1.msra.mxu0 0.0
        %3928 = vmatprep.subr.mxu0 0.0
        %3929 = vmatpush1.msra.mxu0 0.0
        %3930 = vmatprep.subr.mxu0 0.0
        %3931 = vmatpush1.msra.mxu0 0.0
        %3932 = vmatprep.mubr.f32.mxu0 0.0
        %3933 = vmatmul.mubr.f32.gmra.mrb[0].mxu0 %v1592
        %v3934 = vpop.f32.mrb[0].mxu0
        %v3935 = vadd.f32 0.0, %v3934
        %v3936 = vpop.f32.mrb[0].mxu0
        %3937 = vmatprep.mubr.f32.mxu0 0.0
        %3938 = vmatmul.mubr.f32.gmra.mrb[0].mxu0 %v1595
        %v3939 = vpop.f32.mrb[0].mxu0
        %v3940 = vadd.f32 0.0, %v3939
        %v3941 = vpop.f32.mrb[0].mxu0
        %3942 = vmatprep.mubr.f32.mxu0 0.0
        %3943 = vmatmul.mubr.f32.gmra.mrb[0].mxu0 %v1598
        %v3944 = vpop.f32.mrb[0].mxu0
        %v3945 = vadd.f32 0.0, %v3944
        %v3946 = vpop.f32.mrb[0].mxu0
        %3947 = vmatprep.mubr.f32.mxu0 0.0
        %3948 = vmatmul.mubr.f32.gmra.mrb[0].mxu0 %v1601
        %v3949 = vpop.f32.mrb[0].mxu0
        %v3950 = vadd.f32 0.0, %v3949
        %v3951 = vpop.f32.mrb[0].mxu0
        %3952 = vmatprep.mubr.f32.mxu0 0.0
        %3953 = vmatmul.mubr.f32.gmra.mrb[0].mxu0 %v1604
        %v3954 = vpop.f32.mrb[0].mxu0
        %v3955 = vadd.f32 0.0, %v3954
        %v3956 = vpop.f32.mrb[0].mxu0
        %3957 = vmatprep.mubr.f32.mxu0 0.0
        %3958 = vmatmul.mubr.f32.gmra.mrb[0].mxu0 %v1607
        %v3959 = vpop.f32.mrb[0].mxu0
        %v3960 = vadd.f32 0.0, %v3959
        %v3961 = vpop.f32.mrb[0].mxu0
        %3962 = vmatprep.mubr.f32.mxu0 0.0
        %3963 = vmatmul.mubr.f32.gmra.mrb[0].mxu0 %v1610
        %v3964 = vpop.f32.mrb[0].mxu0
        %v3965 = vadd.f32 0.0, %v3964
        %v3966 = vpop.f32.mrb[0].mxu0
        %3967 = vmatprep.mubr.f32.mxu0 0.0
        %3968 = vmatmul.mubr.f32.gmra.mrb[0].mxu0 %v1613
        %v3969 = vpop.f32.mrb[0].mxu0
        %v3970 = vadd.f32 0.0, %v3969
        %v3971 = vpop.f32.mrb[0].mxu0
        %3972 = vdwg.mxu0
        %s3973 = scalar_lea.vmem [#allocation8], 512
        %v3974 = vld [vmem:[%s3973] sm:$0xff]
        %v3975 = vld [vmem:[%s3973 + $0x8] sm:$0xff]
        %v3976 = vld [vmem:[%s3973 + $0x10] sm:$0xff]
        %v3977 = vld [vmem:[%s3973 + $0x18] sm:$0xff]
        %v3978 = vld [vmem:[%s3973 + $0x20] sm:$0xff]
        %v3979 = vld [vmem:[%s3973 + $0x28] sm:$0xff]
        %v3980 = vld [vmem:[%s3973 + $0x30] sm:$0xff]
        %v3981 = vld [vmem:[%s3973 + $0x38] sm:$0xff]
        %v3982 = vld [vmem:[%s3973 + $0x40] sm:$0xff]
        %v3983 = vld [vmem:[%s3973 + $0x48] sm:$0xff]
        %v3984 = vld [vmem:[%s3973 + $0x50] sm:$0xff]
        %v3985 = vld [vmem:[%s3973 + $0x58] sm:$0xff]
        %v3986 = vld [vmem:[%s3973 + $0x60] sm:$0xff]
        %v3987 = vld [vmem:[%s3973 + $0x68] sm:$0xff]
        %v3988 = vld [vmem:[%s3973 + $0x70] sm:$0xff]
        %v3989 = vld [vmem:[%s3973 + $0x78] sm:$0xff]
        %3990 = vmatprep.subr.mxu0 0.0
        %3991 = vmatpush1.msra.mxu0 %v3974
        %3992 = vmatprep.subr.mxu0 0.0
        %3993 = vmatpush1.msra.mxu0 %v3975
        %3994 = vmatprep.subr.mxu0 0.0
        %3995 = vmatpush1.msra.mxu0 %v3976
        %3996 = vmatprep.subr.mxu0 0.0
        %3997 = vmatpush1.msra.mxu0 %v3977
        %3998 = vmatprep.subr.mxu0 0.0
        %3999 = vmatpush1.msra.mxu0 %v3978
        %4000 = vmatprep.subr.mxu0 0.0
        %4001 = vmatpush1.msra.mxu0 %v3979
        %4002 = vmatprep.subr.mxu0 0.0
        %4003 = vmatpush1.msra.mxu0 %v3980
        %4004 = vmatprep.subr.mxu0 0.0
        %4005 = vmatpush1.msra.mxu0 %v3981
        %4006 = vmatprep.subr.mxu0 0.0
        %4007 = vmatpush1.msra.mxu0 %v3982
        %4008 = vmatprep.subr.mxu0 0.0
        %4009 = vmatpush1.msra.mxu0 %v3983
        %4010 = vmatprep.subr.mxu0 0.0
        %4011 = vmatpush1.msra.mxu0 %v3984
        %4012 = vmatprep.subr.mxu0 0.0
        %4013 = vmatpush1.msra.mxu0 %v3985
        %4014 = vmatprep.subr.mxu0 0.0
        %4015 = vmatpush1.msra.mxu0 %v3986
        %4016 = vmatprep.subr.mxu0 0.0
        %4017 = vmatpush1.msra.mxu0 %v3987
        %4018 = vmatprep.subr.mxu0 0.0
        %4019 = vmatpush1.msra.mxu0 %v3988
        %4020 = vmatprep.subr.mxu0 0.0
        %4021 = vmatpush1.msra.mxu0 %v3989
        %4022 = vmatprep.subr.mxu0 0.0
        %4023 = vmatpush1.msra.mxu0 0.0
        %4024 = vmatprep.subr.mxu0 0.0
        %4025 = vmatpush1.msra.mxu0 0.0
        %4026 = vmatprep.subr.mxu0 0.0
        %4027 = vmatpush1.msra.mxu0 0.0
        %4028 = vmatprep.subr.mxu0 0.0
        %4029 = vmatpush1.msra.mxu0 0.0
        %4030 = vmatprep.subr.mxu0 0.0
        %4031 = vmatpush1.msra.mxu0 0.0
        %4032 = vmatprep.subr.mxu0 0.0
        %4033 = vmatpush1.msra.mxu0 0.0
        %4034 = vmatprep.subr.mxu0 0.0
        %4035 = vmatpush1.msra.mxu0 0.0
        %4036 = vmatprep.subr.mxu0 0.0
        %4037 = vmatpush1.msra.mxu0 0.0
        %4038 = vmatprep.subr.mxu0 0.0
        %4039 = vmatpush1.msra.mxu0 0.0
        %4040 = vmatprep.subr.mxu0 0.0
        %4041 = vmatpush1.msra.mxu0 0.0
        %4042 = vmatprep.subr.mxu0 0.0
        %4043 = vmatpush1.msra.mxu0 0.0
        %4044 = vmatprep.subr.mxu0 0.0
        %4045 = vmatpush1.msra.mxu0 0.0
        %4046 = vmatprep.subr.mxu0 0.0
        %4047 = vmatpush1.msra.mxu0 0.0
        %4048 = vmatprep.subr.mxu0 0.0
        %4049 = vmatpush1.msra.mxu0 0.0
        %4050 = vmatprep.subr.mxu0 0.0
        %4051 = vmatpush1.msra.mxu0 0.0
        %4052 = vmatprep.subr.mxu0 0.0
        %4053 = vmatpush1.msra.mxu0 0.0
        %4054 = vmatprep.mubr.f32.mxu0 0.0
        %4055 = vmatmul.mubr.f32.gmra.mrb[0].mxu0 %v3935
        %v4056 = vpop.f32.mrb[0].mxu0
        %v4057 = vadd.f32 0.0, %v4056
        %v4058 = vpop.f32.mrb[0].mxu0
        %4059 = vmatprep.mubr.f32.mxu0 0.0
        %4060 = vmatmul.mubr.f32.gmra.mrb[0].mxu0 %v3940
        %v4061 = vpop.f32.mrb[0].mxu0
        %v4062 = vadd.f32 0.0, %v4061
        %v4063 = vpop.f32.mrb[0].mxu0
        %4064 = vmatprep.mubr.f32.mxu0 0.0
        %4065 = vmatmul.mubr.f32.gmra.mrb[0].mxu0 %v3945
        %v4066 = vpop.f32.mrb[0].mxu0
        %v4067 = vadd.f32 0.0, %v4066
        %v4068 = vpop.f32.mrb[0].mxu0
        %4069 = vmatprep.mubr.f32.mxu0 0.0
        %4070 = vmatmul.mubr.f32.gmra.mrb[0].mxu0 %v3950
        %v4071 = vpop.f32.mrb[0].mxu0
        %v4072 = vadd.f32 0.0, %v4071
        %v4073 = vpop.f32.mrb[0].mxu0
        %4074 = vmatprep.mubr.f32.mxu0 0.0
        %4075 = vmatmul.mubr.f32.gmra.mrb[0].mxu0 %v3955
        %v4076 = vpop.f32.mrb[0].mxu0
        %v4077 = vadd.f32 0.0, %v4076
        %v4078 = vpop.f32.mrb[0].mxu0
        %4079 = vmatprep.mubr.f32.mxu0 0.0
        %4080 = vmatmul.mubr.f32.gmra.mrb[0].mxu0 %v3960
        %v4081 = vpop.f32.mrb[0].mxu0
        %v4082 = vadd.f32 0.0, %v4081
        %v4083 = vpop.f32.mrb[0].mxu0
        %4084 = vmatprep.mubr.f32.mxu0 0.0
        %4085 = vmatmul.mubr.f32.gmra.mrb[0].mxu0 %v3965
        %v4086 = vpop.f32.mrb[0].mxu0
        %v4087 = vadd.f32 0.0, %v4086
        %v4088 = vpop.f32.mrb[0].mxu0
        %4089 = vmatprep.mubr.f32.mxu0 0.0
        %4090 = vmatmul.mubr.f32.gmra.mrb[0].mxu0 %v3970
        %v4091 = vpop.f32.mrb[0].mxu0
        %v4092 = vadd.f32 0.0, %v4091
        %v4093 = vpop.f32.mrb[0].mxu0
        %4094 = vdwg.mxu0
        %v4095 = vadd.f32 %v3860, %v4057
        %v4096 = vadd.f32 %v3861, %v4062
        %v4097 = vadd.f32 %v3862, %v4067
        %v4098 = vadd.f32 %v3863, %v4072
        %v4099 = vadd.f32 %v3864, %v4077
        %v4100 = vadd.f32 %v3865, %v4082
        %v4101 = vadd.f32 %v3866, %v4087
        %v4102 = vadd.f32 %v3867, %v4092
        %4103 = vmatprep.subr.mxu0 0.0
        %4104 = vmatpush1.msra.mxu0 %v2937
        %4105 = vmatprep.subr.mxu0 0.0
        %4106 = vmatpush1.msra.mxu0 %v2938
        %4107 = vmatprep.subr.mxu0 0.0
        %4108 = vmatpush1.msra.mxu0 %v2939
        %4109 = vmatprep.subr.mxu0 0.0
        %4110 = vmatpush1.msra.mxu0 %v2940
        %4111 = vmatprep.subr.mxu0 0.0
        %4112 = vmatpush1.msra.mxu0 %v2941
        %4113 = vmatprep.subr.mxu0 0.0
        %4114 = vmatpush1.msra.mxu0 %v2942
        %4115 = vmatprep.subr.mxu0 0.0
        %4116 = vmatpush1.msra.mxu0 %v2943
        %4117 = vmatprep.subr.mxu0 0.0
        %4118 = vmatpush1.msra.mxu0 %v2944
        %4119 = vmatprep.subr.mxu0 0.0
        %4120 = vmatpush1.msra.mxu0 0.0
        %4121 = vmatprep.subr.mxu0 0.0
        %4122 = vmatpush1.msra.mxu0 0.0
        %4123 = vmatprep.subr.mxu0 0.0
        %4124 = vmatpush1.msra.mxu0 0.0
        %4125 = vmatprep.subr.mxu0 0.0
        %4126 = vmatpush1.msra.mxu0 0.0
        %4127 = vmatprep.subr.mxu0 0.0
        %4128 = vmatpush1.msra.mxu0 0.0
        %4129 = vmatprep.subr.mxu0 0.0
        %4130 = vmatpush1.msra.mxu0 0.0
        %4131 = vmatprep.subr.mxu0 0.0
        %4132 = vmatpush1.msra.mxu0 0.0
        %4133 = vmatprep.subr.mxu0 0.0
        %4134 = vmatpush1.msra.mxu0 0.0
        %4135 = vmatprep.subr.mxu0 0.0
        %4136 = vmatpush1.msra.mxu0 0.0
        %4137 = vmatprep.subr.mxu0 0.0
        %4138 = vmatpush1.msra.mxu0 0.0
        %4139 = vmatprep.subr.mxu0 0.0
        %4140 = vmatpush1.msra.mxu0 0.0
        %4141 = vmatprep.subr.mxu0 0.0
        %4142 = vmatpush1.msra.mxu0 0.0
        %4143 = vmatprep.subr.mxu0 0.0
        %4144 = vmatpush1.msra.mxu0 0.0
        %4145 = vmatprep.subr.mxu0 0.0
        %4146 = vmatpush1.msra.mxu0 0.0
        %4147 = vmatprep.subr.mxu0 0.0
        %4148 = vmatpush1.msra.mxu0 0.0
        %4149 = vmatprep.subr.mxu0 0.0
        %4150 = vmatpush1.msra.mxu0 0.0
        %4151 = vmatprep.subr.mxu0 0.0
        %4152 = vmatpush1.msra.mxu0 0.0
        %4153 = vmatprep.subr.mxu0 0.0
        %4154 = vmatpush1.msra.mxu0 0.0
        %4155 = vmatprep.subr.mxu0 0.0
        %4156 = vmatpush1.msra.mxu0 0.0
        %4157 = vmatprep.subr.mxu0 0.0
        %4158 = vmatpush1.msra.mxu0 0.0
        %4159 = vmatprep.subr.mxu0 0.0
        %4160 = vmatpush1.msra.mxu0 0.0
        %4161 = vmatprep.subr.mxu0 0.0
        %4162 = vmatpush1.msra.mxu0 0.0
        %4163 = vmatprep.subr.mxu0 0.0
        %4164 = vmatpush1.msra.mxu0 0.0
        %4165 = vmatprep.subr.mxu0 0.0
        %4166 = vmatpush1.msra.mxu0 0.0
        %4167 = vmatprep.mubr.f32.mxu0 0.0
        %4168 = vmatmul.mubr.f32.gmra.mrb[0].mxu0 %v1860
        %v4169 = vpop.f32.mrb[0].mxu0
        %v4170 = vadd.f32 0.0, %v4169
        %v4171 = vpop.f32.mrb[0].mxu0
        %4172 = vmatprep.mubr.f32.mxu0 0.0
        %4173 = vmatmul.mubr.f32.gmra.mrb[0].mxu0 %v1863
        %v4174 = vpop.f32.mrb[0].mxu0
        %v4175 = vadd.f32 0.0, %v4174
        %v4176 = vpop.f32.mrb[0].mxu0
        %4177 = vmatprep.mubr.f32.mxu0 0.0
        %4178 = vmatmul.mubr.f32.gmra.mrb[0].mxu0 %v1866
        %v4179 = vpop.f32.mrb[0].mxu0
        %v4180 = vadd.f32 0.0, %v4179
        %v4181 = vpop.f32.mrb[0].mxu0
        %4182 = vmatprep.mubr.f32.mxu0 0.0
        %4183 = vmatmul.mubr.f32.gmra.mrb[0].mxu0 %v1869
        %v4184 = vpop.f32.mrb[0].mxu0
        %v4185 = vadd.f32 0.0, %v4184
        %v4186 = vpop.f32.mrb[0].mxu0
        %4187 = vmatprep.mubr.f32.mxu0 0.0
        %4188 = vmatmul.mubr.f32.gmra.mrb[0].mxu0 %v1872
        %v4189 = vpop.f32.mrb[0].mxu0
        %v4190 = vadd.f32 0.0, %v4189
        %v4191 = vpop.f32.mrb[0].mxu0
        %4192 = vmatprep.mubr.f32.mxu0 0.0
        %4193 = vmatmul.mubr.f32.gmra.mrb[0].mxu0 %v1875
        %v4194 = vpop.f32.mrb[0].mxu0
        %v4195 = vadd.f32 0.0, %v4194
        %v4196 = vpop.f32.mrb[0].mxu0
        %4197 = vmatprep.mubr.f32.mxu0 0.0
        %4198 = vmatmul.mubr.f32.gmra.mrb[0].mxu0 %v1878
        %v4199 = vpop.f32.mrb[0].mxu0
        %v4200 = vadd.f32 0.0, %v4199
        %v4201 = vpop.f32.mrb[0].mxu0
        %4202 = vmatprep.mubr.f32.mxu0 0.0
        %4203 = vmatmul.mubr.f32.gmra.mrb[0].mxu0 %v1881
        %v4204 = vpop.f32.mrb[0].mxu0
        %v4205 = vadd.f32 0.0, %v4204
        %v4206 = vpop.f32.mrb[0].mxu0
        %4207 = vdwg.mxu0
        %s4208 = scalar_lea.vmem [#allocation8], 640
        %v4209 = vld [vmem:[%s4208] sm:$0xff]
        %v4210 = vld [vmem:[%s4208 + $0x8] sm:$0xff]
        %v4211 = vld [vmem:[%s4208 + $0x10] sm:$0xff]
        %v4212 = vld [vmem:[%s4208 + $0x18] sm:$0xff]
        %v4213 = vld [vmem:[%s4208 + $0x20] sm:$0xff]
        %v4214 = vld [vmem:[%s4208 + $0x28] sm:$0xff]
        %v4215 = vld [vmem:[%s4208 + $0x30] sm:$0xff]
        %v4216 = vld [vmem:[%s4208 + $0x38] sm:$0xff]
        %v4217 = vld [vmem:[%s4208 + $0x40] sm:$0xff]
        %v4218 = vld [vmem:[%s4208 + $0x48] sm:$0xff]
        %v4219 = vld [vmem:[%s4208 + $0x50] sm:$0xff]
        %v4220 = vld [vmem:[%s4208 + $0x58] sm:$0xff]
        %v4221 = vld [vmem:[%s4208 + $0x60] sm:$0xff]
        %v4222 = vld [vmem:[%s4208 + $0x68] sm:$0xff]
        %v4223 = vld [vmem:[%s4208 + $0x70] sm:$0xff]
        %v4224 = vld [vmem:[%s4208 + $0x78] sm:$0xff]
        %4225 = vmatprep.subr.mxu0 0.0
        %4226 = vmatpush1.msra.mxu0 %v4209
        %4227 = vmatprep.subr.mxu0 0.0
        %4228 = vmatpush1.msra.mxu0 %v4210
        %4229 = vmatprep.subr.mxu0 0.0
        %4230 = vmatpush1.msra.mxu0 %v4211
        %4231 = vmatprep.subr.mxu0 0.0
        %4232 = vmatpush1.msra.mxu0 %v4212
        %4233 = vmatprep.subr.mxu0 0.0
        %4234 = vmatpush1.msra.mxu0 %v4213
        %4235 = vmatprep.subr.mxu0 0.0
        %4236 = vmatpush1.msra.mxu0 %v4214
        %4237 = vmatprep.subr.mxu0 0.0
        %4238 = vmatpush1.msra.mxu0 %v4215
        %4239 = vmatprep.subr.mxu0 0.0
        %4240 = vmatpush1.msra.mxu0 %v4216
        %4241 = vmatprep.subr.mxu0 0.0
        %4242 = vmatpush1.msra.mxu0 %v4217
        %4243 = vmatprep.subr.mxu0 0.0
        %4244 = vmatpush1.msra.mxu0 %v4218
        %4245 = vmatprep.subr.mxu0 0.0
        %4246 = vmatpush1.msra.mxu0 %v4219
        %4247 = vmatprep.subr.mxu0 0.0
        %4248 = vmatpush1.msra.mxu0 %v4220
        %4249 = vmatprep.subr.mxu0 0.0
        %4250 = vmatpush1.msra.mxu0 %v4221
        %4251 = vmatprep.subr.mxu0 0.0
        %4252 = vmatpush1.msra.mxu0 %v4222
        %4253 = vmatprep.subr.mxu0 0.0
        %4254 = vmatpush1.msra.mxu0 %v4223
        %4255 = vmatprep.subr.mxu0 0.0
        %4256 = vmatpush1.msra.mxu0 %v4224
        %4257 = vmatprep.subr.mxu0 0.0
        %4258 = vmatpush1.msra.mxu0 0.0
        %4259 = vmatprep.subr.mxu0 0.0
        %4260 = vmatpush1.msra.mxu0 0.0
        %4261 = vmatprep.subr.mxu0 0.0
        %4262 = vmatpush1.msra.mxu0 0.0
        %4263 = vmatprep.subr.mxu0 0.0
        %4264 = vmatpush1.msra.mxu0 0.0
        %4265 = vmatprep.subr.mxu0 0.0
        %4266 = vmatpush1.msra.mxu0 0.0
        %4267 = vmatprep.subr.mxu0 0.0
        %4268 = vmatpush1.msra.mxu0 0.0
        %4269 = vmatprep.subr.mxu0 0.0
        %4270 = vmatpush1.msra.mxu0 0.0
        %4271 = vmatprep.subr.mxu0 0.0
        %4272 = vmatpush1.msra.mxu0 0.0
        %4273 = vmatprep.subr.mxu0 0.0
        %4274 = vmatpush1.msra.mxu0 0.0
        %4275 = vmatprep.subr.mxu0 0.0
        %4276 = vmatpush1.msra.mxu0 0.0
        %4277 = vmatprep.subr.mxu0 0.0
        %4278 = vmatpush1.msra.mxu0 0.0
        %4279 = vmatprep.subr.mxu0 0.0
        %4280 = vmatpush1.msra.mxu0 0.0
        %4281 = vmatprep.subr.mxu0 0.0
        %4282 = vmatpush1.msra.mxu0 0.0
        %4283 = vmatprep.subr.mxu0 0.0
        %4284 = vmatpush1.msra.mxu0 0.0
        %4285 = vmatprep.subr.mxu0 0.0
        %4286 = vmatpush1.msra.mxu0 0.0
        %4287 = vmatprep.subr.mxu0 0.0
        %4288 = vmatpush1.msra.mxu0 0.0
        %4289 = vmatprep.mubr.f32.mxu0 0.0
        %4290 = vmatmul.mubr.f32.gmra.mrb[0].mxu0 %v4170
        %v4291 = vpop.f32.mrb[0].mxu0
        %v4292 = vadd.f32 0.0, %v4291
        %v4293 = vpop.f32.mrb[0].mxu0
        %4294 = vmatprep.mubr.f32.mxu0 0.0
        %4295 = vmatmul.mubr.f32.gmra.mrb[0].mxu0 %v4175
        %v4296 = vpop.f32.mrb[0].mxu0
        %v4297 = vadd.f32 0.0, %v4296
        %v4298 = vpop.f32.mrb[0].mxu0
        %4299 = vmatprep.mubr.f32.mxu0 0.0
        %4300 = vmatmul.mubr.f32.gmra.mrb[0].mxu0 %v4180
        %v4301 = vpop.f32.mrb[0].mxu0
        %v4302 = vadd.f32 0.0, %v4301
        %v4303 = vpop.f32.mrb[0].mxu0
        %4304 = vmatprep.mubr.f32.mxu0 0.0
        %4305 = vmatmul.mubr.f32.gmra.mrb[0].mxu0 %v4185
        %v4306 = vpop.f32.mrb[0].mxu0
        %v4307 = vadd.f32 0.0, %v4306
        %v4308 = vpop.f32.mrb[0].mxu0
        %4309 = vmatprep.mubr.f32.mxu0 0.0
        %4310 = vmatmul.mubr.f32.gmra.mrb[0].mxu0 %v4190
        %v4311 = vpop.f32.mrb[0].mxu0
        %v4312 = vadd.f32 0.0, %v4311
        %v4313 = vpop.f32.mrb[0].mxu0
        %4314 = vmatprep.mubr.f32.mxu0 0.0
        %4315 = vmatmul.mubr.f32.gmra.mrb[0].mxu0 %v4195
        %v4316 = vpop.f32.mrb[0].mxu0
        %v4317 = vadd.f32 0.0, %v4316
        %v4318 = vpop.f32.mrb[0].mxu0
        %4319 = vmatprep.mubr.f32.mxu0 0.0
        %4320 = vmatmul.mubr.f32.gmra.mrb[0].mxu0 %v4200
        %v4321 = vpop.f32.mrb[0].mxu0
        %v4322 = vadd.f32 0.0, %v4321
        %v4323 = vpop.f32.mrb[0].mxu0
        %4324 = vmatprep.mubr.f32.mxu0 0.0
        %4325 = vmatmul.mubr.f32.gmra.mrb[0].mxu0 %v4205
        %v4326 = vpop.f32.mrb[0].mxu0
        %v4327 = vadd.f32 0.0, %v4326
        %v4328 = vpop.f32.mrb[0].mxu0
        %4329 = vdwg.mxu0
        %v4330 = vadd.f32 %v4095, %v4292
        %v4331 = vadd.f32 %v4096, %v4297
        %v4332 = vadd.f32 %v4097, %v4302
        %v4333 = vadd.f32 %v4098, %v4307
        %v4334 = vadd.f32 %v4099, %v4312
        %v4335 = vadd.f32 %v4100, %v4317
        %v4336 = vadd.f32 %v4101, %v4322
        %v4337 = vadd.f32 %v4102, %v4327
        %4338 = vmatprep.subr.mxu0 0.0
        %4339 = vmatpush1.msra.mxu0 %v2937
        %4340 = vmatprep.subr.mxu0 0.0
        %4341 = vmatpush1.msra.mxu0 %v2938
        %4342 = vmatprep.subr.mxu0 0.0
        %4343 = vmatpush1.msra.mxu0 %v2939
        %4344 = vmatprep.subr.mxu0 0.0
        %4345 = vmatpush1.msra.mxu0 %v2940
        %4346 = vmatprep.subr.mxu0 0.0
        %4347 = vmatpush1.msra.mxu0 %v2941
        %4348 = vmatprep.subr.mxu0 0.0
        %4349 = vmatpush1.msra.mxu0 %v2942
        %4350 = vmatprep.subr.mxu0 0.0
        %4351 = vmatpush1.msra.mxu0 %v2943
        %4352 = vmatprep.subr.mxu0 0.0
        %4353 = vmatpush1.msra.mxu0 %v2944
        %4354 = vmatprep.subr.mxu0 0.0
        %4355 = vmatpush1.msra.mxu0 0.0
        %4356 = vmatprep.subr.mxu0 0.0
        %4357 = vmatpush1.msra.mxu0 0.0
        %4358 = vmatprep.subr.mxu0 0.0
        %4359 = vmatpush1.msra.mxu0 0.0
        %4360 = vmatprep.subr.mxu0 0.0
        %4361 = vmatpush1.msra.mxu0 0.0
        %4362 = vmatprep.subr.mxu0 0.0
        %4363 = vmatpush1.msra.mxu0 0.0
        %4364 = vmatprep.subr.mxu0 0.0
        %4365 = vmatpush1.msra.mxu0 0.0
        %4366 = vmatprep.subr.mxu0 0.0
        %4367 = vmatpush1.msra.mxu0 0.0
        %4368 = vmatprep.subr.mxu0 0.0
        %4369 = vmatpush1.msra.mxu0 0.0
        %4370 = vmatprep.subr.mxu0 0.0
        %4371 = vmatpush1.msra.mxu0 0.0
        %4372 = vmatprep.subr.mxu0 0.0
        %4373 = vmatpush1.msra.mxu0 0.0
        %4374 = vmatprep.subr.mxu0 0.0
        %4375 = vmatpush1.msra.mxu0 0.0
        %4376 = vmatprep.subr.mxu0 0.0
        %4377 = vmatpush1.msra.mxu0 0.0
        %4378 = vmatprep.subr.mxu0 0.0
        %4379 = vmatpush1.msra.mxu0 0.0
        %4380 = vmatprep.subr.mxu0 0.0
        %4381 = vmatpush1.msra.mxu0 0.0
        %4382 = vmatprep.subr.mxu0 0.0
        %4383 = vmatpush1.msra.mxu0 0.0
        %4384 = vmatprep.subr.mxu0 0.0
        %4385 = vmatpush1.msra.mxu0 0.0
        %4386 = vmatprep.subr.mxu0 0.0
        %4387 = vmatpush1.msra.mxu0 0.0
        %4388 = vmatprep.subr.mxu0 0.0
        %4389 = vmatpush1.msra.mxu0 0.0
        %4390 = vmatprep.subr.mxu0 0.0
        %4391 = vmatpush1.msra.mxu0 0.0
        %4392 = vmatprep.subr.mxu0 0.0
        %4393 = vmatpush1.msra.mxu0 0.0
        %4394 = vmatprep.subr.mxu0 0.0
        %4395 = vmatpush1.msra.mxu0 0.0
        %4396 = vmatprep.subr.mxu0 0.0
        %4397 = vmatpush1.msra.mxu0 0.0
        %4398 = vmatprep.subr.mxu0 0.0
        %4399 = vmatpush1.msra.mxu0 0.0
        %4400 = vmatprep.subr.mxu0 0.0
        %4401 = vmatpush1.msra.mxu0 0.0
        %4402 = vmatprep.mubr.f32.mxu0 0.0
        %4403 = vmatmul.mubr.f32.gmra.mrb[0].mxu0 %v2128
        %v4404 = vpop.f32.mrb[0].mxu0
        %v4405 = vadd.f32 0.0, %v4404
        %v4406 = vpop.f32.mrb[0].mxu0
        %4407 = vmatprep.mubr.f32.mxu0 0.0
        %4408 = vmatmul.mubr.f32.gmra.mrb[0].mxu0 %v2131
        %v4409 = vpop.f32.mrb[0].mxu0
        %v4410 = vadd.f32 0.0, %v4409
        %v4411 = vpop.f32.mrb[0].mxu0
        %4412 = vmatprep.mubr.f32.mxu0 0.0
        %4413 = vmatmul.mubr.f32.gmra.mrb[0].mxu0 %v2134
        %v4414 = vpop.f32.mrb[0].mxu0
        %v4415 = vadd.f32 0.0, %v4414
        %v4416 = vpop.f32.mrb[0].mxu0
        %4417 = vmatprep.mubr.f32.mxu0 0.0
        %4418 = vmatmul.mubr.f32.gmra.mrb[0].mxu0 %v2137
        %v4419 = vpop.f32.mrb[0].mxu0
        %v4420 = vadd.f32 0.0, %v4419
        %v4421 = vpop.f32.mrb[0].mxu0
        %4422 = vmatprep.mubr.f32.mxu0 0.0
        %4423 = vmatmul.mubr.f32.gmra.mrb[0].mxu0 %v2140
        %v4424 = vpop.f32.mrb[0].mxu0
        %v4425 = vadd.f32 0.0, %v4424
        %v4426 = vpop.f32.mrb[0].mxu0
        %4427 = vmatprep.mubr.f32.mxu0 0.0
        %4428 = vmatmul.mubr.f32.gmra.mrb[0].mxu0 %v2143
        %v4429 = vpop.f32.mrb[0].mxu0
        %v4430 = vadd.f32 0.0, %v4429
        %v4431 = vpop.f32.mrb[0].mxu0
        %4432 = vmatprep.mubr.f32.mxu0 0.0
        %4433 = vmatmul.mubr.f32.gmra.mrb[0].mxu0 %v2146
        %v4434 = vpop.f32.mrb[0].mxu0
        %v4435 = vadd.f32 0.0, %v4434
        %v4436 = vpop.f32.mrb[0].mxu0
        %4437 = vmatprep.mubr.f32.mxu0 0.0
        %4438 = vmatmul.mubr.f32.gmra.mrb[0].mxu0 %v2149
        %v4439 = vpop.f32.mrb[0].mxu0
        %v4440 = vadd.f32 0.0, %v4439
        %v4441 = vpop.f32.mrb[0].mxu0
        %4442 = vdwg.mxu0
        %s4443 = scalar_lea.vmem [#allocation8], 768
        %v4444 = vld [vmem:[%s4443] sm:$0xff]
        %v4445 = vld [vmem:[%s4443 + $0x8] sm:$0xff]
        %v4446 = vld [vmem:[%s4443 + $0x10] sm:$0xff]
        %v4447 = vld [vmem:[%s4443 + $0x18] sm:$0xff]
        %v4448 = vld [vmem:[%s4443 + $0x20] sm:$0xff]
        %v4449 = vld [vmem:[%s4443 + $0x28] sm:$0xff]
        %v4450 = vld [vmem:[%s4443 + $0x30] sm:$0xff]
        %v4451 = vld [vmem:[%s4443 + $0x38] sm:$0xff]
        %v4452 = vld [vmem:[%s4443 + $0x40] sm:$0xff]
        %v4453 = vld [vmem:[%s4443 + $0x48] sm:$0xff]
        %v4454 = vld [vmem:[%s4443 + $0x50] sm:$0xff]
        %v4455 = vld [vmem:[%s4443 + $0x58] sm:$0xff]
        %v4456 = vld [vmem:[%s4443 + $0x60] sm:$0xff]
        %v4457 = vld [vmem:[%s4443 + $0x68] sm:$0xff]
        %v4458 = vld [vmem:[%s4443 + $0x70] sm:$0xff]
        %v4459 = vld [vmem:[%s4443 + $0x78] sm:$0xff]
        %4460 = vmatprep.subr.mxu0 0.0
        %4461 = vmatpush1.msra.mxu0 %v4444
        %4462 = vmatprep.subr.mxu0 0.0
        %4463 = vmatpush1.msra.mxu0 %v4445
        %4464 = vmatprep.subr.mxu0 0.0
        %4465 = vmatpush1.msra.mxu0 %v4446
        %4466 = vmatprep.subr.mxu0 0.0
        %4467 = vmatpush1.msra.mxu0 %v4447
        %4468 = vmatprep.subr.mxu0 0.0
        %4469 = vmatpush1.msra.mxu0 %v4448
        %4470 = vmatprep.subr.mxu0 0.0
        %4471 = vmatpush1.msra.mxu0 %v4449
        %4472 = vmatprep.subr.mxu0 0.0
        %4473 = vmatpush1.msra.mxu0 %v4450
        %4474 = vmatprep.subr.mxu0 0.0
        %4475 = vmatpush1.msra.mxu0 %v4451
        %4476 = vmatprep.subr.mxu0 0.0
        %4477 = vmatpush1.msra.mxu0 %v4452
        %4478 = vmatprep.subr.mxu0 0.0
        %4479 = vmatpush1.msra.mxu0 %v4453
        %4480 = vmatprep.subr.mxu0 0.0
        %4481 = vmatpush1.msra.mxu0 %v4454
        %4482 = vmatprep.subr.mxu0 0.0
        %4483 = vmatpush1.msra.mxu0 %v4455
        %4484 = vmatprep.subr.mxu0 0.0
        %4485 = vmatpush1.msra.mxu0 %v4456
        %4486 = vmatprep.subr.mxu0 0.0
        %4487 = vmatpush1.msra.mxu0 %v4457
        %4488 = vmatprep.subr.mxu0 0.0
        %4489 = vmatpush1.msra.mxu0 %v4458
        %4490 = vmatprep.subr.mxu0 0.0
        %4491 = vmatpush1.msra.mxu0 %v4459
        %4492 = vmatprep.subr.mxu0 0.0
        %4493 = vmatpush1.msra.mxu0 0.0
        %4494 = vmatprep.subr.mxu0 0.0
        %4495 = vmatpush1.msra.mxu0 0.0
        %4496 = vmatprep.subr.mxu0 0.0
        %4497 = vmatpush1.msra.mxu0 0.0
        %4498 = vmatprep.subr.mxu0 0.0
        %4499 = vmatpush1.msra.mxu0 0.0
        %4500 = vmatprep.subr.mxu0 0.0
        %4501 = vmatpush1.msra.mxu0 0.0
        %4502 = vmatprep.subr.mxu0 0.0
        %4503 = vmatpush1.msra.mxu0 0.0
        %4504 = vmatprep.subr.mxu0 0.0
        %4505 = vmatpush1.msra.mxu0 0.0
        %4506 = vmatprep.subr.mxu0 0.0
        %4507 = vmatpush1.msra.mxu0 0.0
        %4508 = vmatprep.subr.mxu0 0.0
        %4509 = vmatpush1.msra.mxu0 0.0
        %4510 = vmatprep.subr.mxu0 0.0
        %4511 = vmatpush1.msra.mxu0 0.0
        %4512 = vmatprep.subr.mxu0 0.0
        %4513 = vmatpush1.msra.mxu0 0.0
        %4514 = vmatprep.subr.mxu0 0.0
        %4515 = vmatpush1.msra.mxu0 0.0
        %4516 = vmatprep.subr.mxu0 0.0
        %4517 = vmatpush1.msra.mxu0 0.0
        %4518 = vmatprep.subr.mxu0 0.0
        %4519 = vmatpush1.msra.mxu0 0.0
        %4520 = vmatprep.subr.mxu0 0.0
        %4521 = vmatpush1.msra.mxu0 0.0
        %4522 = vmatprep.subr.mxu0 0.0
        %4523 = vmatpush1.msra.mxu0 0.0
        %4524 = vmatprep.mubr.f32.mxu0 0.0
        %4525 = vmatmul.mubr.f32.gmra.mrb[0].mxu0 %v4405
        %v4526 = vpop.f32.mrb[0].mxu0
        %v4527 = vadd.f32 0.0, %v4526
        %v4528 = vpop.f32.mrb[0].mxu0
        %4529 = vmatprep.mubr.f32.mxu0 0.0
        %4530 = vmatmul.mubr.f32.gmra.mrb[0].mxu0 %v4410
        %v4531 = vpop.f32.mrb[0].mxu0
        %v4532 = vadd.f32 0.0, %v4531
        %v4533 = vpop.f32.mrb[0].mxu0
        %4534 = vmatprep.mubr.f32.mxu0 0.0
        %4535 = vmatmul.mubr.f32.gmra.mrb[0].mxu0 %v4415
        %v4536 = vpop.f32.mrb[0].mxu0
        %v4537 = vadd.f32 0.0, %v4536
        %v4538 = vpop.f32.mrb[0].mxu0
        %4539 = vmatprep.mubr.f32.mxu0 0.0
        %4540 = vmatmul.mubr.f32.gmra.mrb[0].mxu0 %v4420
        %v4541 = vpop.f32.mrb[0].mxu0
        %v4542 = vadd.f32 0.0, %v4541
        %v4543 = vpop.f32.mrb[0].mxu0
        %4544 = vmatprep.mubr.f32.mxu0 0.0
        %4545 = vmatmul.mubr.f32.gmra.mrb[0].mxu0 %v4425
        %v4546 = vpop.f32.mrb[0].mxu0
        %v4547 = vadd.f32 0.0, %v4546
        %v4548 = vpop.f32.mrb[0].mxu0
        %4549 = vmatprep.mubr.f32.mxu0 0.0
        %4550 = vmatmul.mubr.f32.gmra.mrb[0].mxu0 %v4430
        %v4551 = vpop.f32.mrb[0].mxu0
        %v4552 = vadd.f32 0.0, %v4551
        %v4553 = vpop.f32.mrb[0].mxu0
        %4554 = vmatprep.mubr.f32.mxu0 0.0
        %4555 = vmatmul.mubr.f32.gmra.mrb[0].mxu0 %v4435
        %v4556 = vpop.f32.mrb[0].mxu0
        %v4557 = vadd.f32 0.0, %v4556
        %v4558 = vpop.f32.mrb[0].mxu0
        %4559 = vmatprep.mubr.f32.mxu0 0.0
        %4560 = vmatmul.mubr.f32.gmra.mrb[0].mxu0 %v4440
        %v4561 = vpop.f32.mrb[0].mxu0
        %v4562 = vadd.f32 0.0, %v4561
        %v4563 = vpop.f32.mrb[0].mxu0
        %4564 = vdwg.mxu0
        %v4565 = vadd.f32 %v4330, %v4527
        %v4566 = vadd.f32 %v4331, %v4532
        %v4567 = vadd.f32 %v4332, %v4537
        %v4568 = vadd.f32 %v4333, %v4542
        %v4569 = vadd.f32 %v4334, %v4547
        %v4570 = vadd.f32 %v4335, %v4552
        %v4571 = vadd.f32 %v4336, %v4557
        %v4572 = vadd.f32 %v4337, %v4562
        %4573 = vmatprep.subr.mxu0 0.0
        %4574 = vmatpush1.msra.mxu0 %v2937
        %4575 = vmatprep.subr.mxu0 0.0
        %4576 = vmatpush1.msra.mxu0 %v2938
        %4577 = vmatprep.subr.mxu0 0.0
        %4578 = vmatpush1.msra.mxu0 %v2939
        %4579 = vmatprep.subr.mxu0 0.0
        %4580 = vmatpush1.msra.mxu0 %v2940
        %4581 = vmatprep.subr.mxu0 0.0
        %4582 = vmatpush1.msra.mxu0 %v2941
        %4583 = vmatprep.subr.mxu0 0.0
        %4584 = vmatpush1.msra.mxu0 %v2942
        %4585 = vmatprep.subr.mxu0 0.0
        %4586 = vmatpush1.msra.mxu0 %v2943
        %4587 = vmatprep.subr.mxu0 0.0
        %4588 = vmatpush1.msra.mxu0 %v2944
        %4589 = vmatprep.subr.mxu0 0.0
        %4590 = vmatpush1.msra.mxu0 0.0
        %4591 = vmatprep.subr.mxu0 0.0
        %4592 = vmatpush1.msra.mxu0 0.0
        %4593 = vmatprep.subr.mxu0 0.0
        %4594 = vmatpush1.msra.mxu0 0.0
        %4595 = vmatprep.subr.mxu0 0.0
        %4596 = vmatpush1.msra.mxu0 0.0
        %4597 = vmatprep.subr.mxu0 0.0
        %4598 = vmatpush1.msra.mxu0 0.0
        %4599 = vmatprep.subr.mxu0 0.0
        %4600 = vmatpush1.msra.mxu0 0.0
        %4601 = vmatprep.subr.mxu0 0.0
        %4602 = vmatpush1.msra.mxu0 0.0
        %4603 = vmatprep.subr.mxu0 0.0
        %4604 = vmatpush1.msra.mxu0 0.0
        %4605 = vmatprep.subr.mxu0 0.0
        %4606 = vmatpush1.msra.mxu0 0.0
        %4607 = vmatprep.subr.mxu0 0.0
        %4608 = vmatpush1.msra.mxu0 0.0
        %4609 = vmatprep.subr.mxu0 0.0
        %4610 = vmatpush1.msra.mxu0 0.0
        %4611 = vmatprep.subr.mxu0 0.0
        %4612 = vmatpush1.msra.mxu0 0.0
        %4613 = vmatprep.subr.mxu0 0.0
        %4614 = vmatpush1.msra.mxu0 0.0
        %4615 = vmatprep.subr.mxu0 0.0
        %4616 = vmatpush1.msra.mxu0 0.0
        %4617 = vmatprep.subr.mxu0 0.0
        %4618 = vmatpush1.msra.mxu0 0.0
        %4619 = vmatprep.subr.mxu0 0.0
        %4620 = vmatpush1.msra.mxu0 0.0
        %4621 = vmatprep.subr.mxu0 0.0
        %4622 = vmatpush1.msra.mxu0 0.0
        %4623 = vmatprep.subr.mxu0 0.0
        %4624 = vmatpush1.msra.mxu0 0.0
        %4625 = vmatprep.subr.mxu0 0.0
        %4626 = vmatpush1.msra.mxu0 0.0
        %4627 = vmatprep.subr.mxu0 0.0
        %4628 = vmatpush1.msra.mxu0 0.0
        %4629 = vmatprep.subr.mxu0 0.0
        %4630 = vmatpush1.msra.mxu0 0.0
        %4631 = vmatprep.subr.mxu0 0.0
        %4632 = vmatpush1.msra.mxu0 0.0
        %4633 = vmatprep.subr.mxu0 0.0
        %4634 = vmatpush1.msra.mxu0 0.0
        %4635 = vmatprep.subr.mxu0 0.0
        %4636 = vmatpush1.msra.mxu0 0.0
        %4637 = vmatprep.mubr.f32.mxu0 0.0
        %4638 = vmatmul.mubr.f32.gmra.mrb[0].mxu0 %v2396
        %v4639 = vpop.f32.mrb[0].mxu0
        %v4640 = vadd.f32 0.0, %v4639
        %v4641 = vpop.f32.mrb[0].mxu0
        %4642 = vmatprep.mubr.f32.mxu0 0.0
        %4643 = vmatmul.mubr.f32.gmra.mrb[0].mxu0 %v2399
        %v4644 = vpop.f32.mrb[0].mxu0
        %v4645 = vadd.f32 0.0, %v4644
        %v4646 = vpop.f32.mrb[0].mxu0
        %4647 = vmatprep.mubr.f32.mxu0 0.0
        %4648 = vmatmul.mubr.f32.gmra.mrb[0].mxu0 %v2402
        %v4649 = vpop.f32.mrb[0].mxu0
        %v4650 = vadd.f32 0.0, %v4649
        %v4651 = vpop.f32.mrb[0].mxu0
        %4652 = vmatprep.mubr.f32.mxu0 0.0
        %4653 = vmatmul.mubr.f32.gmra.mrb[0].mxu0 %v2405
        %v4654 = vpop.f32.mrb[0].mxu0
        %v4655 = vadd.f32 0.0, %v4654
        %v4656 = vpop.f32.mrb[0].mxu0
        %4657 = vmatprep.mubr.f32.mxu0 0.0
        %4658 = vmatmul.mubr.f32.gmra.mrb[0].mxu0 %v2408
        %v4659 = vpop.f32.mrb[0].mxu0
        %v4660 = vadd.f32 0.0, %v4659
        %v4661 = vpop.f32.mrb[0].mxu0
        %4662 = vmatprep.mubr.f32.mxu0 0.0
        %4663 = vmatmul.mubr.f32.gmra.mrb[0].mxu0 %v2411
        %v4664 = vpop.f32.mrb[0].mxu0
        %v4665 = vadd.f32 0.0, %v4664
        %v4666 = vpop.f32.mrb[0].mxu0
        %4667 = vmatprep.mubr.f32.mxu0 0.0
        %4668 = vmatmul.mubr.f32.gmra.mrb[0].mxu0 %v2414
        %v4669 = vpop.f32.mrb[0].mxu0
        %v4670 = vadd.f32 0.0, %v4669
        %v4671 = vpop.f32.mrb[0].mxu0
        %4672 = vmatprep.mubr.f32.mxu0 0.0
        %4673 = vmatmul.mubr.f32.gmra.mrb[0].mxu0 %v2417
        %v4674 = vpop.f32.mrb[0].mxu0
        %v4675 = vadd.f32 0.0, %v4674
        %v4676 = vpop.f32.mrb[0].mxu0
        %4677 = vdwg.mxu0
        %s4678 = scalar_lea.vmem [#allocation8], 896
        %v4679 = vld [vmem:[%s4678] sm:$0xff]
        %v4680 = vld [vmem:[%s4678 + $0x8] sm:$0xff]
        %v4681 = vld [vmem:[%s4678 + $0x10] sm:$0xff]
        %v4682 = vld [vmem:[%s4678 + $0x18] sm:$0xff]
        %v4683 = vld [vmem:[%s4678 + $0x20] sm:$0xff]
        %v4684 = vld [vmem:[%s4678 + $0x28] sm:$0xff]
        %v4685 = vld [vmem:[%s4678 + $0x30] sm:$0xff]
        %v4686 = vld [vmem:[%s4678 + $0x38] sm:$0xff]
        %v4687 = vld [vmem:[%s4678 + $0x40] sm:$0xff]
        %v4688 = vld [vmem:[%s4678 + $0x48] sm:$0xff]
        %v4689 = vld [vmem:[%s4678 + $0x50] sm:$0xff]
        %v4690 = vld [vmem:[%s4678 + $0x58] sm:$0xff]
        %v4691 = vld [vmem:[%s4678 + $0x60] sm:$0xff]
        %v4692 = vld [vmem:[%s4678 + $0x68] sm:$0xff]
        %v4693 = vld [vmem:[%s4678 + $0x70] sm:$0xff]
        %v4694 = vld [vmem:[%s4678 + $0x78] sm:$0xff]
        %4695 = vmatprep.subr.mxu0 0.0
        %4696 = vmatpush1.msra.mxu0 %v4679
        %4697 = vmatprep.subr.mxu0 0.0
        %4698 = vmatpush1.msra.mxu0 %v4680
        %4699 = vmatprep.subr.mxu0 0.0
        %4700 = vmatpush1.msra.mxu0 %v4681
        %4701 = vmatprep.subr.mxu0 0.0
        %4702 = vmatpush1.msra.mxu0 %v4682
        %4703 = vmatprep.subr.mxu0 0.0
        %4704 = vmatpush1.msra.mxu0 %v4683
        %4705 = vmatprep.subr.mxu0 0.0
        %4706 = vmatpush1.msra.mxu0 %v4684
        %4707 = vmatprep.subr.mxu0 0.0
        %4708 = vmatpush1.msra.mxu0 %v4685
        %4709 = vmatprep.subr.mxu0 0.0
        %4710 = vmatpush1.msra.mxu0 %v4686
        %4711 = vmatprep.subr.mxu0 0.0
        %4712 = vmatpush1.msra.mxu0 %v4687
        %4713 = vmatprep.subr.mxu0 0.0
        %4714 = vmatpush1.msra.mxu0 %v4688
        %4715 = vmatprep.subr.mxu0 0.0
        %4716 = vmatpush1.msra.mxu0 %v4689
        %4717 = vmatprep.subr.mxu0 0.0
        %4718 = vmatpush1.msra.mxu0 %v4690
        %4719 = vmatprep.subr.mxu0 0.0
        %4720 = vmatpush1.msra.mxu0 %v4691
        %4721 = vmatprep.subr.mxu0 0.0
        %4722 = vmatpush1.msra.mxu0 %v4692
        %4723 = vmatprep.subr.mxu0 0.0
        %4724 = vmatpush1.msra.mxu0 %v4693
        %4725 = vmatprep.subr.mxu0 0.0
        %4726 = vmatpush1.msra.mxu0 %v4694
        %4727 = vmatprep.subr.mxu0 0.0
        %4728 = vmatpush1.msra.mxu0 0.0
        %4729 = vmatprep.subr.mxu0 0.0
        %4730 = vmatpush1.msra.mxu0 0.0
        %4731 = vmatprep.subr.mxu0 0.0
        %4732 = vmatpush1.msra.mxu0 0.0
        %4733 = vmatprep.subr.mxu0 0.0
        %4734 = vmatpush1.msra.mxu0 0.0
        %4735 = vmatprep.subr.mxu0 0.0
        %4736 = vmatpush1.msra.mxu0 0.0
        %4737 = vmatprep.subr.mxu0 0.0
        %4738 = vmatpush1.msra.mxu0 0.0
        %4739 = vmatprep.subr.mxu0 0.0
        %4740 = vmatpush1.msra.mxu0 0.0
        %4741 = vmatprep.subr.mxu0 0.0
        %4742 = vmatpush1.msra.mxu0 0.0
        %4743 = vmatprep.subr.mxu0 0.0
        %4744 = vmatpush1.msra.mxu0 0.0
        %4745 = vmatprep.subr.mxu0 0.0
        %4746 = vmatpush1.msra.mxu0 0.0
        %4747 = vmatprep.subr.mxu0 0.0
        %4748 = vmatpush1.msra.mxu0 0.0
        %4749 = vmatprep.subr.mxu0 0.0
        %4750 = vmatpush1.msra.mxu0 0.0
        %4751 = vmatprep.subr.mxu0 0.0
        %4752 = vmatpush1.msra.mxu0 0.0
        %4753 = vmatprep.subr.mxu0 0.0
        %4754 = vmatpush1.msra.mxu0 0.0
        %4755 = vmatprep.subr.mxu0 0.0
        %4756 = vmatpush1.msra.mxu0 0.0
        %4757 = vmatprep.subr.mxu0 0.0
        %4758 = vmatpush1.msra.mxu0 0.0
        %4759 = vmatprep.mubr.f32.mxu0 0.0
        %4760 = vmatmul.mubr.f32.gmra.mrb[0].mxu0 %v4640
        %v4761 = vpop.f32.mrb[0].mxu0
        %v4762 = vadd.f32 0.0, %v4761
        %v4763 = vpop.f32.mrb[0].mxu0
        %4764 = vmatprep.mubr.f32.mxu0 0.0
        %4765 = vmatmul.mubr.f32.gmra.mrb[0].mxu0 %v4645
        %v4766 = vpop.f32.mrb[0].mxu0
        %v4767 = vadd.f32 0.0, %v4766
        %v4768 = vpop.f32.mrb[0].mxu0
        %4769 = vmatprep.mubr.f32.mxu0 0.0
        %4770 = vmatmul.mubr.f32.gmra.mrb[0].mxu0 %v4650
        %v4771 = vpop.f32.mrb[0].mxu0
        %v4772 = vadd.f32 0.0, %v4771
        %v4773 = vpop.f32.mrb[0].mxu0
        %4774 = vmatprep.mubr.f32.mxu0 0.0
        %4775 = vmatmul.mubr.f32.gmra.mrb[0].mxu0 %v4655
        %v4776 = vpop.f32.mrb[0].mxu0
        %v4777 = vadd.f32 0.0, %v4776
        %v4778 = vpop.f32.mrb[0].mxu0
        %4779 = vmatprep.mubr.f32.mxu0 0.0
        %4780 = vmatmul.mubr.f32.gmra.mrb[0].mxu0 %v4660
        %v4781 = vpop.f32.mrb[0].mxu0
        %v4782 = vadd.f32 0.0, %v4781
        %v4783 = vpop.f32.mrb[0].mxu0
        %4784 = vmatprep.mubr.f32.mxu0 0.0
        %4785 = vmatmul.mubr.f32.gmra.mrb[0].mxu0 %v4665
        %v4786 = vpop.f32.mrb[0].mxu0
        %v4787 = vadd.f32 0.0, %v4786
        %v4788 = vpop.f32.mrb[0].mxu0
        %4789 = vmatprep.mubr.f32.mxu0 0.0
        %4790 = vmatmul.mubr.f32.gmra.mrb[0].mxu0 %v4670
        %v4791 = vpop.f32.mrb[0].mxu0
        %v4792 = vadd.f32 0.0, %v4791
        %v4793 = vpop.f32.mrb[0].mxu0
        %4794 = vmatprep.mubr.f32.mxu0 0.0
        %4795 = vmatmul.mubr.f32.gmra.mrb[0].mxu0 %v4675
        %v4796 = vpop.f32.mrb[0].mxu0
        %v4797 = vadd.f32 0.0, %v4796
        %v4798 = vpop.f32.mrb[0].mxu0
        %4799 = vdwg.mxu0
        %v4800 = vadd.f32 %v4565, %v4762
        %v4801 = vadd.f32 %v4566, %v4767
        %v4802 = vadd.f32 %v4567, %v4772
        %v4803 = vadd.f32 %v4568, %v4777
        %v4804 = vadd.f32 %v4569, %v4782
        %v4805 = vadd.f32 %v4570, %v4787
        %v4806 = vadd.f32 %v4571, %v4792
        %v4807 = vadd.f32 %v4572, %v4797
        %4808 = vmatprep.subr.mxu0 0.0
        %4809 = vmatpush1.msra.mxu0 %v2937
        %4810 = vmatprep.subr.mxu0 0.0
        %4811 = vmatpush1.msra.mxu0 %v2938
        %4812 = vmatprep.subr.mxu0 0.0
        %4813 = vmatpush1.msra.mxu0 %v2939
        %4814 = vmatprep.subr.mxu0 0.0
        %4815 = vmatpush1.msra.mxu0 %v2940
        %4816 = vmatprep.subr.mxu0 0.0
        %4817 = vmatpush1.msra.mxu0 %v2941
        %4818 = vmatprep.subr.mxu0 0.0
        %4819 = vmatpush1.msra.mxu0 %v2942
        %4820 = vmatprep.subr.mxu0 0.0
        %4821 = vmatpush1.msra.mxu0 %v2943
        %4822 = vmatprep.subr.mxu0 0.0
        %4823 = vmatpush1.msra.mxu0 %v2944
        %4824 = vmatprep.subr.mxu0 0.0
        %4825 = vmatpush1.msra.mxu0 0.0
        %4826 = vmatprep.subr.mxu0 0.0
        %4827 = vmatpush1.msra.mxu0 0.0
        %4828 = vmatprep.subr.mxu0 0.0
        %4829 = vmatpush1.msra.mxu0 0.0
        %4830 = vmatprep.subr.mxu0 0.0
        %4831 = vmatpush1.msra.mxu0 0.0
        %4832 = vmatprep.subr.mxu0 0.0
        %4833 = vmatpush1.msra.mxu0 0.0
        %4834 = vmatprep.subr.mxu0 0.0
        %4835 = vmatpush1.msra.mxu0 0.0
        %4836 = vmatprep.subr.mxu0 0.0
        %4837 = vmatpush1.msra.mxu0 0.0
        %4838 = vmatprep.subr.mxu0 0.0
        %4839 = vmatpush1.msra.mxu0 0.0
        %4840 = vmatprep.subr.mxu0 0.0
        %4841 = vmatpush1.msra.mxu0 0.0
        %4842 = vmatprep.subr.mxu0 0.0
        %4843 = vmatpush1.msra.mxu0 0.0
        %4844 = vmatprep.subr.mxu0 0.0
        %4845 = vmatpush1.msra.mxu0 0.0
        %4846 = vmatprep.subr.mxu0 0.0
        %4847 = vmatpush1.msra.mxu0 0.0
        %4848 = vmatprep.subr.mxu0 0.0
        %4849 = vmatpush1.msra.mxu0 0.0
        %4850 = vmatprep.subr.mxu0 0.0
        %4851 = vmatpush1.msra.mxu0 0.0
        %4852 = vmatprep.subr.mxu0 0.0
        %4853 = vmatpush1.msra.mxu0 0.0
        %4854 = vmatprep.subr.mxu0 0.0
        %4855 = vmatpush1.msra.mxu0 0.0
        %4856 = vmatprep.subr.mxu0 0.0
        %4857 = vmatpush1.msra.mxu0 0.0
        %4858 = vmatprep.subr.mxu0 0.0
        %4859 = vmatpush1.msra.mxu0 0.0
        %4860 = vmatprep.subr.mxu0 0.0
        %4861 = vmatpush1.msra.mxu0 0.0
        %4862 = vmatprep.subr.mxu0 0.0
        %4863 = vmatpush1.msra.mxu0 0.0
        %4864 = vmatprep.subr.mxu0 0.0
        %4865 = vmatpush1.msra.mxu0 0.0
        %4866 = vmatprep.subr.mxu0 0.0
        %4867 = vmatpush1.msra.mxu0 0.0
        %4868 = vmatprep.subr.mxu0 0.0
        %4869 = vmatpush1.msra.mxu0 0.0
        %4870 = vmatprep.subr.mxu0 0.0
        %4871 = vmatpush1.msra.mxu0 0.0
        %4872 = vmatprep.mubr.f32.mxu0 0.0
        %4873 = vmatmul.mubr.f32.gmra.mrb[0].mxu0 %v2664
        %v4874 = vpop.f32.mrb[0].mxu0
        %v4875 = vadd.f32 0.0, %v4874
        %v4876 = vpop.f32.mrb[0].mxu0
        %4877 = vmatprep.mubr.f32.mxu0 0.0
        %4878 = vmatmul.mubr.f32.gmra.mrb[0].mxu0 %v2667
        %v4879 = vpop.f32.mrb[0].mxu0
        %v4880 = vadd.f32 0.0, %v4879
        %v4881 = vpop.f32.mrb[0].mxu0
        %4882 = vmatprep.mubr.f32.mxu0 0.0
        %4883 = vmatmul.mubr.f32.gmra.mrb[0].mxu0 %v2670
        %v4884 = vpop.f32.mrb[0].mxu0
        %v4885 = vadd.f32 0.0, %v4884
        %v4886 = vpop.f32.mrb[0].mxu0
        %4887 = vmatprep.mubr.f32.mxu0 0.0
        %4888 = vmatmul.mubr.f32.gmra.mrb[0].mxu0 %v2673
        %v4889 = vpop.f32.mrb[0].mxu0
        %v4890 = vadd.f32 0.0, %v4889
        %v4891 = vpop.f32.mrb[0].mxu0
        %4892 = vmatprep.mubr.f32.mxu0 0.0
        %4893 = vmatmul.mubr.f32.gmra.mrb[0].mxu0 %v2676
        %v4894 = vpop.f32.mrb[0].mxu0
        %v4895 = vadd.f32 0.0, %v4894
        %v4896 = vpop.f32.mrb[0].mxu0
        %4897 = vmatprep.mubr.f32.mxu0 0.0
        %4898 = vmatmul.mubr.f32.gmra.mrb[0].mxu0 %v2679
        %v4899 = vpop.f32.mrb[0].mxu0
        %v4900 = vadd.f32 0.0, %v4899
        %v4901 = vpop.f32.mrb[0].mxu0
        %4902 = vmatprep.mubr.f32.mxu0 0.0
        %4903 = vmatmul.mubr.f32.gmra.mrb[0].mxu0 %v2682
        %v4904 = vpop.f32.mrb[0].mxu0
        %v4905 = vadd.f32 0.0, %v4904
        %v4906 = vpop.f32.mrb[0].mxu0
        %4907 = vmatprep.mubr.f32.mxu0 0.0
        %4908 = vmatmul.mubr.f32.gmra.mrb[0].mxu0 %v2685
        %v4909 = vpop.f32.mrb[0].mxu0
        %v4910 = vadd.f32 0.0, %v4909
        %v4911 = vpop.f32.mrb[0].mxu0
        %4912 = vdwg.mxu0
        %s4913 = scalar_lea.vmem [#allocation8], 1024
        %v4914 = vld [vmem:[%s4913] sm:$0xff]
        %v4915 = vld [vmem:[%s4913 + $0x8] sm:$0xff]
        %v4916 = vld [vmem:[%s4913 + $0x10] sm:$0xff]
        %v4917 = vld [vmem:[%s4913 + $0x18] sm:$0xff]
        %v4918 = vld [vmem:[%s4913 + $0x20] sm:$0xff]
        %v4919 = vld [vmem:[%s4913 + $0x28] sm:$0xff]
        %v4920 = vld [vmem:[%s4913 + $0x30] sm:$0xff]
        %v4921 = vld [vmem:[%s4913 + $0x38] sm:$0xff]
        %v4922 = vld [vmem:[%s4913 + $0x40] sm:$0xff]
        %v4923 = vld [vmem:[%s4913 + $0x48] sm:$0xff]
        %v4924 = vld [vmem:[%s4913 + $0x50] sm:$0xff]
        %v4925 = vld [vmem:[%s4913 + $0x58] sm:$0xff]
        %v4926 = vld [vmem:[%s4913 + $0x60] sm:$0xff]
        %v4927 = vld [vmem:[%s4913 + $0x68] sm:$0xff]
        %v4928 = vld [vmem:[%s4913 + $0x70] sm:$0xff]
        %v4929 = vld [vmem:[%s4913 + $0x78] sm:$0xff]
        %4930 = vmatprep.subr.mxu0 0.0
        %4931 = vmatpush1.msra.mxu0 %v4914
        %4932 = vmatprep.subr.mxu0 0.0
        %4933 = vmatpush1.msra.mxu0 %v4915
        %4934 = vmatprep.subr.mxu0 0.0
        %4935 = vmatpush1.msra.mxu0 %v4916
        %4936 = vmatprep.subr.mxu0 0.0
        %4937 = vmatpush1.msra.mxu0 %v4917
        %4938 = vmatprep.subr.mxu0 0.0
        %4939 = vmatpush1.msra.mxu0 %v4918
        %4940 = vmatprep.subr.mxu0 0.0
        %4941 = vmatpush1.msra.mxu0 %v4919
        %4942 = vmatprep.subr.mxu0 0.0
        %4943 = vmatpush1.msra.mxu0 %v4920
        %4944 = vmatprep.subr.mxu0 0.0
        %4945 = vmatpush1.msra.mxu0 %v4921
        %4946 = vmatprep.subr.mxu0 0.0
        %4947 = vmatpush1.msra.mxu0 %v4922
        %4948 = vmatprep.subr.mxu0 0.0
        %4949 = vmatpush1.msra.mxu0 %v4923
        %4950 = vmatprep.subr.mxu0 0.0
        %4951 = vmatpush1.msra.mxu0 %v4924
        %4952 = vmatprep.subr.mxu0 0.0
        %4953 = vmatpush1.msra.mxu0 %v4925
        %4954 = vmatprep.subr.mxu0 0.0
        %4955 = vmatpush1.msra.mxu0 %v4926
        %4956 = vmatprep.subr.mxu0 0.0
        %4957 = vmatpush1.msra.mxu0 %v4927
        %4958 = vmatprep.subr.mxu0 0.0
        %4959 = vmatpush1.msra.mxu0 %v4928
        %4960 = vmatprep.subr.mxu0 0.0
        %4961 = vmatpush1.msra.mxu0 %v4929
        %4962 = vmatprep.subr.mxu0 0.0
        %4963 = vmatpush1.msra.mxu0 0.0
        %4964 = vmatprep.subr.mxu0 0.0
        %4965 = vmatpush1.msra.mxu0 0.0
        %4966 = vmatprep.subr.mxu0 0.0
        %4967 = vmatpush1.msra.mxu0 0.0
        %4968 = vmatprep.subr.mxu0 0.0
        %4969 = vmatpush1.msra.mxu0 0.0
        %4970 = vmatprep.subr.mxu0 0.0
        %4971 = vmatpush1.msra.mxu0 0.0
        %4972 = vmatprep.subr.mxu0 0.0
        %4973 = vmatpush1.msra.mxu0 0.0
        %4974 = vmatprep.subr.mxu0 0.0
        %4975 = vmatpush1.msra.mxu0 0.0
        %4976 = vmatprep.subr.mxu0 0.0
        %4977 = vmatpush1.msra.mxu0 0.0
        %4978 = vmatprep.subr.mxu0 0.0
        %4979 = vmatpush1.msra.mxu0 0.0
        %4980 = vmatprep.subr.mxu0 0.0
        %4981 = vmatpush1.msra.mxu0 0.0
        %4982 = vmatprep.subr.mxu0 0.0
        %4983 = vmatpush1.msra.mxu0 0.0
        %4984 = vmatprep.subr.mxu0 0.0
        %4985 = vmatpush1.msra.mxu0 0.0
        %4986 = vmatprep.subr.mxu0 0.0
        %4987 = vmatpush1.msra.mxu0 0.0
        %4988 = vmatprep.subr.mxu0 0.0
        %4989 = vmatpush1.msra.mxu0 0.0
        %4990 = vmatprep.subr.mxu0 0.0
        %4991 = vmatpush1.msra.mxu0 0.0
        %4992 = vmatprep.subr.mxu0 0.0
        %4993 = vmatpush1.msra.mxu0 0.0
        %4994 = vmatprep.mubr.f32.mxu0 0.0
        %4995 = vmatmul.mubr.f32.gmra.mrb[0].mxu0 %v4875
        %v4996 = vpop.f32.mrb[0].mxu0
        %v4997 = vadd.f32 0.0, %v4996
        %v4998 = vpop.f32.mrb[0].mxu0
        %4999 = vmatprep.mubr.f32.mxu0 0.0
        %5000 = vmatmul.mubr.f32.gmra.mrb[0].mxu0 %v4880
        %v5001 = vpop.f32.mrb[0].mxu0
        %v5002 = vadd.f32 0.0, %v5001
        %v5003 = vpop.f32.mrb[0].mxu0
        %5004 = vmatprep.mubr.f32.mxu0 0.0
        %5005 = vmatmul.mubr.f32.gmra.mrb[0].mxu0 %v4885
        %v5006 = vpop.f32.mrb[0].mxu0
        %v5007 = vadd.f32 0.0, %v5006
        %v5008 = vpop.f32.mrb[0].mxu0
        %5009 = vmatprep.mubr.f32.mxu0 0.0
        %5010 = vmatmul.mubr.f32.gmra.mrb[0].mxu0 %v4890
        %v5011 = vpop.f32.mrb[0].mxu0
        %v5012 = vadd.f32 0.0, %v5011
        %v5013 = vpop.f32.mrb[0].mxu0
        %5014 = vmatprep.mubr.f32.mxu0 0.0
        %5015 = vmatmul.mubr.f32.gmra.mrb[0].mxu0 %v4895
        %v5016 = vpop.f32.mrb[0].mxu0
        %v5017 = vadd.f32 0.0, %v5016
        %v5018 = vpop.f32.mrb[0].mxu0
        %5019 = vmatprep.mubr.f32.mxu0 0.0
        %5020 = vmatmul.mubr.f32.gmra.mrb[0].mxu0 %v4900
        %v5021 = vpop.f32.mrb[0].mxu0
        %v5022 = vadd.f32 0.0, %v5021
        %v5023 = vpop.f32.mrb[0].mxu0
        %5024 = vmatprep.mubr.f32.mxu0 0.0
        %5025 = vmatmul.mubr.f32.gmra.mrb[0].mxu0 %v4905
        %v5026 = vpop.f32.mrb[0].mxu0
        %v5027 = vadd.f32 0.0, %v5026
        %v5028 = vpop.f32.mrb[0].mxu0
        %5029 = vmatprep.mubr.f32.mxu0 0.0
        %5030 = vmatmul.mubr.f32.gmra.mrb[0].mxu0 %v4910
        %v5031 = vpop.f32.mrb[0].mxu0
        %v5032 = vadd.f32 0.0, %v5031
        %v5033 = vpop.f32.mrb[0].mxu0
        %5034 = vdwg.mxu0
        %v5035 = vadd.f32 %v4800, %v4997
        %v5036 = vadd.f32 %v4801, %v5002
        %v5037 = vadd.f32 %v4802, %v5007
        %v5038 = vadd.f32 %v4803, %v5012
        %v5039 = vadd.f32 %v4804, %v5017
        %v5040 = vadd.f32 %v4805, %v5022
        %v5041 = vadd.f32 %v4806, %v5027
        %v5042 = vadd.f32 %v4807, %v5032
        %v5043 = vld [vmem:[%s5] sm:$0x1]
        %v5045 = vlaneseq
        %v5046 = vshrl.u32 %v5045, 7
        %v5047 = vsub.s32 0, %v5046
        %v5048 = vrot.slane %v5043, %v5047
        %v5050 = vadd.f32 %v5035, %v5048
        %v5051 = vadd.f32 %v5036, %v5048
        %v5052 = vadd.f32 %v5037, %v5048
        %v5053 = vadd.f32 %v5038, %v5048
        %v5054 = vadd.f32 %v5039, %v5048
        %v5055 = vadd.f32 %v5040, %v5048
        %v5056 = vadd.f32 %v5041, %v5048
        %v5057 = vadd.f32 %v5042, %v5048
        %v5058 = vadd.f32 %v5050, %v5051
        %v5059 = vadd.f32 %v5058, %v5052
        %v5060 = vadd.f32 %v5059, %v5053
        %v5061 = vadd.f32 %v5060, %v5054
        %v5062 = vadd.f32 %v5061, %v5055
        %v5063 = vadd.f32 %v5062, %v5056
        %v5064 = vadd.f32 %v5063, %v5057
        %v5065 = vrot.slane %v5064, 4
        %v5066 = vadd.f32 %v5064, %v5065
        %v5067 = vrot.slane %v5066, 2
        %v5068 = vadd.f32 %v5066, %v5067
        %v5069 = vrot.slane %v5068, 1
        %v5070 = vadd.f32 %v5068, %v5069
        %v5071 = vrcp.pop 64.0
        %v5072 = vmul.f32 %v5070, %v5071
        %v5073 = vmul.f32 %v5072, 0.5
        %v5074 = vmax.f32 %v5050, %v5054
        %v5075 = vmax.f32 %v5051, %v5055
        %v5076 = vmax.f32 %v5052, %v5056
        %v5077 = vmax.f32 %v5053, %v5057
        %v5078 = vmax.f32 %v5074, %v5075
        %v5079 = vmax.f32 %v5076, %v5077
        %v5080 = vmax.f32 %v5078, %v5079
        %v5081 = vrot.slane %v5080, 4
        %v5082 = vmax.f32 %v5080, %v5081
        %v5083 = vrot.slane %v5082, 2
        %v5084 = vmax.f32 %v5082, %v5083
        %v5085 = vrot.slane %v5084, 1
        %v5086 = vmax.f32 %v5084, %v5085
        %v5087 = vmul.f32 %v5086, 0.5
        %v5088 = vadd.f32 %v5073, %v5087
        %v5089 = vld [vmem:[#allocation10] sm:$0xff]
        %v5090 = vld [vmem:[#allocation10 + $0x8] sm:$0xff]
        %v5091 = vld [vmem:[#allocation10 + $0x10] sm:$0xff]
        %v5092 = vld [vmem:[#allocation10 + $0x18] sm:$0xff]
        %v5093 = vld [vmem:[#allocation10 + $0x20] sm:$0xff]
        %v5094 = vld [vmem:[#allocation10 + $0x28] sm:$0xff]
        %v5095 = vld [vmem:[#allocation10 + $0x30] sm:$0xff]
        %v5096 = vld [vmem:[#allocation10 + $0x38] sm:$0xff]
        %v5097 = vld [vmem:[#allocation10 + $0x40] sm:$0xff]
        %v5098 = vld [vmem:[#allocation10 + $0x48] sm:$0xff]
        %v5099 = vld [vmem:[#allocation10 + $0x50] sm:$0xff]
        %v5100 = vld [vmem:[#allocation10 + $0x58] sm:$0xff]
        %v5101 = vld [vmem:[#allocation10 + $0x60] sm:$0xff]
        %v5102 = vld [vmem:[#allocation10 + $0x68] sm:$0xff]
        %v5103 = vld [vmem:[#allocation10 + $0x70] sm:$0xff]
        %v5104 = vld [vmem:[#allocation10 + $0x78] sm:$0xff]
        %v5105 = vld [vmem:[%s7] sm:$0x1]
        %5106 = vmatprep.subr.mxu0 0.0
        %5107 = vmatpush1.msra.mxu0 %v5089
        %5108 = vmatprep.subr.mxu0 0.0
        %5109 = vmatpush1.msra.mxu0 %v5090
        %5110 = vmatprep.subr.mxu0 0.0
        %5111 = vmatpush1.msra.mxu0 %v5091
        %5112 = vmatprep.subr.mxu0 0.0
        %5113 = vmatpush1.msra.mxu0 %v5092
        %5114 = vmatprep.subr.mxu0 0.0
        %5115 = vmatpush1.msra.mxu0 %v5093
        %5116 = vmatprep.subr.mxu0 0.0
        %5117 = vmatpush1.msra.mxu0 %v5094
        %5118 = vmatprep.subr.mxu0 0.0
        %5119 = vmatpush1.msra.mxu0 %v5095
        %5120 = vmatprep.subr.mxu0 0.0
        %5121 = vmatpush1.msra.mxu0 %v5096
        %5122 = vmatprep.subr.mxu0 0.0
        %5123 = vmatpush1.msra.mxu0 %v5097
        %5124 = vmatprep.subr.mxu0 0.0
        %5125 = vmatpush1.msra.mxu0 %v5098
        %5126 = vmatprep.subr.mxu0 0.0
        %5127 = vmatpush1.msra.mxu0 %v5099
        %5128 = vmatprep.subr.mxu0 0.0
        %5129 = vmatpush1.msra.mxu0 %v5100
        %5130 = vmatprep.subr.mxu0 0.0
        %5131 = vmatpush1.msra.mxu0 %v5101
        %5132 = vmatprep.subr.mxu0 0.0
        %5133 = vmatpush1.msra.mxu0 %v5102
        %5134 = vmatprep.subr.mxu0 0.0
        %5135 = vmatpush1.msra.mxu0 %v5103
        %5136 = vmatprep.subr.mxu0 0.0
        %5137 = vmatpush1.msra.mxu0 %v5104
        %5138 = vmatprep.subr.mxu0 0.0
        %5139 = vmatpush1.msra.mxu0 0.0
        %5140 = vmatprep.subr.mxu0 0.0
        %5141 = vmatpush1.msra.mxu0 0.0
        %5142 = vmatprep.subr.mxu0 0.0
        %5143 = vmatpush1.msra.mxu0 0.0
        %5144 = vmatprep.subr.mxu0 0.0
        %5145 = vmatpush1.msra.mxu0 0.0
        %5146 = vmatprep.subr.mxu0 0.0
        %5147 = vmatpush1.msra.mxu0 0.0
        %5148 = vmatprep.subr.mxu0 0.0
        %5149 = vmatpush1.msra.mxu0 0.0
        %5150 = vmatprep.subr.mxu0 0.0
        %5151 = vmatpush1.msra.mxu0 0.0
        %5152 = vmatprep.subr.mxu0 0.0
        %5153 = vmatpush1.msra.mxu0 0.0
        %5154 = vmatprep.subr.mxu0 0.0
        %5155 = vmatpush1.msra.mxu0 0.0
        %5156 = vmatprep.subr.mxu0 0.0
        %5157 = vmatpush1.msra.mxu0 0.0
        %5158 = vmatprep.subr.mxu0 0.0
        %5159 = vmatpush1.msra.mxu0 0.0
        %5160 = vmatprep.subr.mxu0 0.0
        %5161 = vmatpush1.msra.mxu0 0.0
        %5162 = vmatprep.subr.mxu0 0.0
        %5163 = vmatpush1.msra.mxu0 0.0
        %5164 = vmatprep.subr.mxu0 0.0
        %5165 = vmatpush1.msra.mxu0 0.0
        %5166 = vmatprep.subr.mxu0 0.0
        %5167 = vmatpush1.msra.mxu0 0.0
        %5168 = vmatprep.subr.mxu0 0.0
        %5169 = vmatpush1.msra.mxu0 0.0
        %5170 = vmatprep.mubr.f32.mxu0 0.0
        %5171 = vmatmul.mubr.f32.gmra.mrb[0].mxu0 %v5088
        %v5172 = vpop.f32.mrb[0].mxu0
        %v5173 = vadd.f32 %v5105, %v5172
        %v5174 = vpop.f32.mrb[0].mxu0
        %5175 = vdwg.mxu0
        %v5176 = vmax.f32 %v5173, 0.0
        %v5177 = vld [vmem:[#allocation11] sm:$0xff]
        %v5178 = vld [vmem:[#allocation11 + $0x8] sm:$0xff]
        %v5179 = vld [vmem:[#allocation11 + $0x10] sm:$0xff]
        %v5180 = vld [vmem:[#allocation11 + $0x18] sm:$0xff]
        %v5181 = vld [vmem:[#allocation11 + $0x20] sm:$0xff]
        %v5182 = vld [vmem:[#allocation11 + $0x28] sm:$0xff]
        %v5183 = vld [vmem:[#allocation11 + $0x30] sm:$0xff]
        %v5184 = vld [vmem:[#allocation11 + $0x38] sm:$0xff]
        %v5185 = vld [vmem:[#allocation11 + $0x40] sm:$0xff]
        %v5186 = vld [vmem:[#allocation11 + $0x48] sm:$0xff]
        %v5187 = vld [vmem:[#allocation11 + $0x50] sm:$0xff]
        %v5188 = vld [vmem:[#allocation11 + $0x58] sm:$0xff]
        %v5189 = vld [vmem:[#allocation11 + $0x60] sm:$0xff]
        %v5190 = vld [vmem:[#allocation11 + $0x68] sm:$0xff]
        %v5191 = vld [vmem:[#allocation11 + $0x70] sm:$0xff]
        %v5192 = vld [vmem:[#allocation11 + $0x78] sm:$0xff]
        %v5193 = vld [vmem:[%s9] sm:$0x1]
        %5194 = vmatprep.subr.mxu0 0.0
        %5195 = vmatpush1.msra.mxu0 %v5177
        %5196 = vmatprep.subr.mxu0 0.0
        %5197 = vmatpush1.msra.mxu0 %v5178
        %5198 = vmatprep.subr.mxu0 0.0
        %5199 = vmatpush1.msra.mxu0 %v5179
        %5200 = vmatprep.subr.mxu0 0.0
        %5201 = vmatpush1.msra.mxu0 %v5180
        %5202 = vmatprep.subr.mxu0 0.0
        %5203 = vmatpush1.msra.mxu0 %v5181
        %5204 = vmatprep.subr.mxu0 0.0
        %5205 = vmatpush1.msra.mxu0 %v5182
        %5206 = vmatprep.subr.mxu0 0.0
        %5207 = vmatpush1.msra.mxu0 %v5183
        %5208 = vmatprep.subr.mxu0 0.0
        %5209 = vmatpush1.msra.mxu0 %v5184
        %5210 = vmatprep.subr.mxu0 0.0
        %5211 = vmatpush1.msra.mxu0 %v5185
        %5212 = vmatprep.subr.mxu0 0.0
        %5213 = vmatpush1.msra.mxu0 %v5186
        %5214 = vmatprep.subr.mxu0 0.0
        %5215 = vmatpush1.msra.mxu0 %v5187
        %5216 = vmatprep.subr.mxu0 0.0
        %5217 = vmatpush1.msra.mxu0 %v5188
        %5218 = vmatprep.subr.mxu0 0.0
        %5219 = vmatpush1.msra.mxu0 %v5189
        %5220 = vmatprep.subr.mxu0 0.0
        %5221 = vmatpush1.msra.mxu0 %v5190
        %5222 = vmatprep.subr.mxu0 0.0
        %5223 = vmatpush1.msra.mxu0 %v5191
        %5224 = vmatprep.subr.mxu0 0.0
        %5225 = vmatpush1.msra.mxu0 %v5192
        %5226 = vmatprep.subr.mxu0 0.0
        %5227 = vmatpush1.msra.mxu0 0.0
        %5228 = vmatprep.subr.mxu0 0.0
        %5229 = vmatpush1.msra.mxu0 0.0
        %5230 = vmatprep.subr.mxu0 0.0
        %5231 = vmatpush1.msra.mxu0 0.0
        %5232 = vmatprep.subr.mxu0 0.0
        %5233 = vmatpush1.msra.mxu0 0.0
        %5234 = vmatprep.subr.mxu0 0.0
        %5235 = vmatpush1.msra.mxu0 0.0
        %5236 = vmatprep.subr.mxu0 0.0
        %5237 = vmatpush1.msra.mxu0 0.0
        %5238 = vmatprep.subr.mxu0 0.0
        %5239 = vmatpush1.msra.mxu0 0.0
        %5240 = vmatprep.subr.mxu0 0.0
        %5241 = vmatpush1.msra.mxu0 0.0
        %5242 = vmatprep.subr.mxu0 0.0
        %5243 = vmatpush1.msra.mxu0 0.0
        %5244 = vmatprep.subr.mxu0 0.0
        %5245 = vmatpush1.msra.mxu0 0.0
        %5246 = vmatprep.subr.mxu0 0.0
        %5247 = vmatpush1.msra.mxu0 0.0
        %5248 = vmatprep.subr.mxu0 0.0
        %5249 = vmatpush1.msra.mxu0 0.0
        %5250 = vmatprep.subr.mxu0 0.0
        %5251 = vmatpush1.msra.mxu0 0.0
        %5252 = vmatprep.subr.mxu0 0.0
        %5253 = vmatpush1.msra.mxu0 0.0
        %5254 = vmatprep.subr.mxu0 0.0
        %5255 = vmatpush1.msra.mxu0 0.0
        %5256 = vmatprep.subr.mxu0 0.0
        %5257 = vmatpush1.msra.mxu0 0.0
        %5258 = vmatprep.mubr.f32.mxu0 0.0
        %5259 = vmatmul.mubr.f32.gmra.mrb[0].mxu0 %v5176
        %v5260 = vpop.f32.mrb[0].mxu0
        %v5261 = vadd.f32 %v5193, %v5260
        %v5262 = vpop.f32.mrb[0].mxu0
        %5263 = vdwg.mxu0
        %v5264 = vsub.f32 0.0, %v5261
        %v5265 = vmul.f32 %v5264, 1.442695
        %v5266 = vpow.pop %v5265
        %v5267 = vadd.f32 %v5266, 1.0
        %v5268 = vrcp.pop %v5267
        %v5269 = vmul.f32 1.0, %v5268
        %v5270 = vlaneseq
        %v5271 = vshrl.u32 %v5270, 7
        %v5272 = vsub.s32 0, %v5271
        %v5273 = vrot.slane %v5269, %v5272
        %v5274 = vmul.f32 %v5050, %v5273
        %v5275 = vmul.f32 %v5051, %v5273
        %v5276 = vmul.f32 %v5052, %v5273
        %v5277 = vmul.f32 %v5053, %v5273
        %v5278 = vmul.f32 %v5054, %v5273
        %v5279 = vmul.f32 %v5055, %v5273
        %v5280 = vmul.f32 %v5056, %v5273
        %v5281 = vmul.f32 %v5057, %v5273
        %v5282 = vadd.f32 %v5274, %v519
        %v5283 = vadd.f32 %v5275, %v520
        %v5284 = vadd.f32 %v5276, %v521
        %v5285 = vadd.f32 %v5277, %v522
        %v5286 = vadd.f32 %v5278, %v523
        %v5287 = vadd.f32 %v5279, %v524
        %v5288 = vadd.f32 %v5280, %v525
        %v5289 = vadd.f32 %v5281, %v526
        %v5290 = vmax.f32 %v5282, 0.0
        %v5291 = vmax.f32 %v5283, 0.0
        %v5292 = vmax.f32 %v5284, 0.0
        %v5293 = vmax.f32 %v5285, 0.0
        %v5294 = vmax.f32 %v5286, 0.0
        %v5295 = vmax.f32 %v5287, 0.0
        %v5296 = vmax.f32 %v5288, 0.0
        %v5297 = vmax.f32 %v5289, 0.0
        %v5298 = vld [vmem:[#allocation13] sm:$0xff]
        %v5299 = vld [vmem:[#allocation13 + $0x8] sm:$0xff]
        %v5300 = vld [vmem:[#allocation13 + $0x10] sm:$0xff]
        %v5301 = vld [vmem:[#allocation13 + $0x18] sm:$0xff]
        %v5302 = vld [vmem:[#allocation13 + $0x20] sm:$0xff]
        %v5303 = vld [vmem:[#allocation13 + $0x28] sm:$0xff]
        %v5304 = vld [vmem:[#allocation13 + $0x30] sm:$0xff]
        %v5305 = vld [vmem:[#allocation13 + $0x38] sm:$0xff]
        %v5306 = vld [vmem:[#allocation13 + $0x40] sm:$0xff]
        %v5307 = vld [vmem:[#allocation13 + $0x48] sm:$0xff]
        %v5308 = vld [vmem:[#allocation13 + $0x50] sm:$0xff]
        %v5309 = vld [vmem:[#allocation13 + $0x58] sm:$0xff]
        %v5310 = vld [vmem:[#allocation13 + $0x60] sm:$0xff]
        %v5311 = vld [vmem:[#allocation13 + $0x68] sm:$0xff]
        %v5312 = vld [vmem:[#allocation13 + $0x70] sm:$0xff]
        %v5313 = vld [vmem:[#allocation13 + $0x78] sm:$0xff]
        %v5314 = vld [vmem:[%s11] sm:$0x1]
        %v5316 = vlaneseq
        %v5317 = vshrl.u32 %v5316, 7
        %v5318 = vsub.s32 0, %v5317
        %v5319 = vrot.slane %v5314, %v5318
        %5321 = vmatprep.subr.mxu0 0.0
        %5322 = vmatpush1.msra.mxu0 %v5298
        %5323 = vmatprep.subr.mxu0 0.0
        %5324 = vmatpush1.msra.mxu0 %v5299
        %5325 = vmatprep.subr.mxu0 0.0
        %5326 = vmatpush1.msra.mxu0 %v5300
        %5327 = vmatprep.subr.mxu0 0.0
        %5328 = vmatpush1.msra.mxu0 %v5301
        %5329 = vmatprep.subr.mxu0 0.0
        %5330 = vmatpush1.msra.mxu0 %v5302
        %5331 = vmatprep.subr.mxu0 0.0
        %5332 = vmatpush1.msra.mxu0 %v5303
        %5333 = vmatprep.subr.mxu0 0.0
        %5334 = vmatpush1.msra.mxu0 %v5304
        %5335 = vmatprep.subr.mxu0 0.0
        %5336 = vmatpush1.msra.mxu0 %v5305
        %5337 = vmatprep.subr.mxu0 0.0
        %5338 = vmatpush1.msra.mxu0 %v5306
        %5339 = vmatprep.subr.mxu0 0.0
        %5340 = vmatpush1.msra.mxu0 %v5307
        %5341 = vmatprep.subr.mxu0 0.0
        %5342 = vmatpush1.msra.mxu0 %v5308
        %5343 = vmatprep.subr.mxu0 0.0
        %5344 = vmatpush1.msra.mxu0 %v5309
        %5345 = vmatprep.subr.mxu0 0.0
        %5346 = vmatpush1.msra.mxu0 %v5310
        %5347 = vmatprep.subr.mxu0 0.0
        %5348 = vmatpush1.msra.mxu0 %v5311
        %5349 = vmatprep.subr.mxu0 0.0
        %5350 = vmatpush1.msra.mxu0 %v5312
        %5351 = vmatprep.subr.mxu0 0.0
        %5352 = vmatpush1.msra.mxu0 %v5313
        %5353 = vmatprep.subr.mxu0 0.0
        %5354 = vmatpush1.msra.mxu0 0.0
        %5355 = vmatprep.subr.mxu0 0.0
        %5356 = vmatpush1.msra.mxu0 0.0
        %5357 = vmatprep.subr.mxu0 0.0
        %5358 = vmatpush1.msra.mxu0 0.0
        %5359 = vmatprep.subr.mxu0 0.0
        %5360 = vmatpush1.msra.mxu0 0.0
        %5361 = vmatprep.subr.mxu0 0.0
        %5362 = vmatpush1.msra.mxu0 0.0
        %5363 = vmatprep.subr.mxu0 0.0
        %5364 = vmatpush1.msra.mxu0 0.0
        %5365 = vmatprep.subr.mxu0 0.0
        %5366 = vmatpush1.msra.mxu0 0.0
        %5367 = vmatprep.subr.mxu0 0.0
        %5368 = vmatpush1.msra.mxu0 0.0
        %5369 = vmatprep.subr.mxu0 0.0
        %5370 = vmatpush1.msra.mxu0 0.0
        %5371 = vmatprep.subr.mxu0 0.0
        %5372 = vmatpush1.msra.mxu0 0.0
        %5373 = vmatprep.subr.mxu0 0.0
        %5374 = vmatpush1.msra.mxu0 0.0
        %5375 = vmatprep.subr.mxu0 0.0
        %5376 = vmatpush1.msra.mxu0 0.0
        %5377 = vmatprep.subr.mxu0 0.0
        %5378 = vmatpush1.msra.mxu0 0.0
        %5379 = vmatprep.subr.mxu0 0.0
        %5380 = vmatpush1.msra.mxu0 0.0
        %5381 = vmatprep.subr.mxu0 0.0
        %5382 = vmatpush1.msra.mxu0 0.0
        %5383 = vmatprep.subr.mxu0 0.0
        %5384 = vmatpush1.msra.mxu0 0.0
        %5385 = vmatprep.mubr.f32.mxu0 0.0
        %5386 = vmatmul.mubr.f32.gmra.mrb[0].mxu0 %v5290
        %v5387 = vpop.f32.mrb[0].mxu0
        %v5388 = vadd.f32 %v5319, %v5387
        %v5389 = vpop.f32.mrb[0].mxu0
        %5390 = vmatprep.mubr.f32.mxu0 0.0
        %5391 = vmatmul.mubr.f32.gmra.mrb[0].mxu0 %v5291
        %v5392 = vpop.f32.mrb[0].mxu0
        %v5393 = vadd.f32 %v5319, %v5392
        %v5394 = vpop.f32.mrb[0].mxu0
        %5395 = vmatprep.mubr.f32.mxu0 0.0
        %5396 = vmatmul.mubr.f32.gmra.mrb[0].mxu0 %v5292
        %v5397 = vpop.f32.mrb[0].mxu0
        %v5398 = vadd.f32 %v5319, %v5397
        %v5399 = vpop.f32.mrb[0].mxu0
        %5400 = vmatprep.mubr.f32.mxu0 0.0
        %5401 = vmatmul.mubr.f32.gmra.mrb[0].mxu0 %v5293
        %v5402 = vpop.f32.mrb[0].mxu0
        %v5403 = vadd.f32 %v5319, %v5402
        %v5404 = vpop.f32.mrb[0].mxu0
        %5405 = vmatprep.mubr.f32.mxu0 0.0
        %5406 = vmatmul.mubr.f32.gmra.mrb[0].mxu0 %v5294
        %v5407 = vpop.f32.mrb[0].mxu0
        %v5408 = vadd.f32 %v5319, %v5407
        %v5409 = vpop.f32.mrb[0].mxu0
        %5410 = vmatprep.mubr.f32.mxu0 0.0
        %5411 = vmatmul.mubr.f32.gmra.mrb[0].mxu0 %v5295
        %v5412 = vpop.f32.mrb[0].mxu0
        %v5413 = vadd.f32 %v5319, %v5412
        %v5414 = vpop.f32.mrb[0].mxu0
        %5415 = vmatprep.mubr.f32.mxu0 0.0
        %5416 = vmatmul.mubr.f32.gmra.mrb[0].mxu0 %v5296
        %v5417 = vpop.f32.mrb[0].mxu0
        %v5418 = vadd.f32 %v5319, %v5417
        %v5419 = vpop.f32.mrb[0].mxu0
        %5420 = vmatprep.mubr.f32.mxu0 0.0
        %5421 = vmatmul.mubr.f32.gmra.mrb[0].mxu0 %v5297
        %v5422 = vpop.f32.mrb[0].mxu0
        %v5423 = vadd.f32 %v5319, %v5422
        %v5424 = vpop.f32.mrb[0].mxu0
        %5425 = vdwg.mxu0
        %v5426 = vmax.f32 %v5388, 0.0
        %v5427 = vmax.f32 %v5393, 0.0
        %v5428 = vmax.f32 %v5398, 0.0
        %v5429 = vmax.f32 %v5403, 0.0
        %v5430 = vmax.f32 %v5408, 0.0
        %v5431 = vmax.f32 %v5413, 0.0
        %v5432 = vmax.f32 %v5418, 0.0
        %v5433 = vmax.f32 %v5423, 0.0
        %5434 = vst [vmem:[%s518] sm:$0xff] %v5426
        %5435 = vst [vmem:[%s518 + $0x8] sm:$0xff] %v5427
        %5436 = vst [vmem:[%s518 + $0x10] sm:$0xff] %v5428
        %5437 = vst [vmem:[%s518 + $0x18] sm:$0xff] %v5429
        %5438 = vst [vmem:[%s518 + $0x20] sm:$0xff] %v5430
        %5439 = vst [vmem:[%s518 + $0x28] sm:$0xff] %v5431
        %5440 = vst [vmem:[%s518 + $0x30] sm:$0xff] %v5432
        %5441 = vst [vmem:[%s518 + $0x38] sm:$0xff] %v5433
        %s5442 = sand.u32 %s297, 1
        %s5443 = scalar_lea.sflag [#allocation4], %s5442
        %s5444 = sand.u32 %s297, 1
        %s5445 = smul.addr %s5444, 64
        %s5446 = scalar_lea.vmem [#allocation14], %s5445
        // Predicated region
        $region97: #{tpu_custom_call.1} parent=67 // pred_check
          %p5447 = pneg %p307
        $region98: #{tpu_custom_call.1} parent=67 // pred_check_branch
          %5449 = sbr.rel (%p5447) target = $region100
        $region99: #{tpu_custom_call.1} parent=67 // pred_region
          %s5451 = ssub.s32 1024, 1024
          %5452 = vsyncadd %s5443, %s5451
          %s5453 = smul.addr %s32, 8
          %s5454 = smul.addr %s5453, 128
          %s5455 = scalar_lea.hbm %s12, %s5454
          %s5456 = sshll.u32 %s5446, 4
          %s5457 = int_to_ptr.vmem [resolvable:$true] %s5456
          %5462 = dma.vmem_to_hbm [thread:$0]  %s5457, 1024, %s5455, %s5443, 128, 128, 8
        $region100: #{tpu_custom_call.1} parent=67 // pred_fallthru
          _
      $region68: #{tpu_custom_call.1} parent=5 // pred_fallthru
        _
      %p5463 = scmp.le.s32.totalorder 2, %s27
      // Predicated region
      $region101: #{tpu_custom_call.1} parent=5 // pred_check
        %p5464 = pneg %p5463
      $region102: #{tpu_custom_call.1} parent=5 // pred_check_branch
        %5466 = sbr.rel (%p5464) target = $region104
      $region103: #{tpu_custom_call.1} parent=5 // pred_region
        %s5467 = ssub.s32 %s27, 2
        // Predicated region
        $region105: #{tpu_custom_call.1} parent=103 // pred_check
          %p5468 = pneg %p313
        $region106: #{tpu_custom_call.1} parent=103 // pred_check_branch
          %5470 = sbr.rel (%p5468) target = $region108
        $region107: #{tpu_custom_call.1} parent=103 // pred_region
          %s5471 = sand.u32 %s298, 1
          %s5472 = scalar_lea.sflag [#allocation4], %s5471
          %s5473 = sand.u32 %s298, 1
          %s5474 = smul.addr %s5473, 64
          %s5475 = scalar_lea.vmem [#allocation14], %s5474
          %5476 = dma.done %s5472, 1024
        $region108: #{tpu_custom_call.1} parent=103 // pred_fallthru
          _
      $region104: #{tpu_custom_call.1} parent=5 // pred_fallthru
        _
    $region6: #{tpu_custom_call.1} parent=1 // loop_footer
      %s31 = sadd.s32 1, %s27
    $region7: #{tpu_custom_call.1} parent=1 // loop_footer_branch
      %26 = sbr.rel target = $region3
    $region8: #{tpu_custom_call.1} parent=1 // loop_exit
      _
    %5477 = vsyncpa [#allocation3], 1
    %s5478 = scalar_lea.sflag [#allocation3], 1
    %5479 = vsyncpa %s5478, 1
    %5480 = vsyncpa [#allocation6], 1
    %5481 = vsyncpa [#allocation9], 1
    %5482 = vsyncpa [#allocation12], 1
    %5483 = vsyncpa [#allocation4], 1
    %s5484 = scalar_lea.sflag [#allocation4], 1
    %5485 = vsyncpa %s5484, 1

</llo_original>
